<compile_context>
chip_gen: v7x
topology: tpu7x:2x2x1
jax: 0.10.0
libtpu: 0.0.40
codegen_flags: <defaults>
</compile_context>

<pallas_src>
from functools import partial

import jax
import jax.numpy as jnp
from jax import lax
from jax.experimental import pallas as pl
from jax.experimental.pallas import tpu as pltpu

LANE = 128
VMEM_LIMIT_BYTES = 32 * 1024 * 1024  # explicit scoped-VMEM limit, fits v5e/v6e/v7x


def _pad_c(c):
    return -(-c // LANE) * LANE


def _pick_tm(m, target=512):
    """Largest multiple-of-8 divisor of m <= target; prefer >= 2 grid steps (v7x 2 TCs)."""
    divs = [d for d in range(8, min(m, target) + 1, 8) if m % d == 0]
    if not divs:
        return m                      # full-extent block is always legal
    best = divs[-1]
    if m // best < 2:
        for d in reversed(divs[:-1]):
            if m // d >= 2:
                return d
    return best


def _compiler_params():
    return pltpu.CompilerParams(
        dimension_semantics=("parallel",),
        vmem_limit_bytes=VMEM_LIMIT_BYTES,
    )


# ----------------------------- Pallas kernels ------------------------------

def _mm_bias_relu_kernel(x_ref, w_ref, b_ref, o_ref):
    # bf16 x bf16 -> f32 accumulate on the MXU; bias + ReLU epilogue on the VPU.
    acc = jnp.dot(x_ref[...], w_ref[...], preferred_element_type=jnp.float32)
    o_ref[...] = jnp.maximum(acc + b_ref[...], 0.0).astype(o_ref.dtype)


def _mm_bias_add_relu_kernel(x_ref, w_ref, b_ref, r_ref, o_ref):
    # conv3 + bn3 + identity shortcut + ReLU, fused.
    acc = jnp.dot(x_ref[...], w_ref[...], preferred_element_type=jnp.float32)
    acc = acc + r_ref[...].astype(jnp.float32)
    o_ref[...] = jnp.maximum(acc + b_ref[...], 0.0).astype(o_ref.dtype)


def _mm_bias_proj_add_relu_kernel(x_ref, w_ref, b_ref, r_ref, wr_ref, br_ref, o_ref):
    # conv3 + bn3 + projection shortcut (1x1 conv + bn) + ReLU, fused in one kernel.
    acc = jnp.dot(x_ref[...], w_ref[...], preferred_element_type=jnp.float32)
    acc = acc + jnp.dot(r_ref[...], wr_ref[...], preferred_element_type=jnp.float32)
    o_ref[...] = jnp.maximum(acc + b_ref[...] + br_ref[...], 0.0).astype(o_ref.dtype)


def _make_conv3x3_kernel(stride, Ho, Wo, Cin, Cout):
    s = stride

    def kernel(xph_ref, w_ref, b_ref, o_ref):
        # xph_ref: (1, s*s, Hq, Wq, Cin) phase-split, spatially padded conv1 output.
        # 9 shifted (Ho*Wo, Cin) x (Cin, Cout) accumulations into one f32 accumulator.
        acc = jnp.zeros((Ho * Wo, Cout), jnp.float32)
        for dh in range(3):
            for dw in range(3):
                ph, r0 = dh % s, dh // s
                pw, c0 = dw % s, dw // s
                patch = xph_ref[0, ph * s + pw, pl.ds(r0, Ho), pl.ds(c0, Wo), :]
                patch = patch.reshape(Ho * Wo, Cin)   # Wo is a multiple of 8 here
                acc = acc + jnp.dot(patch, w_ref[dh * 3 + dw],
                                    preferred_element_type=jnp.float32)
        o_ref[0] = jnp.maximum(acc + b_ref[...], 0.0).astype(o_ref.dtype)

    return kernel


# --------------------------- pallas_call wrappers ---------------------------

def matmul_bias_relu(xm, w, b, *, out_dtype):
    M, K = xm.shape
    _, C = w.shape
    tm = _pick_tm(M)
    cost = pl.CostEstimate(
        flops=2 * M * K * C, transcendentals=0,
        bytes_accessed=(M * K * xm.dtype.itemsize + K * C * w.dtype.itemsize
                        + 4 * C + M * C * jnp.dtype(out_dtype).itemsize))
    return pl.pallas_call(
        _mm_bias_relu_kernel,
        out_shape=jax.ShapeDtypeStruct((M, C), out_dtype),
        grid=(M // tm,),
        in_specs=[pl.BlockSpec((tm, K), lambda i: (i, 0)),
                  pl.BlockSpec((K, C), lambda i: (0, 0)),
                  pl.BlockSpec((1, C), lambda i: (0, 0))],
        out_specs=pl.BlockSpec((tm, C), lambda i: (i, 0)),
        compiler_params=_compiler_params(),
        cost_estimate=cost,
    )(xm, w, b)


def matmul_bias_add_relu(xm, w, b, res, *, out_dtype):
    M, K = xm.shape
    _, C = w.shape
    tm = _pick_tm(M)
    cost = pl.CostEstimate(
        flops=2 * M * K * C + M * C, transcendentals=0,
        bytes_accessed=(M * K * xm.dtype.itemsize + K * C * w.dtype.itemsize
                        + M * C * res.dtype.itemsize
                        + M * C * jnp.dtype(out_dtype).itemsize))
    return pl.pallas_call(
        _mm_bias_add_relu_kernel,
        out_shape=jax.ShapeDtypeStruct((M, C), out_dtype),
        grid=(M // tm,),
        in_specs=[pl.BlockSpec((tm, K), lambda i: (i, 0)),
                  pl.BlockSpec((K, C), lambda i: (0, 0)),
                  pl.BlockSpec((1, C), lambda i: (0, 0)),
                  pl.BlockSpec((tm, C), lambda i: (i, 0))],
        out_specs=pl.BlockSpec((tm, C), lambda i: (i, 0)),
        compiler_params=_compiler_params(),
        cost_estimate=cost,
    )(xm, w, b, res)


def matmul_bias_proj_add_relu(xm, w, b, rm, wr, br, *, out_dtype):
    M, K = xm.shape
    _, C = w.shape
    Kr = rm.shape[1]
    tm = _pick_tm(M)
    cost = pl.CostEstimate(
        flops=2 * M * (K + Kr) * C, transcendentals=0,
        bytes_accessed=(M * K * xm.dtype.itemsize + K * C * w.dtype.itemsize
                        + M * Kr * rm.dtype.itemsize + Kr * C * wr.dtype.itemsize
                        + M * C * jnp.dtype(out_dtype).itemsize))
    return pl.pallas_call(
        _mm_bias_proj_add_relu_kernel,
        out_shape=jax.ShapeDtypeStruct((M, C), out_dtype),
        grid=(M // tm,),
        in_specs=[pl.BlockSpec((tm, K), lambda i: (i, 0)),
                  pl.BlockSpec((K, C), lambda i: (0, 0)),
                  pl.BlockSpec((1, C), lambda i: (0, 0)),
                  pl.BlockSpec((tm, Kr), lambda i: (i, 0)),
                  pl.BlockSpec((Kr, C), lambda i: (0, 0)),
                  pl.BlockSpec((1, C), lambda i: (0, 0))],
        out_specs=pl.BlockSpec((tm, C), lambda i: (i, 0)),
        compiler_params=_compiler_params(),
        cost_estimate=cost,
    )(xm, w, b, rm, wr, br)


def conv3x3_bn_relu(xph, w9, b, *, stride, Ho, Wo, out_dtype):
    N, ss, Hq, Wq, Cin = xph.shape
    Cout = w9.shape[-1]
    kernel = _make_conv3x3_kernel(stride, Ho, Wo, Cin, Cout)
    cost = pl.CostEstimate(
        flops=2 * N * Ho * Wo * 9 * Cin * Cout, transcendentals=0,
        bytes_accessed=(xph.size * xph.dtype.itemsize + w9.size * w9.dtype.itemsize
                        + N * Ho * Wo * Cout * jnp.dtype(out_dtype).itemsize))
    return pl.pallas_call(
        kernel,
        out_shape=jax.ShapeDtypeStruct((N, Ho * Wo, Cout), out_dtype),
        grid=(N,),
        in_specs=[pl.BlockSpec((1, ss, Hq, Wq, Cin), lambda n: (n, 0, 0, 0, 0)),
                  pl.BlockSpec((9, Cin, Cout), lambda n: (0, 0, 0)),
                  pl.BlockSpec((1, Cout), lambda n: (0, 0))],
        out_specs=pl.BlockSpec((1, Ho * Wo, Cout), lambda n: (n, 0, 0)),
        compiler_params=_compiler_params(),
        cost_estimate=cost,
    )(xph, w9, b)


# ------------------------------ JAX-side glue -------------------------------

def fold_bn(gamma, beta, mean, var, eps=1e-5):
    scale = gamma / jnp.sqrt(var + eps)
    bias = beta - mean * scale
    return scale, bias


def _fold_pad_w(w_kc, scale, k_pad, c_pad):
    # (K, C) matmul-layout weight; fold BN scale into output channels, zero-pad, bf16.
    K, C = w_kc.shape
    wf = w_kc * scale[None, :]
    wf = jnp.pad(wf, ((0, k_pad - K), (0, c_pad - C)))
    return wf.astype(jnp.bfloat16)


def _fold_pad_w3x3(w_oihw, scale, c_pad):
    # (O, I, 3, 3) torch layout -> (9, Cin_pad, Cout_pad), BN scale folded, bf16.
    w = jnp.transpose(w_oihw, (2, 3, 1, 0)) * scale[None, None, None, :]  # (3,3,I,O)
    I, O = w.shape[2], w.shape[3]
    w = jnp.pad(w, ((0, 0), (0, 0), (0, c_pad - I), (0, c_pad - O)))
    return w.reshape(9, c_pad, c_pad).astype(jnp.bfloat16)


def _pad_bias(b, c_pad):
    return jnp.pad(b, (0, c_pad - b.shape[0])).reshape(1, c_pad).astype(jnp.float32)


def _phase_split(y, stride):
    """pad=1 spatially and split H/W into stride phases (space-to-depth) so every
    3x3 tap is a contiguous slice in-kernel.  (N,H,W,C) -> (N, s*s, Hq, Wq, C)."""
    N, H, W, C = y.shape
    s = stride
    Hq, Wq = -(-(H + 2) // s), -(-(W + 2) // s)
    yp = jnp.pad(y, ((0, 0), (1, Hq * s - H - 1), (1, Wq * s - W - 1), (0, 0)))
    yph = yp.reshape(N, Hq, s, Wq, s, C)
    yph = jnp.transpose(yph, (0, 2, 4, 1, 3, 5)).reshape(N, s * s, Hq, Wq, C)
    return yph


def bottleneck_forward(x_nchw, params, stride):
    x = jnp.transpose(x_nchw, (0, 2, 3, 1))            # -> NHWC
    N, H, W, Cin = x.shape
    planes = params["w1"].shape[1]
    Cout = 4 * planes
    Cin_p, Cm_p, Cout_p = _pad_c(Cin), _pad_c(planes), _pad_c(Cout)
    Ho = (H - 1) // stride + 1
    Wo = (W - 1) // stride + 1

    s1, b1 = fold_bn(*params["bn1"])
    s2, b2 = fold_bn(*params["bn2"])
    s3, b3 = fold_bn(*params["bn3"])
    w1 = _fold_pad_w(params["w1"], s1, Cin_p, Cm_p)
    w2 = _fold_pad_w3x3(params["w2_t"], s2, Cm_p)
    w3 = _fold_pad_w(params["w3"], s3, Cm_p, Cout_p)
    b1p, b2p, b3p = _pad_bias(b1, Cm_p), _pad_bias(b2, Cm_p), _pad_bias(b3, Cout_p)

    # lane-dense bf16 activations (channels zero-padded to a multiple of 128)
    xp = jnp.pad(x, ((0, 0), (0, 0), (0, 0), (0, Cin_p - Cin))).astype(jnp.bfloat16)

    # conv1 (1x1) + bn1 + relu
    y1 = matmul_bias_relu(xp.reshape(N * H * W, Cin_p), w1, b1p, out_dtype=jnp.bfloat16)
    y1 = y1.reshape(N, H, W, Cm_p)

    # conv2 (3x3, stride, pad=1) + bn2 + relu : fused 9-tap kernel, no im2col
    yph = _phase_split(y1, stride)
    y2 = conv3x3_bn_relu(yph, w2, b2p, stride=stride, Ho=Ho, Wo=Wo,
                         out_dtype=jnp.bfloat16)
    y2 = y2.reshape(N * Ho * Wo, Cm_p)

    # conv3 (1x1) + bn3 + shortcut + residual add + relu : single fused kernel
    if "ws" in params:
        ssc, bsc = fold_bn(*params["bns"])
        ws = _fold_pad_w(params["ws"], ssc, Cin_p, Cout_p)
        bsp = _pad_bias(bsc, Cout_p)
        xs = xp[:, ::stride, ::stride, :].reshape(N * Ho * Wo, Cin_p)
        out = matmul_bias_proj_add_relu(y2, w3, b3p, xs, ws, bsp,
                                        out_dtype=jnp.float32)
    else:
        res = xp.reshape(N * H * W, Cin_p)              # Cin_p == Cout_p here
        out = matmul_bias_add_relu(y2, w3, b3p, res, out_dtype=jnp.float32)

    out = out[:, :Cout].reshape(N, Ho, Wo, Cout)
    return jnp.transpose(out, (0, 3, 1, 2))             # back to NCHW


# ------------------------------ reference path -------------------------------

def ref_forward(x_nchw, params, stride):
    def conv(x, w, s, pad):
        return lax.conv_general_dilated(x, w, (s, s), pad,
                                        dimension_numbers=("NCHW", "OIHW", "NCHW"))

    def bn(x, gamma, beta, mean, var, eps=1e-5):
        g = gamma[None, :, None, None]
        b = beta[None, :, None, None]
        m = mean[None, :, None, None]
        v = var[None, :, None, None]
        return (x - m) / jnp.sqrt(v + eps) * g + b

    out = jax.nn.relu(bn(conv(x_nchw, params["w1_t"], 1, "VALID"), *params["bn1"]))
    out = jax.nn.relu(bn(conv(out, params["w2_t"], stride, [(1, 1), (1, 1)]), *params["bn2"]))
    out = bn(conv(out, params["w3_t"], 1, "VALID"), *params["bn3"])
    if "ws_t" in params:
        short = bn(conv(x_nchw, params["ws_t"], stride, "VALID"), *params["bns"])
    else:
        short = x_nchw
    return jax.nn.relu(out + short)


# ------------------------------ parameter init -------------------------------

def init_params(key, in_planes, planes, stride):
    exp = 4
    keys = jax.random.split(key, 8)

    def conv_w(k, cout, cin, kh, kw):
        return 0.1 * jax.random.normal(k, (cout, cin, kh, kw), jnp.float32)

    def bn_full(k, c):
        ks = jax.random.split(k, 4)
        gamma = jax.random.uniform(ks[0], (c,), jnp.float32, 0.5, 1.5)
        beta = 0.1 * jax.random.normal(ks[1], (c,), jnp.float32)
        mean = 0.1 * jax.random.normal(ks[2], (c,), jnp.float32)
        var = jax.random.uniform(ks[3], (c,), jnp.float32, 0.5, 1.5)
        return (gamma, beta, mean, var)

    p = {}
    w1_t = conv_w(keys[0], planes, in_planes, 1, 1)
    w2_t = conv_w(keys[1], planes, planes, 3, 3)
    w3_t = conv_w(keys[2], exp * planes, planes, 1, 1)
    p["w1_t"], p["w2_t"], p["w3_t"] = w1_t, w2_t, w3_t
    # matmul-layout weights for the kernel path
    p["w1"] = w1_t.reshape(planes, in_planes).T                  # (Cin, Cout)
    p["w3"] = w3_t.reshape(exp * planes, planes).T               # (Cmid, Cout)
    p["bn1"] = bn_full(keys[3], planes)
    p["bn2"] = bn_full(keys[4], planes)
    p["bn3"] = bn_full(keys[5], exp * planes)

    if stride != 1 or in_planes != exp * planes:
        ws_t = conv_w(keys[6], exp * planes, in_planes, 1, 1)
        p["ws_t"] = ws_t
        p["ws"] = ws_t.reshape(exp * planes, in_planes).T
        p["bns"] = bn_full(keys[7], exp * planes)
    return p


# ------------------------------------ main ------------------------------------

if __name__ == "__main__":
    key = jax.random.PRNGKey(0)

    configs = [
        # (in_planes, planes, stride, N, H, W)
        (16, 8, 2, 2, 16, 16),   # projection shortcut (strided downsample)
        (32, 8, 1, 2, 8, 8),     # identity shortcut
    ]

    for idx, (in_planes, planes, stride, N, H, W) in enumerate(configs):
        k_x, k_p = jax.random.split(jax.random.fold_in(key, idx))
        x = jax.random.normal(k_x, (N, in_planes, H, W), jnp.float32)  # NCHW
        params = init_params(k_p, in_planes, planes, stride)

        fwd = jax.jit(partial(bottleneck_forward, stride=stride))
        out = jax.block_until_ready(fwd(x, params))
        ref = jax.block_until_ready(ref_forward(x, params, stride))

        Ho = (H - 1) // stride + 1
        Wo = (W - 1) // stride + 1
        assert out.shape == (N, 4 * planes, Ho, Wo), out.shape
        max_err = float(jnp.max(jnp.abs(out - ref)))
        # bf16 MXU inputs with f32 accumulation -> relaxed tolerance vs f32 reference
        assert jnp.allclose(out, ref, atol=5e-2, rtol=3e-2), max_err

    print("KERNEL_OK")
</pallas_src>

<mosaic_0001>
module attributes {stable_mosaic.version = 11 : i64} {
  func.func @_mm_bias_relu_kernel(%arg0: i32, %arg1: memref<256x128xbf16, #tpu.memory_space<vmem>>, %arg2: memref<128x128xbf16, #tpu.memory_space<vmem>>, %arg3: memref<1x128xf32, #tpu.memory_space<vmem>>, %arg4: memref<256x128xbf16, #tpu.memory_space<vmem>>) attributes {dimension_semantics = [#tpu.dimension_semantics<parallel>], iteration_bounds = array<i64: 2>, scalar_prefetch = 0 : i64, scratch_operands = 0 : i64, tpu.core_type = #tpu.core_type<tc>, window_params = [{transform_indices = @transform_0, window_bounds = array<i64: 256, 128>}, {pipeline_mode = #tpu.pipeline_mode<synchronous>, transform_indices = @transform_1, window_bounds = array<i64: 128, 128>}, {pipeline_mode = #tpu.pipeline_mode<synchronous>, transform_indices = @transform_2, window_bounds = array<i64: 1, 128>}, {transform_indices = @transform_3, window_bounds = array<i64: 256, 128>}]} {
    %c0 = arith.constant 0 : index
    %c0_0 = arith.constant 0 : index
    %0 = vector.load %arg1[%c0, %c0_0] : memref<256x128xbf16, #tpu.memory_space<vmem>>, vector<256x128xbf16>
    %c0_1 = arith.constant 0 : index
    %c0_2 = arith.constant 0 : index
    %1 = vector.load %arg2[%c0_1, %c0_2] : memref<128x128xbf16, #tpu.memory_space<vmem>>, vector<128x128xbf16>
    %cst = arith.constant dense<0.000000e+00> : vector<256x128xf32>
    %2 = tpu.matmul %0, %1, %cst {dimension_numbers = #tpu.dot_dimension_numbers<[1], [0], [0], [1], [0, 0, 1, 1], [], []>} : vector<256x128xbf16>, vector<128x128xbf16>, vector<256x128xf32> -> vector<256x128xf32>
    %c0_3 = arith.constant 0 : index
    %c0_4 = arith.constant 0 : index
    %3 = vector.load %arg3[%c0_3, %c0_4] : memref<1x128xf32, #tpu.memory_space<vmem>>, vector<1x128xf32>
    %4 = vector.broadcast %3 : vector<1x128xf32> to vector<256x128xf32>
    %5 = arith.addf %2, %4 : vector<256x128xf32>
    %cst_5 = arith.constant 0.000000e+00 : f32
    %6 = vector.broadcast %cst_5 : f32 to vector<256x128xf32>
    %7 = arith.maximumf %5, %6 : vector<256x128xf32>
    %8 = arith.truncf %7 : vector<256x128xf32> to vector<256x128xbf16>
    %c0_6 = arith.constant 0 : index
    %c0_7 = arith.constant 0 : index
    %9 = vector.load %arg4[%c0_6, %c0_7] : memref<256x128xbf16, #tpu.memory_space<vmem>>, vector<256x128xbf16>
    tpu.vector_store %arg4[%c0_6, %c0_7], %8 {strides = array<i32>} : memref<256x128xbf16, #tpu.memory_space<vmem>>, vector<256x128xbf16>,
    return
  }
  func.func @transform_0(%arg0: i32) -> (i32, i32) {
    %c0_i32 = arith.constant 0 : i32
    %c0_i32_0 = arith.constant 0 : i32
    return %arg0, %c0_i32 : i32, i32
  }
  func.func @transform_1(%arg0: i32) -> (i32, i32) {
    %c0_i32 = arith.constant 0 : i32
    %c0_i32_0 = arith.constant 0 : i32
    %c0_i32_1 = arith.constant 0 : i32
    return %c0_i32, %c0_i32_0 : i32, i32
  }
  func.func @transform_2(%arg0: i32) -> (i32, i32) {
    %c0_i32 = arith.constant 0 : i32
    %c0_i32_0 = arith.constant 0 : i32
    %c0_i32_1 = arith.constant 0 : i32
    return %c0_i32, %c0_i32_0 : i32, i32
  }
  func.func @transform_3(%arg0: i32) -> (i32, i32) {
    %c0_i32 = arith.constant 0 : i32
    %c0_i32_0 = arith.constant 0 : i32
    return %arg0, %c0_i32 : i32, i32
  }
}

module attributes {stable_mosaic.version = 11 : i64} {
  func.func @kernel(%arg0: i32, %arg1: memref<1x4x9x9x128xbf16, #tpu.memory_space<vmem>>, %arg2: memref<9x128x128xbf16, #tpu.memory_space<vmem>>, %arg3: memref<1x128xf32, #tpu.memory_space<vmem>>, %arg4: memref<1x64x128xbf16, #tpu.memory_space<vmem>>) attributes {dimension_semantics = [#tpu.dimension_semantics<parallel>], iteration_bounds = array<i64: 2>, scalar_prefetch = 0 : i64, scratch_operands = 0 : i64, tpu.core_type = #tpu.core_type<tc>, window_params = [{transform_indices = @transform_0, window_bounds = array<i64: 1, 4, 9, 9, 128>}, {pipeline_mode = #tpu.pipeline_mode<synchronous>, transform_indices = @transform_1, window_bounds = array<i64: 9, 128, 128>}, {pipeline_mode = #tpu.pipeline_mode<synchronous>, transform_indices = @transform_2, window_bounds = array<i64: 1, 128>}, {transform_indices = @transform_3, window_bounds = array<i64: 1, 64, 128>}]} {
    %cst = arith.constant 0.000000e+00 : f32
    %0 = vector.broadcast %cst : f32 to vector<64x128xf32>
    %c0 = arith.constant 0 : index
    %c0_0 = arith.constant 0 : index
    %c0_1 = arith.constant 0 : index
    %c0_2 = arith.constant 0 : index
    %c0_3 = arith.constant 0 : index
    %1 = vector.load %arg1[%c0, %c0_0, %c0_1, %c0_2, %c0_3] : memref<1x4x9x9x128xbf16, #tpu.memory_space<vmem>>, vector<1x1x8x8x128xbf16>
    %2 = vector.shape_cast %1 : vector<1x1x8x8x128xbf16> to vector<8x8x128xbf16>
    %3 = vector.shape_cast %2 : vector<8x8x128xbf16> to vector<64x128xbf16>
    %c0_4 = arith.constant 0 : index
    %c0_5 = arith.constant 0 : index
    %c0_6 = arith.constant 0 : index
    %4 = vector.load %arg2[%c0_4, %c0_5, %c0_6] : memref<9x128x128xbf16, #tpu.memory_space<vmem>>, vector<1x128x128xbf16>
    %5 = vector.shape_cast %4 : vector<1x128x128xbf16> to vector<128x128xbf16>
    %cst_7 = arith.constant dense<0.000000e+00> : vector<64x128xf32>
    %6 = tpu.matmul %3, %5, %cst_7 {dimension_numbers = #tpu.dot_dimension_numbers<[1], [0], [0], [1], [0, 0, 1, 1], [], []>} : vector<64x128xbf16>, vector<128x128xbf16>, vector<64x128xf32> -> vector<64x128xf32>
    %7 = arith.addf %0, %6 : vector<64x128xf32>
    %c0_8 = arith.constant 0 : index
    %c1 = arith.constant 1 : index
    %c0_9 = arith.constant 0 : index
    %c0_10 = arith.constant 0 : index
    %c0_11 = arith.constant 0 : index
    %8 = vector.load %arg1[%c0_8, %c1, %c0_9, %c0_10, %c0_11] : memref<1x4x9x9x128xbf16, #tpu.memory_space<vmem>>, vector<1x1x8x8x128xbf16>
    %9 = vector.shape_cast %8 : vector<1x1x8x8x128xbf16> to vector<8x8x128xbf16>
    %10 = vector.shape_cast %9 : vector<8x8x128xbf16> to vector<64x128xbf16>
    %c1_12 = arith.constant 1 : index
    %c0_13 = arith.constant 0 : index
    %c0_14 = arith.constant 0 : index
    %11 = vector.load %arg2[%c1_12, %c0_13, %c0_14] : memref<9x128x128xbf16, #tpu.memory_space<vmem>>, vector<1x128x128xbf16>
    %12 = vector.shape_cast %11 : vector<1x128x128xbf16> to vector<128x128xbf16>
    %cst_15 = arith.constant dense<0.000000e+00> : vector<64x128xf32>
    %13 = tpu.matmul %10, %12, %cst_15 {dimension_numbers = #tpu.dot_dimension_numbers<[1], [0], [0], [1], [0, 0, 1, 1], [], []>} : vector<64x128xbf16>, vector<128x128xbf16>, vector<64x128xf32> -> vector<64x128xf32>
    %14 = arith.addf %7, %13 : vector<64x128xf32>
    %c0_16 = arith.constant 0 : index
    %c0_17 = arith.constant 0 : index
    %c0_18 = arith.constant 0 : index
    %c1_19 = arith.constant 1 : index
    %c0_20 = arith.constant 0 : index
    %15 = vector.load %arg1[%c0_16, %c0_17, %c0_18, %c1_19, %c0_20] : memref<1x4x9x9x128xbf16, #tpu.memory_space<vmem>>, vector<1x1x8x8x128xbf16>
    %16 = vector.shape_cast %15 : vector<1x1x8x8x128xbf16> to vector<8x8x128xbf16>
    %17 = vector.shape_cast %16 : vector<8x8x128xbf16> to vector<64x128xbf16>
    %c2 = arith.constant 2 : index
    %c0_21 = arith.constant 0 : index
    %c0_22 = arith.constant 0 : index
    %18 = vector.load %arg2[%c2, %c0_21, %c0_22] : memref<9x128x128xbf16, #tpu.memory_space<vmem>>, vector<1x128x128xbf16>
    %19 = vector.shape_cast %18 : vector<1x128x128xbf16> to vector<128x128xbf16>
    %cst_23 = arith.constant dense<0.000000e+00> : vector<64x128xf32>
    %20 = tpu.matmul %17, %19, %cst_23 {dimension_numbers = #tpu.dot_dimension_numbers<[1], [0], [0], [1], [0, 0, 1, 1], [], []>} : vector<64x128xbf16>, vector<128x128xbf16>, vector<64x128xf32> -> vector<64x128xf32>
    %21 = arith.addf %14, %20 : vector<64x128xf32>
    %c0_24 = arith.constant 0 : index
    %c2_25 = arith.constant 2 : index
    %c0_26 = arith.constant 0 : index
    %c0_27 = arith.constant 0 : index
    %c0_28 = arith.constant 0 : index
    %22 = vector.load %arg1[%c0_24, %c2_25, %c0_26, %c0_27, %c0_28] : memref<1x4x9x9x128xbf16, #tpu.memory_space<vmem>>, vector<1x1x8x8x128xbf16>
    %23 = vector.shape_cast %22 : vector<1x1x8x8x128xbf16> to vector<8x8x128xbf16>
    %24 = vector.shape_cast %23 : vector<8x8x128xbf16> to vector<64x128xbf16>
    %c3 = arith.constant 3 : index
    %c0_29 = arith.constant 0 : index
    %c0_30 = arith.constant 0 : index
    %25 = vector.load %arg2[%c3, %c0_29, %c0_30] : memref<9x128x128xbf16, #tpu.memory_space<vmem>>, vector<1x128x128xbf16>
    %26 = vector.shape_cast %25 : vector<1x128x128xbf16> to vector<128x128xbf16>
    %cst_31 = arith.constant dense<0.000000e+00> : vector<64x128xf32>
    %27 = tpu.matmul %24, %26, %cst_31 {dimension_numbers = #tpu.dot_dimension_numbers<[1], [0], [0], [1], [0, 0, 1, 1], [], []>} : vector<64x128xbf16>, vector<128x128xbf16>, vector<64x128xf32> -> vector<64x128xf32>
    %28 = arith.addf %21, %27 : vector<64x128xf32>
    %c0_32 = arith.constant 0 : index
    %c3_33 = arith.constant 3 : index
    %c0_34 = arith.constant 0 : index
    %c0_35 = arith.constant 0 : index
    %c0_36 = arith.constant 0 : index
    %29 = vector.load %arg1[%c0_32, %c3_33, %c0_34, %c0_35, %c0_36] : memref<1x4x9x9x128xbf16, #tpu.memory_space<vmem>>, vector<1x1x8x8x128xbf16>
    %30 = vector.shape_cast %29 : vector<1x1x8x8x128xbf16> to vector<8x8x128xbf16>
    %31 = vector.shape_cast %30 : vector<8x8x128xbf16> to vector<64x128xbf16>
    %c4 = arith.constant 4 : index
    %c0_37 = arith.constant 0 : index
    %c0_38 = arith.constant 0 : index
    %32 = vector.load %arg2[%c4, %c0_37, %c0_38] : memref<9x128x128xbf16, #tpu.memory_space<vmem>>, vector<1x128x128xbf16>
    %33 = vector.shape_cast %32 : vector<1x128x128xbf16> to vector<128x128xbf16>
    %cst_39 = arith.constant dense<0.000000e+00> : vector<64x128xf32>
    %34 = tpu.matmul %31, %33, %cst_39 {dimension_numbers = #tpu.dot_dimension_numbers<[1], [0], [0], [1], [0, 0, 1, 1], [], []>} : vector<64x128xbf16>, vector<128x128xbf16>, vector<64x128xf32> -> vector<64x128xf32>
    %35 = arith.addf %28, %34 : vector<64x128xf32>
    %c0_40 = arith.constant 0 : index
    %c2_41 = arith.constant 2 : index
    %c0_42 = arith.constant 0 : index
    %c1_43 = arith.constant 1 : index
    %c0_44 = arith.constant 0 : index
    %36 = vector.load %arg1[%c0_40, %c2_41, %c0_42, %c1_43, %c0_44] : memref<1x4x9x9x128xbf16, #tpu.memory_space<vmem>>, vector<1x1x8x8x128xbf16>
    %37 = vector.shape_cast %36 : vector<1x1x8x8x128xbf16> to vector<8x8x128xbf16>
    %38 = vector.shape_cast %37 : vector<8x8x128xbf16> to vector<64x128xbf16>
    %c5 = arith.constant 5 : index
    %c0_45 = arith.constant 0 : index
    %c0_46 = arith.constant 0 : index
    %39 = vector.load %arg2[%c5, %c0_45, %c0_46] : memref<9x128x128xbf16, #tpu.memory_space<vmem>>, vector<1x128x128xbf16>
    %40 = vector.shape_cast %39 : vector<1x128x128xbf16> to vector<128x128xbf16>
    %cst_47 = arith.constant dense<0.000000e+00> : vector<64x128xf32>
    %41 = tpu.matmul %38, %40, %cst_47 {dimension_numbers = #tpu.dot_dimension_numbers<[1], [0], [0], [1], [0, 0, 1, 1], [], []>} : vector<64x128xbf16>, vector<128x128xbf16>, vector<64x128xf32> -> vector<64x128xf32>
    %42 = arith.addf %35, %41 : vector<64x128xf32>
    %c0_48 = arith.constant 0 : index
    %c0_49 = arith.constant 0 : index
    %c1_50 = arith.constant 1 : index
    %c0_51 = arith.constant 0 : index
    %c0_52 = arith.constant 0 : index
    %43 = vector.load %arg1[%c0_48, %c0_49, %c1_50, %c0_51, %c0_52] : memref<1x4x9x9x128xbf16, #tpu.memory_space<vmem>>, vector<1x1x8x8x128xbf16>
    %44 = vector.shape_cast %43 : vector<1x1x8x8x128xbf16> to vector<8x8x128xbf16>
    %45 = vector.shape_cast %44 : vector<8x8x128xbf16> to vector<64x128xbf16>
    %c6 = arith.constant 6 : index
    %c0_53 = arith.constant 0 : index
    %c0_54 = arith.constant 0 : index
    %46 = vector.load %arg2[%c6, %c0_53, %c0_54] : memref<9x128x128xbf16, #tpu.memory_space<vmem>>, vector<1x128x128xbf16>
    %47 = vector.shape_cast %46 : vector<1x128x128xbf16> to vector<128x128xbf16>
    %cst_55 = arith.constant dense<0.000000e+00> : vector<64x128xf32>
    %48 = tpu.matmul %45, %47, %cst_55 {dimension_numbers = #tpu.dot_dimension_numbers<[1], [0], [0], [1], [0, 0, 1, 1], [], []>} : vector<64x128xbf16>, vector<128x128xbf16>, vector<64x128xf32> -> vector<64x128xf32>
    %49 = arith.addf %42, %48 : vector<64x128xf32>
    %c0_56 = arith.constant 0 : index
    %c1_57 = arith.constant 1 : index
    %c1_58 = arith.constant 1 : index
    %c0_59 = arith.constant 0 : index
    %c0_60 = arith.constant 0 : index
    %50 = vector.load %arg1[%c0_56, %c1_57, %c1_58, %c0_59, %c0_60] : memref<1x4x9x9x128xbf16, #tpu.memory_space<vmem>>, vector<1x1x8x8x128xbf16>
    %51 = vector.shape_cast %50 : vector<1x1x8x8x128xbf16> to vector<8x8x128xbf16>
    %52 = vector.shape_cast %51 : vector<8x8x128xbf16> to vector<64x128xbf16>
    %c7 = arith.constant 7 : index
    %c0_61 = arith.constant 0 : index
    %c0_62 = arith.constant 0 : index
    %53 = vector.load %arg2[%c7, %c0_61, %c0_62] : memref<9x128x128xbf16, #tpu.memory_space<vmem>>, vector<1x128x128xbf16>
    %54 = vector.shape_cast %53 : vector<1x128x128xbf16> to vector<128x128xbf16>
    %cst_63 = arith.constant dense<0.000000e+00> : vector<64x128xf32>
    %55 = tpu.matmul %52, %54, %cst_63 {dimension_numbers = #tpu.dot_dimension_numbers<[1], [0], [0], [1], [0, 0, 1, 1], [], []>} : vector<64x128xbf16>, vector<128x128xbf16>, vector<64x128xf32> -> vector<64x128xf32>
    %56 = arith.addf %49, %55 : vector<64x128xf32>
    %c0_64 = arith.constant 0 : index
    %c0_65 = arith.constant 0 : index
    %c1_66 = arith.constant 1 : index
    %c1_67 = arith.constant 1 : index
    %c0_68 = arith.constant 0 : index
    %57 = vector.load %arg1[%c0_64, %c0_65, %c1_66, %c1_67, %c0_68] : memref<1x4x9x9x128xbf16, #tpu.memory_space<vmem>>, vector<1x1x8x8x128xbf16>
    %58 = vector.shape_cast %57 : vector<1x1x8x8x128xbf16> to vector<8x8x128xbf16>
    %59 = vector.shape_cast %58 : vector<8x8x128xbf16> to vector<64x128xbf16>
    %c8 = arith.constant 8 : index
    %c0_69 = arith.constant 0 : index
    %c0_70 = arith.constant 0 : index
    %60 = vector.load %arg2[%c8, %c0_69, %c0_70] : memref<9x128x128xbf16, #tpu.memory_space<vmem>>, vector<1x128x128xbf16>
    %61 = vector.shape_cast %60 : vector<1x128x128xbf16> to vector<128x128xbf16>
    %cst_71 = arith.constant dense<0.000000e+00> : vector<64x128xf32>
    %62 = tpu.matmul %59, %61, %cst_71 {dimension_numbers = #tpu.dot_dimension_numbers<[1], [0], [0], [1], [0, 0, 1, 1], [], []>} : vector<64x128xbf16>, vector<128x128xbf16>, vector<64x128xf32> -> vector<64x128xf32>
    %63 = arith.addf %56, %62 : vector<64x128xf32>
    %c0_72 = arith.constant 0 : index
    %c0_73 = arith.constant 0 : index
    %64 = vector.load %arg3[%c0_72, %c0_73] : memref<1x128xf32, #tpu.memory_space<vmem>>, vector<1x128xf32>
    %65 = vector.broadcast %64 : vector<1x128xf32> to vector<64x128xf32>
    %66 = arith.addf %63, %65 : vector<64x128xf32>
    %cst_74 = arith.constant 0.000000e+00 : f32
    %67 = vector.broadcast %cst_74 : f32 to vector<64x128xf32>
    %68 = arith.maximumf %66, %67 : vector<64x128xf32>
    %69 = arith.truncf %68 : vector<64x128xf32> to vector<64x128xbf16>
    %c0_75 = arith.constant 0 : index
    %c0_76 = arith.constant 0 : index
    %c0_77 = arith.constant 0 : index
    %70 = vector.load %arg4[%c0_75, %c0_76, %c0_77] : memref<1x64x128xbf16, #tpu.memory_space<vmem>>, vector<1x64x128xbf16>
    %71 = vector.shape_cast %70 : vector<1x64x128xbf16> to vector<64x128xbf16>
    %72 = vector.shape_cast %69 : vector<64x128xbf16> to vector<1x64x128xbf16>
    tpu.vector_store %arg4[%c0_75, %c0_76, %c0_77], %72 {strides = array<i32>} : memref<1x64x128xbf16, #tpu.memory_space<vmem>>, vector<1x64x128xbf16>,
    return
  }
  func.func @transform_0(%arg0: i32) -> (i32, i32, i32, i32, i32) {
    %c0_i32 = arith.constant 0 : i32
    %c0_i32_0 = arith.constant 0 : i32
    %c0_i32_1 = arith.constant 0 : i32
    %c0_i32_2 = arith.constant 0 : i32
    %c0_i32_3 = arith.constant 0 : i32
    return %arg0, %c0_i32, %c0_i32_0, %c0_i32_1, %c0_i32_2 : i32, i32, i32, i32, i32
  }
  func.func @transform_1(%arg0: i32) -> (i32, i32, i32) {
    %c0_i32 = arith.constant 0 : i32
    %c0_i32_0 = arith.constant 0 : i32
    %c0_i32_1 = arith.constant 0 : i32
    %c0_i32_2 = arith.constant 0 : i32
    return %c0_i32, %c0_i32_0, %c0_i32_1 : i32, i32, i32
  }
  func.func @transform_2(%arg0: i32) -> (i32, i32) {
    %c0_i32 = arith.constant 0 : i32
    %c0_i32_0 = arith.constant 0 : i32
    %c0_i32_1 = arith.constant 0 : i32
    return %c0_i32, %c0_i32_0 : i32, i32
  }
  func.func @transform_3(%arg0: i32) -> (i32, i32, i32) {
    %c0_i32 = arith.constant 0 : i32
    %c0_i32_0 = arith.constant 0 : i32
    %c0_i32_1 = arith.constant 0 : i32
    return %arg0, %c0_i32, %c0_i32_0 : i32, i32, i32
  }
}

module attributes {stable_mosaic.version = 11 : i64} {
  func.func @_mm_bias_proj_add_relu_kernel(%arg0: i32, %arg1: memref<64x128xbf16, #tpu.memory_space<vmem>>, %arg2: memref<128x128xbf16, #tpu.memory_space<vmem>>, %arg3: memref<1x128xf32, #tpu.memory_space<vmem>>, %arg4: memref<64x128xbf16, #tpu.memory_space<vmem>>, %arg5: memref<128x128xbf16, #tpu.memory_space<vmem>>, %arg6: memref<1x128xf32, #tpu.memory_space<vmem>>, %arg7: memref<64x128xf32, #tpu.memory_space<vmem>>) attributes {dimension_semantics = [#tpu.dimension_semantics<parallel>], iteration_bounds = array<i64: 2>, scalar_prefetch = 0 : i64, scratch_operands = 0 : i64, tpu.core_type = #tpu.core_type<tc>, window_params = [{transform_indices = @transform_0, window_bounds = array<i64: 64, 128>}, {pipeline_mode = #tpu.pipeline_mode<synchronous>, transform_indices = @transform_1, window_bounds = array<i64: 128, 128>}, {pipeline_mode = #tpu.pipeline_mode<synchronous>, transform_indices = @transform_2, window_bounds = array<i64: 1, 128>}, {transform_indices = @transform_3, window_bounds = array<i64: 64, 128>}, {pipeline_mode = #tpu.pipeline_mode<synchronous>, transform_indices = @transform_4, window_bounds = array<i64: 128, 128>}, {pipeline_mode = #tpu.pipeline_mode<synchronous>, transform_indices = @transform_5, window_bounds = array<i64: 1, 128>}, {transform_indices = @transform_6, window_bounds = array<i64: 64, 128>}]} {
    %c0 = arith.constant 0 : index
    %c0_0 = arith.constant 0 : index
    %0 = vector.load %arg1[%c0, %c0_0] : memref<64x128xbf16, #tpu.memory_space<vmem>>, vector<64x128xbf16>
    %c0_1 = arith.constant 0 : index
    %c0_2 = arith.constant 0 : index
    %1 = vector.load %arg2[%c0_1, %c0_2] : memref<128x128xbf16, #tpu.memory_space<vmem>>, vector<128x128xbf16>
    %cst = arith.constant dense<0.000000e+00> : vector<64x128xf32>
    %2 = tpu.matmul %0, %1, %cst {dimension_numbers = #tpu.dot_dimension_numbers<[1], [0], [0], [1], [0, 0, 1, 1], [], []>} : vector<64x128xbf16>, vector<128x128xbf16>, vector<64x128xf32> -> vector<64x128xf32>
    %c0_3 = arith.constant 0 : index
    %c0_4 = arith.constant 0 : index
    %3 = vector.load %arg4[%c0_3, %c0_4] : memref<64x128xbf16, #tpu.memory_space<vmem>>, vector<64x128xbf16>
    %c0_5 = arith.constant 0 : index
    %c0_6 = arith.constant 0 : index
    %4 = vector.load %arg5[%c0_5, %c0_6] : memref<128x128xbf16, #tpu.memory_space<vmem>>, vector<128x128xbf16>
    %cst_7 = arith.constant dense<0.000000e+00> : vector<64x128xf32>
    %5 = tpu.matmul %3, %4, %cst_7 {dimension_numbers = #tpu.dot_dimension_numbers<[1], [0], [0], [1], [0, 0, 1, 1], [], []>} : vector<64x128xbf16>, vector<128x128xbf16>, vector<64x128xf32> -> vector<64x128xf32>
    %6 = arith.addf %2, %5 : vector<64x128xf32>
    %c0_8 = arith.constant 0 : index
    %c0_9 = arith.constant 0 : index
    %7 = vector.load %arg3[%c0_8, %c0_9] : memref<1x128xf32, #tpu.memory_space<vmem>>, vector<1x128xf32>
    %8 = vector.broadcast %7 : vector<1x128xf32> to vector<64x128xf32>
    %9 = arith.addf %6, %8 : vector<64x128xf32>
    %c0_10 = arith.constant 0 : index
    %c0_11 = arith.constant 0 : index
    %10 = vector.load %arg6[%c0_10, %c0_11] : memref<1x128xf32, #tpu.memory_space<vmem>>, vector<1x128xf32>
    %11 = vector.broadcast %10 : vector<1x128xf32> to vector<64x128xf32>
    %12 = arith.addf %9, %11 : vector<64x128xf32>
    %cst_12 = arith.constant 0.000000e+00 : f32
    %13 = vector.broadcast %cst_12 : f32 to vector<64x128xf32>
    %14 = arith.maximumf %12, %13 : vector<64x128xf32>
    %c0_13 = arith.constant 0 : index
    %c0_14 = arith.constant 0 : index
    %15 = vector.load %arg7[%c0_13, %c0_14] : memref<64x128xf32, #tpu.memory_space<vmem>>, vector<64x128xf32>
    tpu.vector_store %arg7[%c0_13, %c0_14], %14 {strides = array<i32>} : memref<64x128xf32, #tpu.memory_space<vmem>>, vector<64x128xf32>,
    return
  }
  func.func @transform_0(%arg0: i32) -> (i32, i32) {
    %c0_i32 = arith.constant 0 : i32
    %c0_i32_0 = arith.constant 0 : i32
    return %arg0, %c0_i32 : i32, i32
  }
  func.func @transform_1(%arg0: i32) -> (i32, i32) {
    %c0_i32 = arith.constant 0 : i32
    %c0_i32_0 = arith.constant 0 : i32
    %c0_i32_1 = arith.constant 0 : i32
    return %c0_i32, %c0_i32_0 : i32, i32
  }
  func.func @transform_2(%arg0: i32) -> (i32, i32) {
    %c0_i32 = arith.constant 0 : i32
    %c0_i32_0 = arith.constant 0 : i32
    %c0_i32_1 = arith.constant 0 : i32
    return %c0_i32, %c0_i32_0 : i32, i32
  }
  func.func @transform_3(%arg0: i32) -> (i32, i32) {
    %c0_i32 = arith.constant 0 : i32
    %c0_i32_0 = arith.constant 0 : i32
    return %arg0, %c0_i32 : i32, i32
  }
  func.func @transform_4(%arg0: i32) -> (i32, i32) {
    %c0_i32 = arith.constant 0 : i32
    %c0_i32_0 = arith.constant 0 : i32
    %c0_i32_1 = arith.constant 0 : i32
    return %c0_i32, %c0_i32_0 : i32, i32
  }
  func.func @transform_5(%arg0: i32) -> (i32, i32) {
    %c0_i32 = arith.constant 0 : i32
    %c0_i32_0 = arith.constant 0 : i32
    %c0_i32_1 = arith.constant 0 : i32
    return %c0_i32, %c0_i32_0 : i32, i32
  }
  func.func @transform_6(%arg0: i32) -> (i32, i32) {
    %c0_i32 = arith.constant 0 : i32
    %c0_i32_0 = arith.constant 0 : i32
    return %arg0, %c0_i32 : i32, i32
  }
}

</mosaic_0001>

<llo_original>
// kernel: bottleneck_forward.3
$region0: #{bottleneck_forward.3}
  #allocation0 [shape = 'u32[]', space=smem, size = 0x4, offset = 0x4, fixed_abs, tag = 'smem constant byte address 0x4 - core index']
  #allocation1 [shape = 'u32[144,128]{1,0:T(1,128)}', space=vmem, size = 0x12000, scoped, tag = 'internal scratch']
  %s0 = inlined_call_operand.vmem [shape: bf16[512,128], index: 0, kind: input, shape index: {}]
  %s1 = inlined_call_operand.vmem [shape: bf16[128,128], index: 1, kind: input, shape index: {}]
  %s2 = inlined_call_operand.vmem [shape: f32[1,128], index: 2, kind: input, shape index: {}]
  %s3 = inlined_call_operand.vmem [shape: bf16[512,128], index: 3, kind: output, shape index: {}]
  %s4 = sld [smem:[#allocation0]]
  $region45: #{bottleneck_forward.3} parent=0
    _
  %s6 = ssub.s32 1, %s4
  %s7 = scalar_select 0, %s6, %s4
  loop: start=0, step=1, limit=4
  $region2: #{bottleneck_forward.3} parent=0 // loop_pre_header
    _
  $region3: #{bottleneck_forward.3} parent=0 // loop_header
    %s9 = sphi 0, %s13
    %p10 = scmp.ge.s32.totalorder %s9, 4
    %s19 = sphi 0, %s21
    %s22 = sphi 0, %s19
    %s23 = sphi 0, %s22
    %s39 = sphi 0, %s23
    %s43 = sphi 0, %s43
    %s45 = sphi 0, %s43
    %s46 = sphi 0, %s45
    %s60 = sphi 0, %s46
    %s64 = sphi 0, %s64
    %s66 = sphi 0, %s64
    %s67 = sphi 0, %s66
    %s81 = sphi 0, %s67
    %s87 = sphi 0, %s89
    %s90 = sphi 0, %s87
    %s91 = sphi 0, %s90
    %s107 = sphi 0, %s91
  $region4: #{bottleneck_forward.3} parent=0 // loop_header_branch
    %12 = sbr.rel (%p10) target = $region8
  $region5: #{bottleneck_forward.3} parent=0 // loop_body
    %s14 = ssub.s32 %s9, 1
    %s15 = ssub.s32 %s9, 2
    %s16 = sadd.s32 %s9, 1
    %s17 = ssub.s32 %s9, %s16
    %p18 = scmp.eq.s32.totalorder %s17, 0
    %s20 = sadd.s32 %s19, 1
    %s21 = scalar_select %p18, %s19, %s20
    %p24 = pneg %p18
    %p25 = scmp.eq.s32.totalorder %s9, 1
    %p26 = por %p24, %p25
    %p27 = scmp.ne.s32.totalorder %s19, %s22
    %p28 = scmp.eq.s32.totalorder %s9, 0
    %p29 = por %p27, %p28
    %p30 = scmp.ne.s32.totalorder %s19, %s22
    %p31 = scmp.eq.s32.totalorder %s14, 1
    %p32 = por %p30, %p31
    %p33 = scmp.ne.s32.totalorder %s22, %s23
    %p34 = scmp.eq.s32.totalorder %s14, 0
    %p35 = por %p33, %p34
    %p36 = scmp.ne.s32.totalorder %s22, %s23
    %p37 = scmp.eq.s32.totalorder %s15, 1
    %p38 = por %p36, %p37
    %p40 = scmp.ne.s32.totalorder %s23, %s39
    %p41 = scmp.eq.s32.totalorder %s15, 0
    %p42 = por %p40, %p41
    %s44 = sadd.s32 %s43, 1
    %p47 = scmp.eq.s32.totalorder %s9, 1
    %p48 = scmp.ne.s32.totalorder %s43, %s45
    %p49 = scmp.eq.s32.totalorder %s9, 0
    %p50 = por %p48, %p49
    %p51 = scmp.ne.s32.totalorder %s43, %s45
    %p52 = scmp.eq.s32.totalorder %s14, 1
    %p53 = por %p51, %p52
    %p54 = scmp.ne.s32.totalorder %s45, %s46
    %p55 = scmp.eq.s32.totalorder %s14, 0
    %p56 = por %p54, %p55
    %p57 = scmp.ne.s32.totalorder %s45, %s46
    %p58 = scmp.eq.s32.totalorder %s15, 1
    %p59 = por %p57, %p58
    %p61 = scmp.ne.s32.totalorder %s46, %s60
    %p62 = scmp.eq.s32.totalorder %s15, 0
    %p63 = por %p61, %p62
    %s65 = sadd.s32 %s64, 1
    %p68 = scmp.eq.s32.totalorder %s9, 1
    %p69 = scmp.ne.s32.totalorder %s64, %s66
    %p70 = scmp.eq.s32.totalorder %s9, 0
    %p71 = por %p69, %p70
    %p72 = scmp.ne.s32.totalorder %s64, %s66
    %p73 = scmp.eq.s32.totalorder %s14, 1
    %p74 = por %p72, %p73
    %p75 = scmp.ne.s32.totalorder %s66, %s67
    %p76 = scmp.eq.s32.totalorder %s14, 0
    %p77 = por %p75, %p76
    %p78 = scmp.ne.s32.totalorder %s66, %s67
    %p79 = scmp.eq.s32.totalorder %s15, 1
    %p80 = por %p78, %p79
    %p82 = scmp.ne.s32.totalorder %s67, %s81
    %p83 = scmp.eq.s32.totalorder %s15, 0
    %p84 = por %p82, %p83
    %s85 = ssub.s32 %s9, %s16
    %p86 = scmp.eq.s32.totalorder %s85, 0
    %s88 = sadd.s32 %s87, 1
    %s89 = scalar_select %p86, %s87, %s88
    %p92 = pneg %p86
    %p93 = scmp.eq.s32.totalorder %s9, 1
    %p94 = por %p92, %p93
    %p95 = scmp.ne.s32.totalorder %s87, %s90
    %p96 = scmp.eq.s32.totalorder %s9, 0
    %p97 = por %p95, %p96
    %p98 = scmp.ne.s32.totalorder %s87, %s90
    %p99 = scmp.eq.s32.totalorder %s14, 1
    %p100 = por %p98, %p99
    %p101 = scmp.ne.s32.totalorder %s90, %s91
    %p102 = scmp.eq.s32.totalorder %s14, 0
    %p103 = por %p101, %p102
    %p104 = scmp.ne.s32.totalorder %s90, %s91
    %p105 = scmp.eq.s32.totalorder %s15, 1
    %p106 = por %p104, %p105
    %p108 = scmp.ne.s32.totalorder %s91, %s107
    %p109 = scmp.eq.s32.totalorder %s15, 0
    %p110 = por %p108, %p109
    %p111 = scmp.le.s32.totalorder 1, %s9
    %p112 = scmp.lt.s32.totalorder %s9, 3
    %p113 = pnand %p111, %p112
    %p114 = pneg %p113
    // Predicated region
    $region9: #{bottleneck_forward.3} parent=5 // pred_check
      _
    $region10: #{bottleneck_forward.3} parent=5 // pred_check_branch
      %116 = sbr.rel (%p113) target = $region12
    $region11: #{bottleneck_forward.3} parent=5 // pred_region
      %s117 = ssub.s32 %s9, 1
      // Predicated region
      $region13: #{bottleneck_forward.3} parent=11 // pred_check
        %p118 = pneg %p56
      $region14: #{bottleneck_forward.3} parent=11 // pred_check_branch
        %120 = sbr.rel (%p118) target = $region16
      $region15: #{bottleneck_forward.3} parent=11 // pred_region
        _
      $region16: #{bottleneck_forward.3} parent=11 // pred_fallthru
        _
      // Predicated region
      $region17: #{bottleneck_forward.3} parent=11 // pred_check
        %p121 = pneg %p77
      $region18: #{bottleneck_forward.3} parent=11 // pred_check_branch
        %123 = sbr.rel (%p121) target = $region20
      $region19: #{bottleneck_forward.3} parent=11 // pred_region
        _
      $region20: #{bottleneck_forward.3} parent=11 // pred_fallthru
        _
    $region12: #{bottleneck_forward.3} parent=5 // pred_fallthru
      _
    %p124 = scmp.lt.s32.totalorder %s9, 2
    // Predicated region
    $region21: #{bottleneck_forward.3} parent=5 // pred_check
      %p125 = pneg %p124
    $region22: #{bottleneck_forward.3} parent=5 // pred_check_branch
      %127 = sbr.rel (%p125) target = $region24
    $region23: #{bottleneck_forward.3} parent=5 // pred_region
      // Predicated region
      $region25: #{bottleneck_forward.3} parent=23 // pred_check
        %p128 = pneg %p29
      $region26: #{bottleneck_forward.3} parent=23 // pred_check_branch
        %130 = sbr.rel (%p128) target = $region28
      $region27: #{bottleneck_forward.3} parent=23 // pred_region
        %s131 = smul.u32 32, %s9
        %p132 = scmp.lt.s32.totalorder %s131, 63
        %s133 = scalar_select %p132, %s131, 63
        %s134 = smul.addr %s133, 4
        %s135 = scalar_lea.vmem %s0, %s134
        %s136 = smul.u32 32, %s9
      $region28: #{bottleneck_forward.3} parent=23 // pred_fallthru
        _
    $region24: #{bottleneck_forward.3} parent=5 // pred_fallthru
      _
    %p137 = scmp.le.s32.totalorder 1, %s9
    %p138 = scmp.lt.s32.totalorder %s9, 3
    %p139 = pnand %p137, %p138
    %p140 = pneg %p139
    // Predicated region
    $region29: #{bottleneck_forward.3} parent=5 // pred_check
      _
    $region30: #{bottleneck_forward.3} parent=5 // pred_check_branch
      %142 = sbr.rel (%p139) target = $region32
    $region31: #{bottleneck_forward.3} parent=5 // pred_region
      %s143 = ssub.s32 %s9, 1
      %s144 = smul.u32 32, %s14
      %p145 = scmp.lt.s32.totalorder %s144, 63
      %s146 = scalar_select %p145, %s144, 63
      %s147 = smul.addr %s146, 4
      %s148 = scalar_lea.vmem %s0, %s147
      %p149 = pneg %p35
      %p150 = pneg %p32
      %p151 = pneg %p56
      %p152 = pneg %p53
      %p153 = pneg %p77
      %p154 = pneg %p74
      %p155 = pneg %p103
      %p156 = pneg %p100
      %s157 = smul.u32 32, %s14
      %p158 = scmp.lt.s32.totalorder %s157, 63
      %s159 = scalar_select %p158, %s157, 63
      %s160 = smul.addr %s159, 4
      %s161 = scalar_lea.vmem %s3, %s160
      %s162 = smul.u32 32, %s14
      %p163 = scmp.lt.s32.totalorder %s162, 63
      %s164 = scalar_select %p163, %s162, 63
      %s165 = smul.addr %s164, 4
      %s166 = scalar_lea.vmem %s0, %s165
      %s167 = smul.u32 32, %s14
      %s168 = smul.u32 32, %s14
      %p169 = scmp.lt.s32.totalorder %s168, 63
      %s170 = scalar_select %p169, %s168, 63
      %s171 = smul.addr %s170, 4
      %s172 = scalar_lea.vmem %s3, %s171
      %s173 = smul.u32 32, %s14
      %v175 = vld [vmem:[%s166] sm:$0xf]
      %v176 = vld [vmem:[%s166 + $0x4] sm:$0xf]
      %v177 = vld [vmem:[%s166 + $0x8] sm:$0xf]
      %v178 = vld [vmem:[%s166 + $0xc] sm:$0xf]
      %v179 = vld [vmem:[%s166 + $0x10] sm:$0xf]
      %v180 = vld [vmem:[%s166 + $0x14] sm:$0xf]
      %v181 = vld [vmem:[%s166 + $0x18] sm:$0xf]
      %v182 = vld [vmem:[%s166 + $0x1c] sm:$0xf]
      %v183 = vld [vmem:[%s166 + $0x20] sm:$0xf]
      %v184 = vld [vmem:[%s166 + $0x24] sm:$0xf]
      %v185 = vld [vmem:[%s166 + $0x28] sm:$0xf]
      %v186 = vld [vmem:[%s166 + $0x2c] sm:$0xf]
      %v187 = vld [vmem:[%s166 + $0x30] sm:$0xf]
      %v188 = vld [vmem:[%s166 + $0x34] sm:$0xf]
      %v189 = vld [vmem:[%s166 + $0x38] sm:$0xf]
      %v190 = vld [vmem:[%s166 + $0x3c] sm:$0xf]
      %v191 = vld [vmem:[%s166 + $0x40] sm:$0xf]
      %v192 = vld [vmem:[%s166 + $0x44] sm:$0xf]
      %v193 = vld [vmem:[%s166 + $0x48] sm:$0xf]
      %v194 = vld [vmem:[%s166 + $0x4c] sm:$0xf]
      %v195 = vld [vmem:[%s166 + $0x50] sm:$0xf]
      %v196 = vld [vmem:[%s166 + $0x54] sm:$0xf]
      %v197 = vld [vmem:[%s166 + $0x58] sm:$0xf]
      %v198 = vld [vmem:[%s166 + $0x5c] sm:$0xf]
      %v199 = vld [vmem:[%s166 + $0x60] sm:$0xf]
      %v200 = vld [vmem:[%s166 + $0x64] sm:$0xf]
      %v201 = vld [vmem:[%s166 + $0x68] sm:$0xf]
      %v202 = vld [vmem:[%s166 + $0x6c] sm:$0xf]
      %v203 = vld [vmem:[%s166 + $0x70] sm:$0xf]
      %v204 = vld [vmem:[%s166 + $0x74] sm:$0xf]
      %v205 = vld [vmem:[%s166 + $0x78] sm:$0xf]
      %v206 = vld [vmem:[%s166 + $0x7c] sm:$0xf]
      %v207 = vld [vmem:[%s1] sm:$0xf]
      %v208 = vld [vmem:[%s1 + $0x4] sm:$0xf]
      %v209 = vld [vmem:[%s1 + $0x8] sm:$0xf]
      %v210 = vld [vmem:[%s1 + $0xc] sm:$0xf]
      %v211 = vld [vmem:[%s1 + $0x10] sm:$0xf]
      %v212 = vld [vmem:[%s1 + $0x14] sm:$0xf]
      %v213 = vld [vmem:[%s1 + $0x18] sm:$0xf]
      %v214 = vld [vmem:[%s1 + $0x1c] sm:$0xf]
      %v215 = vld [vmem:[%s1 + $0x20] sm:$0xf]
      %v216 = vld [vmem:[%s1 + $0x24] sm:$0xf]
      %v217 = vld [vmem:[%s1 + $0x28] sm:$0xf]
      %v218 = vld [vmem:[%s1 + $0x2c] sm:$0xf]
      %v219 = vld [vmem:[%s1 + $0x30] sm:$0xf]
      %v220 = vld [vmem:[%s1 + $0x34] sm:$0xf]
      %v221 = vld [vmem:[%s1 + $0x38] sm:$0xf]
      %v222 = vld [vmem:[%s1 + $0x3c] sm:$0xf]
      %v223 = vld [vmem:[%s2] sm:$0x1]
      %v225 = vlaneseq
      %v226 = vshrl.u32 %v225, 7
      %v227 = vsub.s32 0, %v226
      %v228 = vrot.slane %v223, %v227
      %v262 = vunpack.c.l.b16 %v175
      %v263 = vunpack.c.l.b16 %v176
      %v264 = vunpack.c.l.b16 %v177
      %v265 = vunpack.c.l.b16 %v178
      %v266 = vunpack.c.l.b16 %v179
      %v267 = vunpack.c.l.b16 %v180
      %v268 = vunpack.c.l.b16 %v181
      %v269 = vunpack.c.l.b16 %v182
      %v270 = vunpack.c.l.b16 %v183
      %v271 = vunpack.c.l.b16 %v184
      %v272 = vunpack.c.l.b16 %v185
      %v273 = vunpack.c.l.b16 %v186
      %v274 = vunpack.c.l.b16 %v187
      %v275 = vunpack.c.l.b16 %v188
      %v276 = vunpack.c.l.b16 %v189
      %v277 = vunpack.c.l.b16 %v190
      %v278 = vunpack.c.l.b16 %v191
      %v279 = vunpack.c.l.b16 %v192
      %v280 = vunpack.c.l.b16 %v193
      %v281 = vunpack.c.l.b16 %v194
      %v282 = vunpack.c.l.b16 %v195
      %v283 = vunpack.c.l.b16 %v196
      %v284 = vunpack.c.l.b16 %v197
      %v285 = vunpack.c.l.b16 %v198
      %v286 = vunpack.c.l.b16 %v199
      %v287 = vunpack.c.l.b16 %v200
      %v288 = vunpack.c.l.b16 %v201
      %v289 = vunpack.c.l.b16 %v202
      %v290 = vunpack.c.l.b16 %v203
      %v291 = vunpack.c.l.b16 %v204
      %v292 = vunpack.c.l.b16 %v205
      %v293 = vunpack.c.l.b16 %v206
      %v294 = vpack.c.b16 %v263, %v262
      %v295 = vpack.c.b16 %v265, %v264
      %v296 = vpack.c.b16 %v267, %v266
      %v297 = vpack.c.b16 %v269, %v268
      %v298 = vpack.c.b16 %v271, %v270
      %v299 = vpack.c.b16 %v273, %v272
      %v300 = vpack.c.b16 %v275, %v274
      %v301 = vpack.c.b16 %v277, %v276
      %v302 = vpack.c.b16 %v279, %v278
      %v303 = vpack.c.b16 %v281, %v280
      %v304 = vpack.c.b16 %v283, %v282
      %v305 = vpack.c.b16 %v285, %v284
      %v306 = vpack.c.b16 %v287, %v286
      %v307 = vpack.c.b16 %v289, %v288
      %v308 = vpack.c.b16 %v291, %v290
      %v309 = vpack.c.b16 %v293, %v292
      %v342 = vunpack.c.l.b16 %v207
      %v343 = vunpack.c.l.b16 %v208
      %v344 = vunpack.c.l.b16 %v209
      %v345 = vunpack.c.l.b16 %v210
      %v346 = vunpack.c.l.b16 %v211
      %v347 = vunpack.c.l.b16 %v212
      %v348 = vunpack.c.l.b16 %v213
      %v349 = vunpack.c.l.b16 %v214
      %v350 = vunpack.c.l.b16 %v215
      %v351 = vunpack.c.l.b16 %v216
      %v352 = vunpack.c.l.b16 %v217
      %v353 = vunpack.c.l.b16 %v218
      %v354 = vunpack.c.l.b16 %v219
      %v355 = vunpack.c.l.b16 %v220
      %v356 = vunpack.c.l.b16 %v221
      %v357 = vunpack.c.l.b16 %v222
      %v358 = vpack.c.b16 %v343, %v342
      %v359 = vpack.c.b16 %v345, %v344
      %v360 = vpack.c.b16 %v347, %v346
      %v361 = vpack.c.b16 %v349, %v348
      %v362 = vpack.c.b16 %v351, %v350
      %v363 = vpack.c.b16 %v353, %v352
      %v364 = vpack.c.b16 %v355, %v354
      %v365 = vpack.c.b16 %v357, %v356
      %374 = vmatprep.subr.bf16.mxu0 0
      %375 = vmatpush1.bf16.msra.mxu0 %v358
      %376 = vmatprep.subr.bf16.mxu0 0
      %377 = vmatpush1.bf16.msra.mxu0 %v359
      %378 = vmatprep.subr.bf16.mxu0 0
      %379 = vmatpush1.bf16.msra.mxu0 %v360
      %380 = vmatprep.subr.bf16.mxu0 0
      %381 = vmatpush1.bf16.msra.mxu0 %v361
      %382 = vmatprep.subr.bf16.mxu0 0
      %383 = vmatpush1.bf16.msra.mxu0 %v362
      %384 = vmatprep.subr.bf16.mxu0 0
      %385 = vmatpush1.bf16.msra.mxu0 %v363
      %386 = vmatprep.subr.bf16.mxu0 0
      %387 = vmatpush1.bf16.msra.mxu0 %v364
      %388 = vmatprep.subr.bf16.mxu0 0
      %389 = vmatpush1.bf16.msra.mxu0 %v365
      %390 = vmatprep.subr.bf16.mxu0 0
      %391 = vmatpush1.bf16.msra.mxu0 0
      %392 = vmatprep.subr.bf16.mxu0 0
      %393 = vmatpush1.bf16.msra.mxu0 0
      %394 = vmatprep.subr.bf16.mxu0 0
      %395 = vmatpush1.bf16.msra.mxu0 0
      %396 = vmatprep.subr.bf16.mxu0 0
      %397 = vmatpush1.bf16.msra.mxu0 0
      %398 = vmatprep.subr.bf16.mxu0 0
      %399 = vmatpush1.bf16.msra.mxu0 0
      %400 = vmatprep.subr.bf16.mxu0 0
      %401 = vmatpush1.bf16.msra.mxu0 0
      %402 = vmatprep.subr.bf16.mxu0 0
      %403 = vmatpush1.bf16.msra.mxu0 0
      %404 = vmatprep.subr.bf16.mxu0 0
      %405 = vmatpush1.bf16.msra.mxu0 0
      %406 = vmatprep.mubr.bf16.mxu0 0
      %407 = vmatmul.mubr.bf16.gmra.mrb[0].mxu0 %v294
      %v408 = vpop.f32.mrb[0].mxu0
      %v409 = vadd.f32 %v228, %v408
      %v410 = vpop.f32.mrb[0].mxu0
      %v411 = vpop.f32.mrb[0].mxu0
      %v412 = vadd.f32 %v228, %v411
      %v413 = vpop.f32.mrb[0].mxu0
      %414 = vmatprep.mubr.bf16.mxu0 0
      %415 = vmatmul.mubr.bf16.gmra.mrb[0].mxu0 %v295
      %v416 = vpop.f32.mrb[0].mxu0
      %v417 = vadd.f32 %v228, %v416
      %v418 = vpop.f32.mrb[0].mxu0
      %v419 = vpop.f32.mrb[0].mxu0
      %v420 = vadd.f32 %v228, %v419
      %v421 = vpop.f32.mrb[0].mxu0
      %422 = vmatprep.mubr.bf16.mxu0 0
      %423 = vmatmul.mubr.bf16.gmra.mrb[0].mxu0 %v296
      %v424 = vpop.f32.mrb[0].mxu0
      %v425 = vadd.f32 %v228, %v424
      %v426 = vpop.f32.mrb[0].mxu0
      %v427 = vpop.f32.mrb[0].mxu0
      %v428 = vadd.f32 %v228, %v427
      %v429 = vpop.f32.mrb[0].mxu0
      %430 = vmatprep.mubr.bf16.mxu0 0
      %431 = vmatmul.mubr.bf16.gmra.mrb[0].mxu0 %v297
      %v432 = vpop.f32.mrb[0].mxu0
      %v433 = vadd.f32 %v228, %v432
      %v434 = vpop.f32.mrb[0].mxu0
      %v435 = vpop.f32.mrb[0].mxu0
      %v436 = vadd.f32 %v228, %v435
      %v437 = vpop.f32.mrb[0].mxu0
      %438 = vmatprep.mubr.bf16.mxu0 0
      %439 = vmatmul.mubr.bf16.gmra.mrb[0].mxu0 %v298
      %v440 = vpop.f32.mrb[0].mxu0
      %v441 = vadd.f32 %v228, %v440
      %v442 = vpop.f32.mrb[0].mxu0
      %v443 = vpop.f32.mrb[0].mxu0
      %v444 = vadd.f32 %v228, %v443
      %v445 = vpop.f32.mrb[0].mxu0
      %446 = vmatprep.mubr.bf16.mxu0 0
      %447 = vmatmul.mubr.bf16.gmra.mrb[0].mxu0 %v299
      %v448 = vpop.f32.mrb[0].mxu0
      %v449 = vadd.f32 %v228, %v448
      %v450 = vpop.f32.mrb[0].mxu0
      %v451 = vpop.f32.mrb[0].mxu0
      %v452 = vadd.f32 %v228, %v451
      %v453 = vpop.f32.mrb[0].mxu0
      %454 = vmatprep.mubr.bf16.mxu0 0
      %455 = vmatmul.mubr.bf16.gmra.mrb[0].mxu0 %v300
      %v456 = vpop.f32.mrb[0].mxu0
      %v457 = vadd.f32 %v228, %v456
      %v458 = vpop.f32.mrb[0].mxu0
      %v459 = vpop.f32.mrb[0].mxu0
      %v460 = vadd.f32 %v228, %v459
      %v461 = vpop.f32.mrb[0].mxu0
      %462 = vmatprep.mubr.bf16.mxu0 0
      %463 = vmatmul.mubr.bf16.gmra.mrb[0].mxu0 %v301
      %v464 = vpop.f32.mrb[0].mxu0
      %v465 = vadd.f32 %v228, %v464
      %v466 = vpop.f32.mrb[0].mxu0
      %v467 = vpop.f32.mrb[0].mxu0
      %v468 = vadd.f32 %v228, %v467
      %v469 = vpop.f32.mrb[0].mxu0
      %470 = vmatprep.mubr.bf16.mxu0 0
      %471 = vmatmul.mubr.bf16.gmra.mrb[0].mxu0 %v302
      %v472 = vpop.f32.mrb[0].mxu0
      %v473 = vadd.f32 %v228, %v472
      %v474 = vpop.f32.mrb[0].mxu0
      %v475 = vpop.f32.mrb[0].mxu0
      %v476 = vadd.f32 %v228, %v475
      %v477 = vpop.f32.mrb[0].mxu0
      %478 = vmatprep.mubr.bf16.mxu0 0
      %479 = vmatmul.mubr.bf16.gmra.mrb[0].mxu0 %v303
      %v480 = vpop.f32.mrb[0].mxu0
      %v481 = vadd.f32 %v228, %v480
      %v482 = vpop.f32.mrb[0].mxu0
      %v483 = vpop.f32.mrb[0].mxu0
      %v484 = vadd.f32 %v228, %v483
      %v485 = vpop.f32.mrb[0].mxu0
      %486 = vmatprep.mubr.bf16.mxu0 0
      %487 = vmatmul.mubr.bf16.gmra.mrb[0].mxu0 %v304
      %v488 = vpop.f32.mrb[0].mxu0
      %v489 = vadd.f32 %v228, %v488
      %v490 = vpop.f32.mrb[0].mxu0
      %v491 = vpop.f32.mrb[0].mxu0
      %v492 = vadd.f32 %v228, %v491
      %v493 = vpop.f32.mrb[0].mxu0
      %494 = vmatprep.mubr.bf16.mxu0 0
      %495 = vmatmul.mubr.bf16.gmra.mrb[0].mxu0 %v305
      %v496 = vpop.f32.mrb[0].mxu0
      %v497 = vadd.f32 %v228, %v496
      %v498 = vpop.f32.mrb[0].mxu0
      %v499 = vpop.f32.mrb[0].mxu0
      %v500 = vadd.f32 %v228, %v499
      %v501 = vpop.f32.mrb[0].mxu0
      %502 = vmatprep.mubr.bf16.mxu0 0
      %503 = vmatmul.mubr.bf16.gmra.mrb[0].mxu0 %v306
      %v504 = vpop.f32.mrb[0].mxu0
      %v505 = vadd.f32 %v228, %v504
      %v506 = vpop.f32.mrb[0].mxu0
      %v507 = vpop.f32.mrb[0].mxu0
      %v508 = vadd.f32 %v228, %v507
      %v509 = vpop.f32.mrb[0].mxu0
      %510 = vmatprep.mubr.bf16.mxu0 0
      %511 = vmatmul.mubr.bf16.gmra.mrb[0].mxu0 %v307
      %v512 = vpop.f32.mrb[0].mxu0
      %v513 = vadd.f32 %v228, %v512
      %v514 = vpop.f32.mrb[0].mxu0
      %v515 = vpop.f32.mrb[0].mxu0
      %v516 = vadd.f32 %v228, %v515
      %v517 = vpop.f32.mrb[0].mxu0
      %518 = vmatprep.mubr.bf16.mxu0 0
      %519 = vmatmul.mubr.bf16.gmra.mrb[0].mxu0 %v308
      %v520 = vpop.f32.mrb[0].mxu0
      %v521 = vadd.f32 %v228, %v520
      %v522 = vpop.f32.mrb[0].mxu0
      %v523 = vpop.f32.mrb[0].mxu0
      %v524 = vadd.f32 %v228, %v523
      %v525 = vpop.f32.mrb[0].mxu0
      %526 = vmatprep.mubr.bf16.mxu0 0
      %527 = vmatmul.mubr.bf16.gmra.mrb[0].mxu0 %v309
      %v528 = vpop.f32.mrb[0].mxu0
      %v529 = vadd.f32 %v228, %v528
      %v530 = vpop.f32.mrb[0].mxu0
      %v531 = vpop.f32.mrb[0].mxu0
      %v532 = vadd.f32 %v228, %v531
      %v533 = vpop.f32.mrb[0].mxu0
      %534 = vdwg.mxu0
      %v535 = vmax.f32 %v409, 0.0
      %v536 = vmax.f32 %v412, 0.0
      %v537 = vmax.f32 %v417, 0.0
      %v538 = vmax.f32 %v420, 0.0
      %v539 = vmax.f32 %v425, 0.0
      %v540 = vmax.f32 %v428, 0.0
      %v541 = vmax.f32 %v433, 0.0
      %v542 = vmax.f32 %v436, 0.0
      %v543 = vmax.f32 %v441, 0.0
      %v544 = vmax.f32 %v444, 0.0
      %v545 = vmax.f32 %v449, 0.0
      %v546 = vmax.f32 %v452, 0.0
      %v547 = vmax.f32 %v457, 0.0
      %v548 = vmax.f32 %v460, 0.0
      %v549 = vmax.f32 %v465, 0.0
      %v550 = vmax.f32 %v468, 0.0
      %v551 = vmax.f32 %v473, 0.0
      %v552 = vmax.f32 %v476, 0.0
      %v553 = vmax.f32 %v481, 0.0
      %v554 = vmax.f32 %v484, 0.0
      %v555 = vmax.f32 %v489, 0.0
      %v556 = vmax.f32 %v492, 0.0
      %v557 = vmax.f32 %v497, 0.0
      %v558 = vmax.f32 %v500, 0.0
      %v559 = vmax.f32 %v505, 0.0
      %v560 = vmax.f32 %v508, 0.0
      %v561 = vmax.f32 %v513, 0.0
      %v562 = vmax.f32 %v516, 0.0
      %v563 = vmax.f32 %v521, 0.0
      %v564 = vmax.f32 %v524, 0.0
      %v565 = vmax.f32 %v529, 0.0
      %v566 = vmax.f32 %v532, 0.0
      %v567 = vpack.c.bf16 %v536, %v535
      %v568 = vpack.c.bf16 %v538, %v537
      %v569 = vpack.c.bf16 %v540, %v539
      %v570 = vpack.c.bf16 %v542, %v541
      %v571 = vpack.c.bf16 %v544, %v543
      %v572 = vpack.c.bf16 %v546, %v545
      %v573 = vpack.c.bf16 %v548, %v547
      %v574 = vpack.c.bf16 %v550, %v549
      %v575 = vpack.c.bf16 %v552, %v551
      %v576 = vpack.c.bf16 %v554, %v553
      %v577 = vpack.c.bf16 %v556, %v555
      %v578 = vpack.c.bf16 %v558, %v557
      %v579 = vpack.c.bf16 %v560, %v559
      %v580 = vpack.c.bf16 %v562, %v561
      %v581 = vpack.c.bf16 %v564, %v563
      %v582 = vpack.c.bf16 %v566, %v565
      %v599 = vunpack.c.l.b16 %v567
      %v600 = vunpack.c.h.b16 %v567
      %v601 = vunpack.c.l.b16 %v568
      %v602 = vunpack.c.h.b16 %v568
      %v603 = vunpack.c.l.b16 %v569
      %v604 = vunpack.c.h.b16 %v569
      %v605 = vunpack.c.l.b16 %v570
      %v606 = vunpack.c.h.b16 %v570
      %v607 = vunpack.c.l.b16 %v571
      %v608 = vunpack.c.h.b16 %v571
      %v609 = vunpack.c.l.b16 %v572
      %v610 = vunpack.c.h.b16 %v572
      %v611 = vunpack.c.l.b16 %v573
      %v612 = vunpack.c.h.b16 %v573
      %v613 = vunpack.c.l.b16 %v574
      %v614 = vunpack.c.h.b16 %v574
      %v615 = vunpack.c.l.b16 %v575
      %v616 = vunpack.c.h.b16 %v575
      %v617 = vunpack.c.l.b16 %v576
      %v618 = vunpack.c.h.b16 %v576
      %v619 = vunpack.c.l.b16 %v577
      %v620 = vunpack.c.h.b16 %v577
      %v621 = vunpack.c.l.b16 %v578
      %v622 = vunpack.c.h.b16 %v578
      %v623 = vunpack.c.l.b16 %v579
      %v624 = vunpack.c.h.b16 %v579
      %v625 = vunpack.c.l.b16 %v580
      %v626 = vunpack.c.h.b16 %v580
      %v627 = vunpack.c.l.b16 %v581
      %v628 = vunpack.c.h.b16 %v581
      %v629 = vunpack.c.l.b16 %v582
      %v630 = vunpack.c.h.b16 %v582
      %v631 = vpack.c.b16 %v599, %v599
      %v632 = vpack.c.b16 %v600, %v600
      %v633 = vpack.c.b16 %v601, %v601
      %v634 = vpack.c.b16 %v602, %v602
      %v635 = vpack.c.b16 %v603, %v603
      %v636 = vpack.c.b16 %v604, %v604
      %v637 = vpack.c.b16 %v605, %v605
      %v638 = vpack.c.b16 %v606, %v606
      %v639 = vpack.c.b16 %v607, %v607
      %v640 = vpack.c.b16 %v608, %v608
      %v641 = vpack.c.b16 %v609, %v609
      %v642 = vpack.c.b16 %v610, %v610
      %v643 = vpack.c.b16 %v611, %v611
      %v644 = vpack.c.b16 %v612, %v612
      %v645 = vpack.c.b16 %v613, %v613
      %v646 = vpack.c.b16 %v614, %v614
      %v647 = vpack.c.b16 %v615, %v615
      %v648 = vpack.c.b16 %v616, %v616
      %v649 = vpack.c.b16 %v617, %v617
      %v650 = vpack.c.b16 %v618, %v618
      %v651 = vpack.c.b16 %v619, %v619
      %v652 = vpack.c.b16 %v620, %v620
      %v653 = vpack.c.b16 %v621, %v621
      %v654 = vpack.c.b16 %v622, %v622
      %v655 = vpack.c.b16 %v623, %v623
      %v656 = vpack.c.b16 %v624, %v624
      %v657 = vpack.c.b16 %v625, %v625
      %v658 = vpack.c.b16 %v626, %v626
      %v659 = vpack.c.b16 %v627, %v627
      %v660 = vpack.c.b16 %v628, %v628
      %v661 = vpack.c.b16 %v629, %v629
      %v662 = vpack.c.b16 %v630, %v630
      %695 = vst [vmem:[%s172] sm:$0xf] %v631
      %696 = vst [vmem:[%s172 + $0x4] sm:$0xf] %v632
      %697 = vst [vmem:[%s172 + $0x8] sm:$0xf] %v633
      %698 = vst [vmem:[%s172 + $0xc] sm:$0xf] %v634
      %699 = vst [vmem:[%s172 + $0x10] sm:$0xf] %v635
      %700 = vst [vmem:[%s172 + $0x14] sm:$0xf] %v636
      %701 = vst [vmem:[%s172 + $0x18] sm:$0xf] %v637
      %702 = vst [vmem:[%s172 + $0x1c] sm:$0xf] %v638
      %703 = vst [vmem:[%s172 + $0x20] sm:$0xf] %v639
      %704 = vst [vmem:[%s172 + $0x24] sm:$0xf] %v640
      %705 = vst [vmem:[%s172 + $0x28] sm:$0xf] %v641
      %706 = vst [vmem:[%s172 + $0x2c] sm:$0xf] %v642
      %707 = vst [vmem:[%s172 + $0x30] sm:$0xf] %v643
      %708 = vst [vmem:[%s172 + $0x34] sm:$0xf] %v644
      %709 = vst [vmem:[%s172 + $0x38] sm:$0xf] %v645
      %710 = vst [vmem:[%s172 + $0x3c] sm:$0xf] %v646
      %711 = vst [vmem:[%s172 + $0x40] sm:$0xf] %v647
      %712 = vst [vmem:[%s172 + $0x44] sm:$0xf] %v648
      %713 = vst [vmem:[%s172 + $0x48] sm:$0xf] %v649
      %714 = vst [vmem:[%s172 + $0x4c] sm:$0xf] %v650
      %715 = vst [vmem:[%s172 + $0x50] sm:$0xf] %v651
      %716 = vst [vmem:[%s172 + $0x54] sm:$0xf] %v652
      %717 = vst [vmem:[%s172 + $0x58] sm:$0xf] %v653
      %718 = vst [vmem:[%s172 + $0x5c] sm:$0xf] %v654
      %719 = vst [vmem:[%s172 + $0x60] sm:$0xf] %v655
      %720 = vst [vmem:[%s172 + $0x64] sm:$0xf] %v656
      %721 = vst [vmem:[%s172 + $0x68] sm:$0xf] %v657
      %722 = vst [vmem:[%s172 + $0x6c] sm:$0xf] %v658
      %723 = vst [vmem:[%s172 + $0x70] sm:$0xf] %v659
      %724 = vst [vmem:[%s172 + $0x74] sm:$0xf] %v660
      %725 = vst [vmem:[%s172 + $0x78] sm:$0xf] %v661
      %726 = vst [vmem:[%s172 + $0x7c] sm:$0xf] %v662
      %s727 = smul.u32 32, %s14
      %p728 = scmp.lt.s32.totalorder %s727, 63
      %s729 = scalar_select %p728, %s727, 63
      %s730 = smul.addr %s729, 4
      %s731 = scalar_lea.vmem %s3, %s730
      // Predicated region
      $region33: #{bottleneck_forward.3} parent=31 // pred_check
        %p732 = pneg %p100
      $region34: #{bottleneck_forward.3} parent=31 // pred_check_branch
        %734 = sbr.rel (%p732) target = $region36
      $region35: #{bottleneck_forward.3} parent=31 // pred_region
        %s735 = smul.u32 32, %s14
      $region36: #{bottleneck_forward.3} parent=31 // pred_fallthru
        _
    $region32: #{bottleneck_forward.3} parent=5 // pred_fallthru
      _
    %p736 = scmp.le.s32.totalorder 2, %s9
    // Predicated region
    $region37: #{bottleneck_forward.3} parent=5 // pred_check
      %p737 = pneg %p736
    $region38: #{bottleneck_forward.3} parent=5 // pred_check_branch
      %739 = sbr.rel (%p737) target = $region40
    $region39: #{bottleneck_forward.3} parent=5 // pred_region
      %s740 = ssub.s32 %s9, 2
      // Predicated region
      $region41: #{bottleneck_forward.3} parent=39 // pred_check
        %p741 = pneg %p106
      $region42: #{bottleneck_forward.3} parent=39 // pred_check_branch
        %743 = sbr.rel (%p741) target = $region44
      $region43: #{bottleneck_forward.3} parent=39 // pred_region
        %s744 = smul.u32 32, %s15
        %p745 = scmp.lt.s32.totalorder %s744, 63
        %s746 = scalar_select %p745, %s744, 63
        %s747 = smul.addr %s746, 4
        %s748 = scalar_lea.vmem %s3, %s747
      $region44: #{bottleneck_forward.3} parent=39 // pred_fallthru
        _
    $region40: #{bottleneck_forward.3} parent=5 // pred_fallthru
      _
  $region6: #{bottleneck_forward.3} parent=0 // loop_footer
    %s13 = sadd.s32 1, %s9
  $region7: #{bottleneck_forward.3} parent=0 // loop_footer_branch
    %8 = sbr.rel target = $region3
  $region8: #{bottleneck_forward.3} parent=0 // loop_exit
    _

// kernel: bottleneck_forward.4
$region0: #{bottleneck_forward.4}
  #allocation0 [shape = 'u32[]', space=smem, size = 0x4, offset = 0x4, fixed_abs, tag = 'smem constant byte address 0x4 - core index']
  #allocation1 [shape = 'u32[144,128]{1,0:T(1,128)}', space=vmem, size = 0x12000, scoped, tag = 'internal scratch']
  %s0 = inlined_call_operand.vmem [shape: bf16[2,4,9,9,128], index: 0, kind: input, shape index: {}]
  %s1 = inlined_call_operand.vmem [shape: bf16[9,128,128], index: 1, kind: input, shape index: {}]
  %s2 = inlined_call_operand.vmem [shape: f32[1,128], index: 2, kind: input, shape index: {}]
  %s3 = inlined_call_operand.vmem [shape: bf16[2,64,128], index: 3, kind: output, shape index: {}]
  %s4 = sld [smem:[#allocation0]]
  $region45: #{bottleneck_forward.4} parent=0
    _
  %s6 = ssub.s32 1, %s4
  %s7 = scalar_select 0, %s6, %s4
  loop: start=0, step=1, limit=4
  $region2: #{bottleneck_forward.4} parent=0 // loop_pre_header
    _
  $region3: #{bottleneck_forward.4} parent=0 // loop_header
    %s9 = sphi 0, %s13
    %p10 = scmp.ge.s32.totalorder %s9, 4
    %s19 = sphi 0, %s21
    %s22 = sphi 0, %s19
    %s23 = sphi 0, %s22
    %s39 = sphi 0, %s23
    %s43 = sphi 0, %s43
    %s45 = sphi 0, %s43
    %s46 = sphi 0, %s45
    %s60 = sphi 0, %s46
    %s64 = sphi 0, %s64
    %s66 = sphi 0, %s64
    %s67 = sphi 0, %s66
    %s81 = sphi 0, %s67
    %s87 = sphi 0, %s89
    %s90 = sphi 0, %s87
    %s91 = sphi 0, %s90
    %s107 = sphi 0, %s91
  $region4: #{bottleneck_forward.4} parent=0 // loop_header_branch
    %12 = sbr.rel (%p10) target = $region8
  $region5: #{bottleneck_forward.4} parent=0 // loop_body
    %s14 = ssub.s32 %s9, 1
    %s15 = ssub.s32 %s9, 2
    %s16 = sadd.s32 %s9, 1
    %s17 = ssub.s32 %s9, %s16
    %p18 = scmp.eq.s32.totalorder %s17, 0
    %s20 = sadd.s32 %s19, 1
    %s21 = scalar_select %p18, %s19, %s20
    %p24 = pneg %p18
    %p25 = scmp.eq.s32.totalorder %s9, 1
    %p26 = por %p24, %p25
    %p27 = scmp.ne.s32.totalorder %s19, %s22
    %p28 = scmp.eq.s32.totalorder %s9, 0
    %p29 = por %p27, %p28
    %p30 = scmp.ne.s32.totalorder %s19, %s22
    %p31 = scmp.eq.s32.totalorder %s14, 1
    %p32 = por %p30, %p31
    %p33 = scmp.ne.s32.totalorder %s22, %s23
    %p34 = scmp.eq.s32.totalorder %s14, 0
    %p35 = por %p33, %p34
    %p36 = scmp.ne.s32.totalorder %s22, %s23
    %p37 = scmp.eq.s32.totalorder %s15, 1
    %p38 = por %p36, %p37
    %p40 = scmp.ne.s32.totalorder %s23, %s39
    %p41 = scmp.eq.s32.totalorder %s15, 0
    %p42 = por %p40, %p41
    %s44 = sadd.s32 %s43, 1
    %p47 = scmp.eq.s32.totalorder %s9, 1
    %p48 = scmp.ne.s32.totalorder %s43, %s45
    %p49 = scmp.eq.s32.totalorder %s9, 0
    %p50 = por %p48, %p49
    %p51 = scmp.ne.s32.totalorder %s43, %s45
    %p52 = scmp.eq.s32.totalorder %s14, 1
    %p53 = por %p51, %p52
    %p54 = scmp.ne.s32.totalorder %s45, %s46
    %p55 = scmp.eq.s32.totalorder %s14, 0
    %p56 = por %p54, %p55
    %p57 = scmp.ne.s32.totalorder %s45, %s46
    %p58 = scmp.eq.s32.totalorder %s15, 1
    %p59 = por %p57, %p58
    %p61 = scmp.ne.s32.totalorder %s46, %s60
    %p62 = scmp.eq.s32.totalorder %s15, 0
    %p63 = por %p61, %p62
    %s65 = sadd.s32 %s64, 1
    %p68 = scmp.eq.s32.totalorder %s9, 1
    %p69 = scmp.ne.s32.totalorder %s64, %s66
    %p70 = scmp.eq.s32.totalorder %s9, 0
    %p71 = por %p69, %p70
    %p72 = scmp.ne.s32.totalorder %s64, %s66
    %p73 = scmp.eq.s32.totalorder %s14, 1
    %p74 = por %p72, %p73
    %p75 = scmp.ne.s32.totalorder %s66, %s67
    %p76 = scmp.eq.s32.totalorder %s14, 0
    %p77 = por %p75, %p76
    %p78 = scmp.ne.s32.totalorder %s66, %s67
    %p79 = scmp.eq.s32.totalorder %s15, 1
    %p80 = por %p78, %p79
    %p82 = scmp.ne.s32.totalorder %s67, %s81
    %p83 = scmp.eq.s32.totalorder %s15, 0
    %p84 = por %p82, %p83
    %s85 = ssub.s32 %s9, %s16
    %p86 = scmp.eq.s32.totalorder %s85, 0
    %s88 = sadd.s32 %s87, 1
    %s89 = scalar_select %p86, %s87, %s88
    %p92 = pneg %p86
    %p93 = scmp.eq.s32.totalorder %s9, 1
    %p94 = por %p92, %p93
    %p95 = scmp.ne.s32.totalorder %s87, %s90
    %p96 = scmp.eq.s32.totalorder %s9, 0
    %p97 = por %p95, %p96
    %p98 = scmp.ne.s32.totalorder %s87, %s90
    %p99 = scmp.eq.s32.totalorder %s14, 1
    %p100 = por %p98, %p99
    %p101 = scmp.ne.s32.totalorder %s90, %s91
    %p102 = scmp.eq.s32.totalorder %s14, 0
    %p103 = por %p101, %p102
    %p104 = scmp.ne.s32.totalorder %s90, %s91
    %p105 = scmp.eq.s32.totalorder %s15, 1
    %p106 = por %p104, %p105
    %p108 = scmp.ne.s32.totalorder %s91, %s107
    %p109 = scmp.eq.s32.totalorder %s15, 0
    %p110 = por %p108, %p109
    %p111 = scmp.le.s32.totalorder 1, %s9
    %p112 = scmp.lt.s32.totalorder %s9, 3
    %p113 = pnand %p111, %p112
    %p114 = pneg %p113
    // Predicated region
    $region9: #{bottleneck_forward.4} parent=5 // pred_check
      _
    $region10: #{bottleneck_forward.4} parent=5 // pred_check_branch
      %116 = sbr.rel (%p113) target = $region12
    $region11: #{bottleneck_forward.4} parent=5 // pred_region
      %s117 = ssub.s32 %s9, 1
      // Predicated region
      $region13: #{bottleneck_forward.4} parent=11 // pred_check
        %p118 = pneg %p56
      $region14: #{bottleneck_forward.4} parent=11 // pred_check_branch
        %120 = sbr.rel (%p118) target = $region16
      $region15: #{bottleneck_forward.4} parent=11 // pred_region
        _
      $region16: #{bottleneck_forward.4} parent=11 // pred_fallthru
        _
      // Predicated region
      $region17: #{bottleneck_forward.4} parent=11 // pred_check
        %p121 = pneg %p77
      $region18: #{bottleneck_forward.4} parent=11 // pred_check_branch
        %123 = sbr.rel (%p121) target = $region20
      $region19: #{bottleneck_forward.4} parent=11 // pred_region
        _
      $region20: #{bottleneck_forward.4} parent=11 // pred_fallthru
        _
    $region12: #{bottleneck_forward.4} parent=5 // pred_fallthru
      _
    %p124 = scmp.lt.s32.totalorder %s9, 2
    // Predicated region
    $region21: #{bottleneck_forward.4} parent=5 // pred_check
      %p125 = pneg %p124
    $region22: #{bottleneck_forward.4} parent=5 // pred_check_branch
      %127 = sbr.rel (%p125) target = $region24
    $region23: #{bottleneck_forward.4} parent=5 // pred_region
      // Predicated region
      $region25: #{bottleneck_forward.4} parent=23 // pred_check
        %p128 = pneg %p29
      $region26: #{bottleneck_forward.4} parent=23 // pred_check_branch
        %130 = sbr.rel (%p128) target = $region28
      $region27: #{bottleneck_forward.4} parent=23 // pred_region
        %p131 = scmp.lt.s32.totalorder %s9, 1
        %s132 = scalar_select %p131, %s9, 1
        %s133 = smul.addr %s132, 72
        %s134 = smul.addr %s133, 4
        %s135 = scalar_lea.vmem %s0, %s134
      $region28: #{bottleneck_forward.4} parent=23 // pred_fallthru
        _
    $region24: #{bottleneck_forward.4} parent=5 // pred_fallthru
      _
    %p136 = scmp.le.s32.totalorder 1, %s9
    %p137 = scmp.lt.s32.totalorder %s9, 3
    %p138 = pnand %p136, %p137
    %p139 = pneg %p138
    // Predicated region
    $region29: #{bottleneck_forward.4} parent=5 // pred_check
      _
    $region30: #{bottleneck_forward.4} parent=5 // pred_check_branch
      %141 = sbr.rel (%p138) target = $region32
    $region31: #{bottleneck_forward.4} parent=5 // pred_region
      %s142 = ssub.s32 %s9, 1
      %p143 = scmp.lt.s32.totalorder %s14, 1
      %s144 = scalar_select %p143, %s14, 1
      %s145 = smul.addr %s144, 72
      %s146 = smul.addr %s145, 4
      %s147 = scalar_lea.vmem %s0, %s146
      %p148 = pneg %p35
      %p149 = pneg %p32
      %p150 = pneg %p56
      %p151 = pneg %p53
      %p152 = pneg %p77
      %p153 = pneg %p74
      %p154 = pneg %p103
      %p155 = pneg %p100
      %p156 = scmp.lt.s32.totalorder %s14, 1
      %s157 = scalar_select %p156, %s14, 1
      %s158 = smul.addr %s157, 8
      %s159 = smul.addr %s158, 4
      %s160 = scalar_lea.vmem %s3, %s159
      %p161 = scmp.lt.s32.totalorder %s14, 1
      %s162 = scalar_select %p161, %s14, 1
      %s163 = smul.addr %s162, 72
      %s164 = smul.addr %s163, 4
      %s165 = scalar_lea.vmem %s0, %s164
      %p166 = scmp.lt.s32.totalorder %s14, 1
      %s167 = scalar_select %p166, %s14, 1
      %s168 = smul.addr %s167, 8
      %s169 = smul.addr %s168, 4
      %s170 = scalar_lea.vmem %s3, %s169
      %v172 = vld [vmem:[%s165] sm:$0xf]
      %v173 = vld [vmem:[%s165 + $0x8] sm:$0xf]
      %v174 = vld [vmem:[%s165 + $0x10] sm:$0xf]
      %v175 = vld [vmem:[%s165 + $0x18] sm:$0xf]
      %v176 = vld [vmem:[%s165 + $0x20] sm:$0xf]
      %v177 = vld [vmem:[%s165 + $0x28] sm:$0xf]
      %v178 = vld [vmem:[%s165 + $0x30] sm:$0xf]
      %v179 = vld [vmem:[%s165 + $0x38] sm:$0xf]
      %v180 = vld [vmem:[%s1] sm:$0xf]
      %v181 = vld [vmem:[%s1 + $0x4] sm:$0xf]
      %v182 = vld [vmem:[%s1 + $0x8] sm:$0xf]
      %v183 = vld [vmem:[%s1 + $0xc] sm:$0xf]
      %v184 = vld [vmem:[%s1 + $0x10] sm:$0xf]
      %v185 = vld [vmem:[%s1 + $0x14] sm:$0xf]
      %v186 = vld [vmem:[%s1 + $0x18] sm:$0xf]
      %v187 = vld [vmem:[%s1 + $0x1c] sm:$0xf]
      %v188 = vld [vmem:[%s1 + $0x20] sm:$0xf]
      %v189 = vld [vmem:[%s1 + $0x24] sm:$0xf]
      %v190 = vld [vmem:[%s1 + $0x28] sm:$0xf]
      %v191 = vld [vmem:[%s1 + $0x2c] sm:$0xf]
      %v192 = vld [vmem:[%s1 + $0x30] sm:$0xf]
      %v193 = vld [vmem:[%s1 + $0x34] sm:$0xf]
      %v194 = vld [vmem:[%s1 + $0x38] sm:$0xf]
      %v195 = vld [vmem:[%s1 + $0x3c] sm:$0xf]
      %s196 = scalar_lea.vmem %s165, 72
      %v197 = vld [vmem:[%s196] sm:$0xf]
      %v198 = vld [vmem:[%s196 + $0x8] sm:$0xf]
      %v199 = vld [vmem:[%s196 + $0x10] sm:$0xf]
      %v200 = vld [vmem:[%s196 + $0x18] sm:$0xf]
      %v201 = vld [vmem:[%s196 + $0x20] sm:$0xf]
      %v202 = vld [vmem:[%s196 + $0x28] sm:$0xf]
      %v203 = vld [vmem:[%s196 + $0x30] sm:$0xf]
      %v204 = vld [vmem:[%s196 + $0x38] sm:$0xf]
      %s205 = scalar_lea.vmem %s1, 64
      %v206 = vld [vmem:[%s205] sm:$0xf]
      %v207 = vld [vmem:[%s205 + $0x4] sm:$0xf]
      %v208 = vld [vmem:[%s205 + $0x8] sm:$0xf]
      %v209 = vld [vmem:[%s205 + $0xc] sm:$0xf]
      %v210 = vld [vmem:[%s205 + $0x10] sm:$0xf]
      %v211 = vld [vmem:[%s205 + $0x14] sm:$0xf]
      %v212 = vld [vmem:[%s205 + $0x18] sm:$0xf]
      %v213 = vld [vmem:[%s205 + $0x1c] sm:$0xf]
      %v214 = vld [vmem:[%s205 + $0x20] sm:$0xf]
      %v215 = vld [vmem:[%s205 + $0x24] sm:$0xf]
      %v216 = vld [vmem:[%s205 + $0x28] sm:$0xf]
      %v217 = vld [vmem:[%s205 + $0x2c] sm:$0xf]
      %v218 = vld [vmem:[%s205 + $0x30] sm:$0xf]
      %v219 = vld [vmem:[%s205 + $0x34] sm:$0xf]
      %v220 = vld [vmem:[%s205 + $0x38] sm:$0xf]
      %v221 = vld [vmem:[%s205 + $0x3c] sm:$0xf]
      %v230 = vunpack.c.l.b16 %v197
      %v231 = vunpack.c.l.b16 %v198
      %v232 = vunpack.c.l.b16 %v199
      %v233 = vunpack.c.l.b16 %v200
      %v234 = vunpack.c.l.b16 %v201
      %v235 = vunpack.c.l.b16 %v202
      %v236 = vunpack.c.l.b16 %v203
      %v237 = vunpack.c.l.b16 %v204
      %v238 = vpack.c.b16 %v231, %v230
      %v239 = vpack.c.b16 %v233, %v232
      %v240 = vpack.c.b16 %v235, %v234
      %v241 = vpack.c.b16 %v237, %v236
      %v262 = vunpack.c.l.b16 %v206
      %v263 = vunpack.c.l.b16 %v207
      %v264 = vunpack.c.l.b16 %v208
      %v265 = vunpack.c.l.b16 %v209
      %v266 = vunpack.c.l.b16 %v210
      %v267 = vunpack.c.l.b16 %v211
      %v268 = vunpack.c.l.b16 %v212
      %v269 = vunpack.c.l.b16 %v213
      %v270 = vunpack.c.l.b16 %v214
      %v271 = vunpack.c.l.b16 %v215
      %v272 = vunpack.c.l.b16 %v216
      %v273 = vunpack.c.l.b16 %v217
      %v274 = vunpack.c.l.b16 %v218
      %v275 = vunpack.c.l.b16 %v219
      %v276 = vunpack.c.l.b16 %v220
      %v277 = vunpack.c.l.b16 %v221
      %v278 = vpack.c.b16 %v263, %v262
      %v279 = vpack.c.b16 %v265, %v264
      %v280 = vpack.c.b16 %v267, %v266
      %v281 = vpack.c.b16 %v269, %v268
      %v282 = vpack.c.b16 %v271, %v270
      %v283 = vpack.c.b16 %v273, %v272
      %v284 = vpack.c.b16 %v275, %v274
      %v285 = vpack.c.b16 %v277, %v276
      %294 = vmatprep.subr.bf16.mxu0 0
      %295 = vmatpush1.bf16.msra.mxu0 %v278
      %296 = vmatprep.subr.bf16.mxu0 0
      %297 = vmatpush1.bf16.msra.mxu0 %v279
      %298 = vmatprep.subr.bf16.mxu0 0
      %299 = vmatpush1.bf16.msra.mxu0 %v280
      %300 = vmatprep.subr.bf16.mxu0 0
      %301 = vmatpush1.bf16.msra.mxu0 %v281
      %302 = vmatprep.subr.bf16.mxu0 0
      %303 = vmatpush1.bf16.msra.mxu0 %v282
      %304 = vmatprep.subr.bf16.mxu0 0
      %305 = vmatpush1.bf16.msra.mxu0 %v283
      %306 = vmatprep.subr.bf16.mxu0 0
      %307 = vmatpush1.bf16.msra.mxu0 %v284
      %308 = vmatprep.subr.bf16.mxu0 0
      %309 = vmatpush1.bf16.msra.mxu0 %v285
      %310 = vmatprep.subr.bf16.mxu0 0
      %311 = vmatpush1.bf16.msra.mxu0 0
      %312 = vmatprep.subr.bf16.mxu0 0
      %313 = vmatpush1.bf16.msra.mxu0 0
      %314 = vmatprep.subr.bf16.mxu0 0
      %315 = vmatpush1.bf16.msra.mxu0 0
      %316 = vmatprep.subr.bf16.mxu0 0
      %317 = vmatpush1.bf16.msra.mxu0 0
      %318 = vmatprep.subr.bf16.mxu0 0
      %319 = vmatpush1.bf16.msra.mxu0 0
      %320 = vmatprep.subr.bf16.mxu0 0
      %321 = vmatpush1.bf16.msra.mxu0 0
      %322 = vmatprep.subr.bf16.mxu0 0
      %323 = vmatpush1.bf16.msra.mxu0 0
      %324 = vmatprep.subr.bf16.mxu0 0
      %325 = vmatpush1.bf16.msra.mxu0 0
      %326 = vmatprep.mubr.bf16.mxu0 0
      %327 = vmatmul.mubr.bf16.gmra.mrb[0].mxu0 %v238
      %v328 = vpop.f32.mrb[0].mxu0
      %v329 = vadd.f32 0.0, %v328
      %v330 = vpop.f32.mrb[0].mxu0
      %v331 = vpop.f32.mrb[0].mxu0
      %v332 = vadd.f32 0.0, %v331
      %v333 = vpop.f32.mrb[0].mxu0
      %334 = vmatprep.mubr.bf16.mxu0 0
      %335 = vmatmul.mubr.bf16.gmra.mrb[0].mxu0 %v239
      %v336 = vpop.f32.mrb[0].mxu0
      %v337 = vadd.f32 0.0, %v336
      %v338 = vpop.f32.mrb[0].mxu0
      %v339 = vpop.f32.mrb[0].mxu0
      %v340 = vadd.f32 0.0, %v339
      %v341 = vpop.f32.mrb[0].mxu0
      %342 = vmatprep.mubr.bf16.mxu0 0
      %343 = vmatmul.mubr.bf16.gmra.mrb[0].mxu0 %v240
      %v344 = vpop.f32.mrb[0].mxu0
      %v345 = vadd.f32 0.0, %v344
      %v346 = vpop.f32.mrb[0].mxu0
      %v347 = vpop.f32.mrb[0].mxu0
      %v348 = vadd.f32 0.0, %v347
      %v349 = vpop.f32.mrb[0].mxu0
      %350 = vmatprep.mubr.bf16.mxu0 0
      %351 = vmatmul.mubr.bf16.gmra.mrb[0].mxu0 %v241
      %v352 = vpop.f32.mrb[0].mxu0
      %v353 = vadd.f32 0.0, %v352
      %v354 = vpop.f32.mrb[0].mxu0
      %v355 = vpop.f32.mrb[0].mxu0
      %v356 = vadd.f32 0.0, %v355
      %v357 = vpop.f32.mrb[0].mxu0
      %358 = vdwg.mxu0
      %v367 = vunpack.c.l.b16 %v172
      %v368 = vunpack.c.l.b16 %v173
      %v369 = vunpack.c.l.b16 %v174
      %v370 = vunpack.c.l.b16 %v175
      %v371 = vunpack.c.l.b16 %v176
      %v372 = vunpack.c.l.b16 %v177
      %v373 = vunpack.c.l.b16 %v178
      %v374 = vunpack.c.l.b16 %v179
      %v375 = vpack.c.b16 %v368, %v367
      %v376 = vpack.c.b16 %v370, %v369
      %v377 = vpack.c.b16 %v372, %v371
      %v378 = vpack.c.b16 %v374, %v373
      %v399 = vunpack.c.l.b16 %v180
      %v400 = vunpack.c.l.b16 %v181
      %v401 = vunpack.c.l.b16 %v182
      %v402 = vunpack.c.l.b16 %v183
      %v403 = vunpack.c.l.b16 %v184
      %v404 = vunpack.c.l.b16 %v185
      %v405 = vunpack.c.l.b16 %v186
      %v406 = vunpack.c.l.b16 %v187
      %v407 = vunpack.c.l.b16 %v188
      %v408 = vunpack.c.l.b16 %v189
      %v409 = vunpack.c.l.b16 %v190
      %v410 = vunpack.c.l.b16 %v191
      %v411 = vunpack.c.l.b16 %v192
      %v412 = vunpack.c.l.b16 %v193
      %v413 = vunpack.c.l.b16 %v194
      %v414 = vunpack.c.l.b16 %v195
      %v415 = vpack.c.b16 %v400, %v399
      %v416 = vpack.c.b16 %v402, %v401
      %v417 = vpack.c.b16 %v404, %v403
      %v418 = vpack.c.b16 %v406, %v405
      %v419 = vpack.c.b16 %v408, %v407
      %v420 = vpack.c.b16 %v410, %v409
      %v421 = vpack.c.b16 %v412, %v411
      %v422 = vpack.c.b16 %v414, %v413
      %431 = vmatprep.subr.bf16.mxu0 0
      %432 = vmatpush1.bf16.msra.mxu0 %v415
      %433 = vmatprep.subr.bf16.mxu0 0
      %434 = vmatpush1.bf16.msra.mxu0 %v416
      %435 = vmatprep.subr.bf16.mxu0 0
      %436 = vmatpush1.bf16.msra.mxu0 %v417
      %437 = vmatprep.subr.bf16.mxu0 0
      %438 = vmatpush1.bf16.msra.mxu0 %v418
      %439 = vmatprep.subr.bf16.mxu0 0
      %440 = vmatpush1.bf16.msra.mxu0 %v419
      %441 = vmatprep.subr.bf16.mxu0 0
      %442 = vmatpush1.bf16.msra.mxu0 %v420
      %443 = vmatprep.subr.bf16.mxu0 0
      %444 = vmatpush1.bf16.msra.mxu0 %v421
      %445 = vmatprep.subr.bf16.mxu0 0
      %446 = vmatpush1.bf16.msra.mxu0 %v422
      %447 = vmatprep.subr.bf16.mxu0 0
      %448 = vmatpush1.bf16.msra.mxu0 0
      %449 = vmatprep.subr.bf16.mxu0 0
      %450 = vmatpush1.bf16.msra.mxu0 0
      %451 = vmatprep.subr.bf16.mxu0 0
      %452 = vmatpush1.bf16.msra.mxu0 0
      %453 = vmatprep.subr.bf16.mxu0 0
      %454 = vmatpush1.bf16.msra.mxu0 0
      %455 = vmatprep.subr.bf16.mxu0 0
      %456 = vmatpush1.bf16.msra.mxu0 0
      %457 = vmatprep.subr.bf16.mxu0 0
      %458 = vmatpush1.bf16.msra.mxu0 0
      %459 = vmatprep.subr.bf16.mxu0 0
      %460 = vmatpush1.bf16.msra.mxu0 0
      %461 = vmatprep.subr.bf16.mxu0 0
      %462 = vmatpush1.bf16.msra.mxu0 0
      %463 = vmatprep.mubr.bf16.mxu0 0
      %464 = vmatmul.mubr.bf16.gmra.mrb[0].mxu0 %v375
      %v465 = vpop.f32.mrb[0].mxu0
      %v466 = vadd.f32 %v329, %v465
      %v467 = vpop.f32.mrb[0].mxu0
      %v468 = vpop.f32.mrb[0].mxu0
      %v469 = vadd.f32 %v332, %v468
      %v470 = vpop.f32.mrb[0].mxu0
      %471 = vmatprep.mubr.bf16.mxu0 0
      %472 = vmatmul.mubr.bf16.gmra.mrb[0].mxu0 %v376
      %v473 = vpop.f32.mrb[0].mxu0
      %v474 = vadd.f32 %v337, %v473
      %v475 = vpop.f32.mrb[0].mxu0
      %v476 = vpop.f32.mrb[0].mxu0
      %v477 = vadd.f32 %v340, %v476
      %v478 = vpop.f32.mrb[0].mxu0
      %479 = vmatprep.mubr.bf16.mxu0 0
      %480 = vmatmul.mubr.bf16.gmra.mrb[0].mxu0 %v377
      %v481 = vpop.f32.mrb[0].mxu0
      %v482 = vadd.f32 %v345, %v481
      %v483 = vpop.f32.mrb[0].mxu0
      %v484 = vpop.f32.mrb[0].mxu0
      %v485 = vadd.f32 %v348, %v484
      %v486 = vpop.f32.mrb[0].mxu0
      %487 = vmatprep.mubr.bf16.mxu0 0
      %488 = vmatmul.mubr.bf16.gmra.mrb[0].mxu0 %v378
      %v489 = vpop.f32.mrb[0].mxu0
      %v490 = vadd.f32 %v353, %v489
      %v491 = vpop.f32.mrb[0].mxu0
      %v492 = vpop.f32.mrb[0].mxu0
      %v493 = vadd.f32 %v356, %v492
      %v494 = vpop.f32.mrb[0].mxu0
      %495 = vdwg.mxu0
      %v496 = vld [vmem:[%s165] sm:$0xf]
      %v497 = vld [vmem:[%s165 + $0x4] sm:$0x1]
      %v498 = vld [vmem:[%s165 + $0x8] sm:$0xf]
      %v499 = vld [vmem:[%s165 + $0xc] sm:$0x1]
      %v500 = vld [vmem:[%s165 + $0x10] sm:$0xf]
      %v501 = vld [vmem:[%s165 + $0x14] sm:$0x1]
      %v502 = vld [vmem:[%s165 + $0x18] sm:$0xf]
      %v503 = vld [vmem:[%s165 + $0x1c] sm:$0x1]
      %v504 = vld [vmem:[%s165 + $0x20] sm:$0xf]
      %v505 = vld [vmem:[%s165 + $0x24] sm:$0x1]
      %v506 = vld [vmem:[%s165 + $0x28] sm:$0xf]
      %v507 = vld [vmem:[%s165 + $0x2c] sm:$0x1]
      %v508 = vld [vmem:[%s165 + $0x30] sm:$0xf]
      %v509 = vld [vmem:[%s165 + $0x34] sm:$0x1]
      %v510 = vld [vmem:[%s165 + $0x38] sm:$0xf]
      %v511 = vld [vmem:[%s165 + $0x3c] sm:$0x1]
      %vm512 = vsmask.f32 3328
      %vm513 = vsmask.f32 7440
      %vm514 = vmor %vm512, %vm513
      %v516 = vshrl.u32 %v496, 16
      %v518 = vrot.slane %v516, 4
      %v519 = vshll.u32 %v496, 16
      %v521 = vrot.slane %v519, 5
      %v522 = vor.u32 %v518, %v521
      %v523 = vrot.slane %v522, 4
      %v525 = vshll.u32 %v497, 16
      %v527 = vrot.slane %v525, 5
      %v528 = vsel %vm514, %v523, %v527
      %v530 = vshrl.u32 %v498, 16
      %v532 = vrot.slane %v530, 4
      %v533 = vshll.u32 %v498, 16
      %v535 = vrot.slane %v533, 5
      %v536 = vor.u32 %v532, %v535
      %v537 = vrot.slane %v536, 4
      %v539 = vshll.u32 %v499, 16
      %v541 = vrot.slane %v539, 5
      %v542 = vsel %vm514, %v537, %v541
      %v544 = vshrl.u32 %v500, 16
      %v546 = vrot.slane %v544, 4
      %v547 = vshll.u32 %v500, 16
      %v549 = vrot.slane %v547, 5
      %v550 = vor.u32 %v546, %v549
      %v551 = vrot.slane %v550, 4
      %v553 = vshll.u32 %v501, 16
      %v555 = vrot.slane %v553, 5
      %v556 = vsel %vm514, %v551, %v555
      %v558 = vshrl.u32 %v502, 16
      %v560 = vrot.slane %v558, 4
      %v561 = vshll.u32 %v502, 16
      %v563 = vrot.slane %v561, 5
      %v564 = vor.u32 %v560, %v563
      %v565 = vrot.slane %v564, 4
      %v567 = vshll.u32 %v503, 16
      %v569 = vrot.slane %v567, 5
      %v570 = vsel %vm514, %v565, %v569
      %v572 = vshrl.u32 %v504, 16
      %v574 = vrot.slane %v572, 4
      %v575 = vshll.u32 %v504, 16
      %v577 = vrot.slane %v575, 5
      %v578 = vor.u32 %v574, %v577
      %v579 = vrot.slane %v578, 4
      %v581 = vshll.u32 %v505, 16
      %v583 = vrot.slane %v581, 5
      %v584 = vsel %vm514, %v579, %v583
      %v586 = vshrl.u32 %v506, 16
      %v588 = vrot.slane %v586, 4
      %v589 = vshll.u32 %v506, 16
      %v591 = vrot.slane %v589, 5
      %v592 = vor.u32 %v588, %v591
      %v593 = vrot.slane %v592, 4
      %v595 = vshll.u32 %v507, 16
      %v597 = vrot.slane %v595, 5
      %v598 = vsel %vm514, %v593, %v597
      %v600 = vshrl.u32 %v508, 16
      %v602 = vrot.slane %v600, 4
      %v603 = vshll.u32 %v508, 16
      %v605 = vrot.slane %v603, 5
      %v606 = vor.u32 %v602, %v605
      %v607 = vrot.slane %v606, 4
      %v609 = vshll.u32 %v509, 16
      %v611 = vrot.slane %v609, 5
      %v612 = vsel %vm514, %v607, %v611
      %v614 = vshrl.u32 %v510, 16
      %v616 = vrot.slane %v614, 4
      %v617 = vshll.u32 %v510, 16
      %v619 = vrot.slane %v617, 5
      %v620 = vor.u32 %v616, %v619
      %v621 = vrot.slane %v620, 4
      %v623 = vshll.u32 %v511, 16
      %v625 = vrot.slane %v623, 5
      %v626 = vsel %vm514, %v621, %v625
      %s627 = scalar_lea.vmem %s1, 128
      %v628 = vld [vmem:[%s627] sm:$0xf]
      %v629 = vld [vmem:[%s627 + $0x4] sm:$0xf]
      %v630 = vld [vmem:[%s627 + $0x8] sm:$0xf]
      %v631 = vld [vmem:[%s627 + $0xc] sm:$0xf]
      %v632 = vld [vmem:[%s627 + $0x10] sm:$0xf]
      %v633 = vld [vmem:[%s627 + $0x14] sm:$0xf]
      %v634 = vld [vmem:[%s627 + $0x18] sm:$0xf]
      %v635 = vld [vmem:[%s627 + $0x1c] sm:$0xf]
      %v636 = vld [vmem:[%s627 + $0x20] sm:$0xf]
      %v637 = vld [vmem:[%s627 + $0x24] sm:$0xf]
      %v638 = vld [vmem:[%s627 + $0x28] sm:$0xf]
      %v639 = vld [vmem:[%s627 + $0x2c] sm:$0xf]
      %v640 = vld [vmem:[%s627 + $0x30] sm:$0xf]
      %v641 = vld [vmem:[%s627 + $0x34] sm:$0xf]
      %v642 = vld [vmem:[%s627 + $0x38] sm:$0xf]
      %v643 = vld [vmem:[%s627 + $0x3c] sm:$0xf]
      %v644 = vunpack.c.l.b16 %v528
      %v645 = vunpack.c.l.b16 %v542
      %v646 = vunpack.c.l.b16 %v556
      %v647 = vunpack.c.l.b16 %v570
      %v648 = vunpack.c.l.b16 %v584
      %v649 = vunpack.c.l.b16 %v598
      %v650 = vunpack.c.l.b16 %v612
      %v651 = vunpack.c.l.b16 %v626
      %v652 = vpack.c.b16 %v645, %v644
      %v653 = vpack.c.b16 %v647, %v646
      %v654 = vpack.c.b16 %v649, %v648
      %v655 = vpack.c.b16 %v651, %v650
      %v676 = vunpack.c.l.b16 %v628
      %v677 = vunpack.c.l.b16 %v629
      %v678 = vunpack.c.l.b16 %v630
      %v679 = vunpack.c.l.b16 %v631
      %v680 = vunpack.c.l.b16 %v632
      %v681 = vunpack.c.l.b16 %v633
      %v682 = vunpack.c.l.b16 %v634
      %v683 = vunpack.c.l.b16 %v635
      %v684 = vunpack.c.l.b16 %v636
      %v685 = vunpack.c.l.b16 %v637
      %v686 = vunpack.c.l.b16 %v638
      %v687 = vunpack.c.l.b16 %v639
      %v688 = vunpack.c.l.b16 %v640
      %v689 = vunpack.c.l.b16 %v641
      %v690 = vunpack.c.l.b16 %v642
      %v691 = vunpack.c.l.b16 %v643
      %v692 = vpack.c.b16 %v677, %v676
      %v693 = vpack.c.b16 %v679, %v678
      %v694 = vpack.c.b16 %v681, %v680
      %v695 = vpack.c.b16 %v683, %v682
      %v696 = vpack.c.b16 %v685, %v684
      %v697 = vpack.c.b16 %v687, %v686
      %v698 = vpack.c.b16 %v689, %v688
      %v699 = vpack.c.b16 %v691, %v690
      %708 = vmatprep.subr.bf16.mxu0 0
      %709 = vmatpush1.bf16.msra.mxu0 %v692
      %710 = vmatprep.subr.bf16.mxu0 0
      %711 = vmatpush1.bf16.msra.mxu0 %v693
      %712 = vmatprep.subr.bf16.mxu0 0
      %713 = vmatpush1.bf16.msra.mxu0 %v694
      %714 = vmatprep.subr.bf16.mxu0 0
      %715 = vmatpush1.bf16.msra.mxu0 %v695
      %716 = vmatprep.subr.bf16.mxu0 0
      %717 = vmatpush1.bf16.msra.mxu0 %v696
      %718 = vmatprep.subr.bf16.mxu0 0
      %719 = vmatpush1.bf16.msra.mxu0 %v697
      %720 = vmatprep.subr.bf16.mxu0 0
      %721 = vmatpush1.bf16.msra.mxu0 %v698
      %722 = vmatprep.subr.bf16.mxu0 0
      %723 = vmatpush1.bf16.msra.mxu0 %v699
      %724 = vmatprep.subr.bf16.mxu0 0
      %725 = vmatpush1.bf16.msra.mxu0 0
      %726 = vmatprep.subr.bf16.mxu0 0
      %727 = vmatpush1.bf16.msra.mxu0 0
      %728 = vmatprep.subr.bf16.mxu0 0
      %729 = vmatpush1.bf16.msra.mxu0 0
      %730 = vmatprep.subr.bf16.mxu0 0
      %731 = vmatpush1.bf16.msra.mxu0 0
      %732 = vmatprep.subr.bf16.mxu0 0
      %733 = vmatpush1.bf16.msra.mxu0 0
      %734 = vmatprep.subr.bf16.mxu0 0
      %735 = vmatpush1.bf16.msra.mxu0 0
      %736 = vmatprep.subr.bf16.mxu0 0
      %737 = vmatpush1.bf16.msra.mxu0 0
      %738 = vmatprep.subr.bf16.mxu0 0
      %739 = vmatpush1.bf16.msra.mxu0 0
      %740 = vmatprep.mubr.bf16.mxu0 0
      %741 = vmatmul.mubr.bf16.gmra.mrb[0].mxu0 %v652
      %v742 = vpop.f32.mrb[0].mxu0
      %v743 = vadd.f32 0.0, %v742
      %v744 = vpop.f32.mrb[0].mxu0
      %v745 = vpop.f32.mrb[0].mxu0
      %v746 = vadd.f32 0.0, %v745
      %v747 = vpop.f32.mrb[0].mxu0
      %748 = vmatprep.mubr.bf16.mxu0 0
      %749 = vmatmul.mubr.bf16.gmra.mrb[0].mxu0 %v653
      %v750 = vpop.f32.mrb[0].mxu0
      %v751 = vadd.f32 0.0, %v750
      %v752 = vpop.f32.mrb[0].mxu0
      %v753 = vpop.f32.mrb[0].mxu0
      %v754 = vadd.f32 0.0, %v753
      %v755 = vpop.f32.mrb[0].mxu0
      %756 = vmatprep.mubr.bf16.mxu0 0
      %757 = vmatmul.mubr.bf16.gmra.mrb[0].mxu0 %v654
      %v758 = vpop.f32.mrb[0].mxu0
      %v759 = vadd.f32 0.0, %v758
      %v760 = vpop.f32.mrb[0].mxu0
      %v761 = vpop.f32.mrb[0].mxu0
      %v762 = vadd.f32 0.0, %v761
      %v763 = vpop.f32.mrb[0].mxu0
      %764 = vmatprep.mubr.bf16.mxu0 0
      %765 = vmatmul.mubr.bf16.gmra.mrb[0].mxu0 %v655
      %v766 = vpop.f32.mrb[0].mxu0
      %v767 = vadd.f32 0.0, %v766
      %v768 = vpop.f32.mrb[0].mxu0
      %v769 = vpop.f32.mrb[0].mxu0
      %v770 = vadd.f32 0.0, %v769
      %v771 = vpop.f32.mrb[0].mxu0
      %772 = vdwg.mxu0
      %v773 = vadd.f32 %v466, %v743
      %v774 = vadd.f32 %v469, %v746
      %v775 = vadd.f32 %v474, %v751
      %v776 = vadd.f32 %v477, %v754
      %v777 = vadd.f32 %v482, %v759
      %v778 = vadd.f32 %v485, %v762
      %v779 = vadd.f32 %v490, %v767
      %v780 = vadd.f32 %v493, %v770
      %s781 = scalar_lea.vmem %s165, 144
      %v782 = vld [vmem:[%s781] sm:$0xf]
      %v783 = vld [vmem:[%s781 + $0x8] sm:$0xf]
      %v784 = vld [vmem:[%s781 + $0x10] sm:$0xf]
      %v785 = vld [vmem:[%s781 + $0x18] sm:$0xf]
      %v786 = vld [vmem:[%s781 + $0x20] sm:$0xf]
      %v787 = vld [vmem:[%s781 + $0x28] sm:$0xf]
      %v788 = vld [vmem:[%s781 + $0x30] sm:$0xf]
      %v789 = vld [vmem:[%s781 + $0x38] sm:$0xf]
      %s790 = scalar_lea.vmem %s1, 192
      %v791 = vld [vmem:[%s790] sm:$0xf]
      %v792 = vld [vmem:[%s790 + $0x4] sm:$0xf]
      %v793 = vld [vmem:[%s790 + $0x8] sm:$0xf]
      %v794 = vld [vmem:[%s790 + $0xc] sm:$0xf]
      %v795 = vld [vmem:[%s790 + $0x10] sm:$0xf]
      %v796 = vld [vmem:[%s790 + $0x14] sm:$0xf]
      %v797 = vld [vmem:[%s790 + $0x18] sm:$0xf]
      %v798 = vld [vmem:[%s790 + $0x1c] sm:$0xf]
      %v799 = vld [vmem:[%s790 + $0x20] sm:$0xf]
      %v800 = vld [vmem:[%s790 + $0x24] sm:$0xf]
      %v801 = vld [vmem:[%s790 + $0x28] sm:$0xf]
      %v802 = vld [vmem:[%s790 + $0x2c] sm:$0xf]
      %v803 = vld [vmem:[%s790 + $0x30] sm:$0xf]
      %v804 = vld [vmem:[%s790 + $0x34] sm:$0xf]
      %v805 = vld [vmem:[%s790 + $0x38] sm:$0xf]
      %v806 = vld [vmem:[%s790 + $0x3c] sm:$0xf]
      %v815 = vunpack.c.l.b16 %v782
      %v816 = vunpack.c.l.b16 %v783
      %v817 = vunpack.c.l.b16 %v784
      %v818 = vunpack.c.l.b16 %v785
      %v819 = vunpack.c.l.b16 %v786
      %v820 = vunpack.c.l.b16 %v787
      %v821 = vunpack.c.l.b16 %v788
      %v822 = vunpack.c.l.b16 %v789
      %v823 = vpack.c.b16 %v816, %v815
      %v824 = vpack.c.b16 %v818, %v817
      %v825 = vpack.c.b16 %v820, %v819
      %v826 = vpack.c.b16 %v822, %v821
      %v847 = vunpack.c.l.b16 %v791
      %v848 = vunpack.c.l.b16 %v792
      %v849 = vunpack.c.l.b16 %v793
      %v850 = vunpack.c.l.b16 %v794
      %v851 = vunpack.c.l.b16 %v795
      %v852 = vunpack.c.l.b16 %v796
      %v853 = vunpack.c.l.b16 %v797
      %v854 = vunpack.c.l.b16 %v798
      %v855 = vunpack.c.l.b16 %v799
      %v856 = vunpack.c.l.b16 %v800
      %v857 = vunpack.c.l.b16 %v801
      %v858 = vunpack.c.l.b16 %v802
      %v859 = vunpack.c.l.b16 %v803
      %v860 = vunpack.c.l.b16 %v804
      %v861 = vunpack.c.l.b16 %v805
      %v862 = vunpack.c.l.b16 %v806
      %v863 = vpack.c.b16 %v848, %v847
      %v864 = vpack.c.b16 %v850, %v849
      %v865 = vpack.c.b16 %v852, %v851
      %v866 = vpack.c.b16 %v854, %v853
      %v867 = vpack.c.b16 %v856, %v855
      %v868 = vpack.c.b16 %v858, %v857
      %v869 = vpack.c.b16 %v860, %v859
      %v870 = vpack.c.b16 %v862, %v861
      %879 = vmatprep.subr.bf16.mxu0 0
      %880 = vmatpush1.bf16.msra.mxu0 %v863
      %881 = vmatprep.subr.bf16.mxu0 0
      %882 = vmatpush1.bf16.msra.mxu0 %v864
      %883 = vmatprep.subr.bf16.mxu0 0
      %884 = vmatpush1.bf16.msra.mxu0 %v865
      %885 = vmatprep.subr.bf16.mxu0 0
      %886 = vmatpush1.bf16.msra.mxu0 %v866
      %887 = vmatprep.subr.bf16.mxu0 0
      %888 = vmatpush1.bf16.msra.mxu0 %v867
      %889 = vmatprep.subr.bf16.mxu0 0
      %890 = vmatpush1.bf16.msra.mxu0 %v868
      %891 = vmatprep.subr.bf16.mxu0 0
      %892 = vmatpush1.bf16.msra.mxu0 %v869
      %893 = vmatprep.subr.bf16.mxu0 0
      %894 = vmatpush1.bf16.msra.mxu0 %v870
      %895 = vmatprep.subr.bf16.mxu0 0
      %896 = vmatpush1.bf16.msra.mxu0 0
      %897 = vmatprep.subr.bf16.mxu0 0
      %898 = vmatpush1.bf16.msra.mxu0 0
      %899 = vmatprep.subr.bf16.mxu0 0
      %900 = vmatpush1.bf16.msra.mxu0 0
      %901 = vmatprep.subr.bf16.mxu0 0
      %902 = vmatpush1.bf16.msra.mxu0 0
      %903 = vmatprep.subr.bf16.mxu0 0
      %904 = vmatpush1.bf16.msra.mxu0 0
      %905 = vmatprep.subr.bf16.mxu0 0
      %906 = vmatpush1.bf16.msra.mxu0 0
      %907 = vmatprep.subr.bf16.mxu0 0
      %908 = vmatpush1.bf16.msra.mxu0 0
      %909 = vmatprep.subr.bf16.mxu0 0
      %910 = vmatpush1.bf16.msra.mxu0 0
      %911 = vmatprep.mubr.bf16.mxu0 0
      %912 = vmatmul.mubr.bf16.gmra.mrb[0].mxu0 %v823
      %v913 = vpop.f32.mrb[0].mxu0
      %v914 = vadd.f32 0.0, %v913
      %v915 = vpop.f32.mrb[0].mxu0
      %v916 = vpop.f32.mrb[0].mxu0
      %v917 = vadd.f32 0.0, %v916
      %v918 = vpop.f32.mrb[0].mxu0
      %919 = vmatprep.mubr.bf16.mxu0 0
      %920 = vmatmul.mubr.bf16.gmra.mrb[0].mxu0 %v824
      %v921 = vpop.f32.mrb[0].mxu0
      %v922 = vadd.f32 0.0, %v921
      %v923 = vpop.f32.mrb[0].mxu0
      %v924 = vpop.f32.mrb[0].mxu0
      %v925 = vadd.f32 0.0, %v924
      %v926 = vpop.f32.mrb[0].mxu0
      %927 = vmatprep.mubr.bf16.mxu0 0
      %928 = vmatmul.mubr.bf16.gmra.mrb[0].mxu0 %v825
      %v929 = vpop.f32.mrb[0].mxu0
      %v930 = vadd.f32 0.0, %v929
      %v931 = vpop.f32.mrb[0].mxu0
      %v932 = vpop.f32.mrb[0].mxu0
      %v933 = vadd.f32 0.0, %v932
      %v934 = vpop.f32.mrb[0].mxu0
      %935 = vmatprep.mubr.bf16.mxu0 0
      %936 = vmatmul.mubr.bf16.gmra.mrb[0].mxu0 %v826
      %v937 = vpop.f32.mrb[0].mxu0
      %v938 = vadd.f32 0.0, %v937
      %v939 = vpop.f32.mrb[0].mxu0
      %v940 = vpop.f32.mrb[0].mxu0
      %v941 = vadd.f32 0.0, %v940
      %v942 = vpop.f32.mrb[0].mxu0
      %943 = vdwg.mxu0
      %v944 = vadd.f32 %v773, %v914
      %v945 = vadd.f32 %v774, %v917
      %v946 = vadd.f32 %v775, %v922
      %v947 = vadd.f32 %v776, %v925
      %v948 = vadd.f32 %v777, %v930
      %v949 = vadd.f32 %v778, %v933
      %v950 = vadd.f32 %v779, %v938
      %v951 = vadd.f32 %v780, %v941
      %s952 = scalar_lea.vmem %s165, 216
      %v953 = vld [vmem:[%s952] sm:$0xf]
      %v954 = vld [vmem:[%s952 + $0x8] sm:$0xf]
      %v955 = vld [vmem:[%s952 + $0x10] sm:$0xf]
      %v956 = vld [vmem:[%s952 + $0x18] sm:$0xf]
      %v957 = vld [vmem:[%s952 + $0x20] sm:$0xf]
      %v958 = vld [vmem:[%s952 + $0x28] sm:$0xf]
      %v959 = vld [vmem:[%s952 + $0x30] sm:$0xf]
      %v960 = vld [vmem:[%s952 + $0x38] sm:$0xf]
      %s961 = scalar_lea.vmem %s1, 256
      %v962 = vld [vmem:[%s961] sm:$0xf]
      %v963 = vld [vmem:[%s961 + $0x4] sm:$0xf]
      %v964 = vld [vmem:[%s961 + $0x8] sm:$0xf]
      %v965 = vld [vmem:[%s961 + $0xc] sm:$0xf]
      %v966 = vld [vmem:[%s961 + $0x10] sm:$0xf]
      %v967 = vld [vmem:[%s961 + $0x14] sm:$0xf]
      %v968 = vld [vmem:[%s961 + $0x18] sm:$0xf]
      %v969 = vld [vmem:[%s961 + $0x1c] sm:$0xf]
      %v970 = vld [vmem:[%s961 + $0x20] sm:$0xf]
      %v971 = vld [vmem:[%s961 + $0x24] sm:$0xf]
      %v972 = vld [vmem:[%s961 + $0x28] sm:$0xf]
      %v973 = vld [vmem:[%s961 + $0x2c] sm:$0xf]
      %v974 = vld [vmem:[%s961 + $0x30] sm:$0xf]
      %v975 = vld [vmem:[%s961 + $0x34] sm:$0xf]
      %v976 = vld [vmem:[%s961 + $0x38] sm:$0xf]
      %v977 = vld [vmem:[%s961 + $0x3c] sm:$0xf]
      %v986 = vunpack.c.l.b16 %v953
      %v987 = vunpack.c.l.b16 %v954
      %v988 = vunpack.c.l.b16 %v955
      %v989 = vunpack.c.l.b16 %v956
      %v990 = vunpack.c.l.b16 %v957
      %v991 = vunpack.c.l.b16 %v958
      %v992 = vunpack.c.l.b16 %v959
      %v993 = vunpack.c.l.b16 %v960
      %v994 = vpack.c.b16 %v987, %v986
      %v995 = vpack.c.b16 %v989, %v988
      %v996 = vpack.c.b16 %v991, %v990
      %v997 = vpack.c.b16 %v993, %v992
      %v1018 = vunpack.c.l.b16 %v962
      %v1019 = vunpack.c.l.b16 %v963
      %v1020 = vunpack.c.l.b16 %v964
      %v1021 = vunpack.c.l.b16 %v965
      %v1022 = vunpack.c.l.b16 %v966
      %v1023 = vunpack.c.l.b16 %v967
      %v1024 = vunpack.c.l.b16 %v968
      %v1025 = vunpack.c.l.b16 %v969
      %v1026 = vunpack.c.l.b16 %v970
      %v1027 = vunpack.c.l.b16 %v971
      %v1028 = vunpack.c.l.b16 %v972
      %v1029 = vunpack.c.l.b16 %v973
      %v1030 = vunpack.c.l.b16 %v974
      %v1031 = vunpack.c.l.b16 %v975
      %v1032 = vunpack.c.l.b16 %v976
      %v1033 = vunpack.c.l.b16 %v977
      %v1034 = vpack.c.b16 %v1019, %v1018
      %v1035 = vpack.c.b16 %v1021, %v1020
      %v1036 = vpack.c.b16 %v1023, %v1022
      %v1037 = vpack.c.b16 %v1025, %v1024
      %v1038 = vpack.c.b16 %v1027, %v1026
      %v1039 = vpack.c.b16 %v1029, %v1028
      %v1040 = vpack.c.b16 %v1031, %v1030
      %v1041 = vpack.c.b16 %v1033, %v1032
      %1050 = vmatprep.subr.bf16.mxu0 0
      %1051 = vmatpush1.bf16.msra.mxu0 %v1034
      %1052 = vmatprep.subr.bf16.mxu0 0
      %1053 = vmatpush1.bf16.msra.mxu0 %v1035
      %1054 = vmatprep.subr.bf16.mxu0 0
      %1055 = vmatpush1.bf16.msra.mxu0 %v1036
      %1056 = vmatprep.subr.bf16.mxu0 0
      %1057 = vmatpush1.bf16.msra.mxu0 %v1037
      %1058 = vmatprep.subr.bf16.mxu0 0
      %1059 = vmatpush1.bf16.msra.mxu0 %v1038
      %1060 = vmatprep.subr.bf16.mxu0 0
      %1061 = vmatpush1.bf16.msra.mxu0 %v1039
      %1062 = vmatprep.subr.bf16.mxu0 0
      %1063 = vmatpush1.bf16.msra.mxu0 %v1040
      %1064 = vmatprep.subr.bf16.mxu0 0
      %1065 = vmatpush1.bf16.msra.mxu0 %v1041
      %1066 = vmatprep.subr.bf16.mxu0 0
      %1067 = vmatpush1.bf16.msra.mxu0 0
      %1068 = vmatprep.subr.bf16.mxu0 0
      %1069 = vmatpush1.bf16.msra.mxu0 0
      %1070 = vmatprep.subr.bf16.mxu0 0
      %1071 = vmatpush1.bf16.msra.mxu0 0
      %1072 = vmatprep.subr.bf16.mxu0 0
      %1073 = vmatpush1.bf16.msra.mxu0 0
      %1074 = vmatprep.subr.bf16.mxu0 0
      %1075 = vmatpush1.bf16.msra.mxu0 0
      %1076 = vmatprep.subr.bf16.mxu0 0
      %1077 = vmatpush1.bf16.msra.mxu0 0
      %1078 = vmatprep.subr.bf16.mxu0 0
      %1079 = vmatpush1.bf16.msra.mxu0 0
      %1080 = vmatprep.subr.bf16.mxu0 0
      %1081 = vmatpush1.bf16.msra.mxu0 0
      %1082 = vmatprep.mubr.bf16.mxu0 0
      %1083 = vmatmul.mubr.bf16.gmra.mrb[0].mxu0 %v994
      %v1084 = vpop.f32.mrb[0].mxu0
      %v1085 = vadd.f32 0.0, %v1084
      %v1086 = vpop.f32.mrb[0].mxu0
      %v1087 = vpop.f32.mrb[0].mxu0
      %v1088 = vadd.f32 0.0, %v1087
      %v1089 = vpop.f32.mrb[0].mxu0
      %1090 = vmatprep.mubr.bf16.mxu0 0
      %1091 = vmatmul.mubr.bf16.gmra.mrb[0].mxu0 %v995
      %v1092 = vpop.f32.mrb[0].mxu0
      %v1093 = vadd.f32 0.0, %v1092
      %v1094 = vpop.f32.mrb[0].mxu0
      %v1095 = vpop.f32.mrb[0].mxu0
      %v1096 = vadd.f32 0.0, %v1095
      %v1097 = vpop.f32.mrb[0].mxu0
      %1098 = vmatprep.mubr.bf16.mxu0 0
      %1099 = vmatmul.mubr.bf16.gmra.mrb[0].mxu0 %v996
      %v1100 = vpop.f32.mrb[0].mxu0
      %v1101 = vadd.f32 0.0, %v1100
      %v1102 = vpop.f32.mrb[0].mxu0
      %v1103 = vpop.f32.mrb[0].mxu0
      %v1104 = vadd.f32 0.0, %v1103
      %v1105 = vpop.f32.mrb[0].mxu0
      %1106 = vmatprep.mubr.bf16.mxu0 0
      %1107 = vmatmul.mubr.bf16.gmra.mrb[0].mxu0 %v997
      %v1108 = vpop.f32.mrb[0].mxu0
      %v1109 = vadd.f32 0.0, %v1108
      %v1110 = vpop.f32.mrb[0].mxu0
      %v1111 = vpop.f32.mrb[0].mxu0
      %v1112 = vadd.f32 0.0, %v1111
      %v1113 = vpop.f32.mrb[0].mxu0
      %1114 = vdwg.mxu0
      %v1115 = vadd.f32 %v944, %v1085
      %v1116 = vadd.f32 %v945, %v1088
      %v1117 = vadd.f32 %v946, %v1093
      %v1118 = vadd.f32 %v947, %v1096
      %v1119 = vadd.f32 %v948, %v1101
      %v1120 = vadd.f32 %v949, %v1104
      %v1121 = vadd.f32 %v950, %v1109
      %v1122 = vadd.f32 %v951, %v1112
      %v1123 = vld [vmem:[%s781] sm:$0xf]
      %v1124 = vld [vmem:[%s781 + $0x4] sm:$0x1]
      %v1125 = vld [vmem:[%s781 + $0x8] sm:$0xf]
      %v1126 = vld [vmem:[%s781 + $0xc] sm:$0x1]
      %v1127 = vld [vmem:[%s781 + $0x10] sm:$0xf]
      %v1128 = vld [vmem:[%s781 + $0x14] sm:$0x1]
      %v1129 = vld [vmem:[%s781 + $0x18] sm:$0xf]
      %v1130 = vld [vmem:[%s781 + $0x1c] sm:$0x1]
      %v1131 = vld [vmem:[%s781 + $0x20] sm:$0xf]
      %v1132 = vld [vmem:[%s781 + $0x24] sm:$0x1]
      %v1133 = vld [vmem:[%s781 + $0x28] sm:$0xf]
      %v1134 = vld [vmem:[%s781 + $0x2c] sm:$0x1]
      %v1135 = vld [vmem:[%s781 + $0x30] sm:$0xf]
      %v1136 = vld [vmem:[%s781 + $0x34] sm:$0x1]
      %v1137 = vld [vmem:[%s781 + $0x38] sm:$0xf]
      %v1138 = vld [vmem:[%s781 + $0x3c] sm:$0x1]
      %v1140 = vshrl.u32 %v1123, 16
      %v1142 = vrot.slane %v1140, 4
      %v1143 = vshll.u32 %v1123, 16
      %v1145 = vrot.slane %v1143, 5
      %v1146 = vor.u32 %v1142, %v1145
      %v1147 = vrot.slane %v1146, 4
      %v1149 = vshll.u32 %v1124, 16
      %v1151 = vrot.slane %v1149, 5
      %v1152 = vsel %vm514, %v1147, %v1151
      %v1154 = vshrl.u32 %v1125, 16
      %v1156 = vrot.slane %v1154, 4
      %v1157 = vshll.u32 %v1125, 16
      %v1159 = vrot.slane %v1157, 5
      %v1160 = vor.u32 %v1156, %v1159
      %v1161 = vrot.slane %v1160, 4
      %v1163 = vshll.u32 %v1126, 16
      %v1165 = vrot.slane %v1163, 5
      %v1166 = vsel %vm514, %v1161, %v1165
      %v1168 = vshrl.u32 %v1127, 16
      %v1170 = vrot.slane %v1168, 4
      %v1171 = vshll.u32 %v1127, 16
      %v1173 = vrot.slane %v1171, 5
      %v1174 = vor.u32 %v1170, %v1173
      %v1175 = vrot.slane %v1174, 4
      %v1177 = vshll.u32 %v1128, 16
      %v1179 = vrot.slane %v1177, 5
      %v1180 = vsel %vm514, %v1175, %v1179
      %v1182 = vshrl.u32 %v1129, 16
      %v1184 = vrot.slane %v1182, 4
      %v1185 = vshll.u32 %v1129, 16
      %v1187 = vrot.slane %v1185, 5
      %v1188 = vor.u32 %v1184, %v1187
      %v1189 = vrot.slane %v1188, 4
      %v1191 = vshll.u32 %v1130, 16
      %v1193 = vrot.slane %v1191, 5
      %v1194 = vsel %vm514, %v1189, %v1193
      %v1196 = vshrl.u32 %v1131, 16
      %v1198 = vrot.slane %v1196, 4
      %v1199 = vshll.u32 %v1131, 16
      %v1201 = vrot.slane %v1199, 5
      %v1202 = vor.u32 %v1198, %v1201
      %v1203 = vrot.slane %v1202, 4
      %v1205 = vshll.u32 %v1132, 16
      %v1207 = vrot.slane %v1205, 5
      %v1208 = vsel %vm514, %v1203, %v1207
      %v1210 = vshrl.u32 %v1133, 16
      %v1212 = vrot.slane %v1210, 4
      %v1213 = vshll.u32 %v1133, 16
      %v1215 = vrot.slane %v1213, 5
      %v1216 = vor.u32 %v1212, %v1215
      %v1217 = vrot.slane %v1216, 4
      %v1219 = vshll.u32 %v1134, 16
      %v1221 = vrot.slane %v1219, 5
      %v1222 = vsel %vm514, %v1217, %v1221
      %v1224 = vshrl.u32 %v1135, 16
      %v1226 = vrot.slane %v1224, 4
      %v1227 = vshll.u32 %v1135, 16
      %v1229 = vrot.slane %v1227, 5
      %v1230 = vor.u32 %v1226, %v1229
      %v1231 = vrot.slane %v1230, 4
      %v1233 = vshll.u32 %v1136, 16
      %v1235 = vrot.slane %v1233, 5
      %v1236 = vsel %vm514, %v1231, %v1235
      %v1238 = vshrl.u32 %v1137, 16
      %v1240 = vrot.slane %v1238, 4
      %v1241 = vshll.u32 %v1137, 16
      %v1243 = vrot.slane %v1241, 5
      %v1244 = vor.u32 %v1240, %v1243
      %v1245 = vrot.slane %v1244, 4
      %v1247 = vshll.u32 %v1138, 16
      %v1249 = vrot.slane %v1247, 5
      %v1250 = vsel %vm514, %v1245, %v1249
      %s1251 = scalar_lea.vmem %s1, 320
      %v1252 = vld [vmem:[%s1251] sm:$0xf]
      %v1253 = vld [vmem:[%s1251 + $0x4] sm:$0xf]
      %v1254 = vld [vmem:[%s1251 + $0x8] sm:$0xf]
      %v1255 = vld [vmem:[%s1251 + $0xc] sm:$0xf]
      %v1256 = vld [vmem:[%s1251 + $0x10] sm:$0xf]
      %v1257 = vld [vmem:[%s1251 + $0x14] sm:$0xf]
      %v1258 = vld [vmem:[%s1251 + $0x18] sm:$0xf]
      %v1259 = vld [vmem:[%s1251 + $0x1c] sm:$0xf]
      %v1260 = vld [vmem:[%s1251 + $0x20] sm:$0xf]
      %v1261 = vld [vmem:[%s1251 + $0x24] sm:$0xf]
      %v1262 = vld [vmem:[%s1251 + $0x28] sm:$0xf]
      %v1263 = vld [vmem:[%s1251 + $0x2c] sm:$0xf]
      %v1264 = vld [vmem:[%s1251 + $0x30] sm:$0xf]
      %v1265 = vld [vmem:[%s1251 + $0x34] sm:$0xf]
      %v1266 = vld [vmem:[%s1251 + $0x38] sm:$0xf]
      %v1267 = vld [vmem:[%s1251 + $0x3c] sm:$0xf]
      %v1268 = vunpack.c.l.b16 %v1152
      %v1269 = vunpack.c.l.b16 %v1166
      %v1270 = vunpack.c.l.b16 %v1180
      %v1271 = vunpack.c.l.b16 %v1194
      %v1272 = vunpack.c.l.b16 %v1208
      %v1273 = vunpack.c.l.b16 %v1222
      %v1274 = vunpack.c.l.b16 %v1236
      %v1275 = vunpack.c.l.b16 %v1250
      %v1276 = vpack.c.b16 %v1269, %v1268
      %v1277 = vpack.c.b16 %v1271, %v1270
      %v1278 = vpack.c.b16 %v1273, %v1272
      %v1279 = vpack.c.b16 %v1275, %v1274
      %v1300 = vunpack.c.l.b16 %v1252
      %v1301 = vunpack.c.l.b16 %v1253
      %v1302 = vunpack.c.l.b16 %v1254
      %v1303 = vunpack.c.l.b16 %v1255
      %v1304 = vunpack.c.l.b16 %v1256
      %v1305 = vunpack.c.l.b16 %v1257
      %v1306 = vunpack.c.l.b16 %v1258
      %v1307 = vunpack.c.l.b16 %v1259
      %v1308 = vunpack.c.l.b16 %v1260
      %v1309 = vunpack.c.l.b16 %v1261
      %v1310 = vunpack.c.l.b16 %v1262
      %v1311 = vunpack.c.l.b16 %v1263
      %v1312 = vunpack.c.l.b16 %v1264
      %v1313 = vunpack.c.l.b16 %v1265
      %v1314 = vunpack.c.l.b16 %v1266
      %v1315 = vunpack.c.l.b16 %v1267
      %v1316 = vpack.c.b16 %v1301, %v1300
      %v1317 = vpack.c.b16 %v1303, %v1302
      %v1318 = vpack.c.b16 %v1305, %v1304
      %v1319 = vpack.c.b16 %v1307, %v1306
      %v1320 = vpack.c.b16 %v1309, %v1308
      %v1321 = vpack.c.b16 %v1311, %v1310
      %v1322 = vpack.c.b16 %v1313, %v1312
      %v1323 = vpack.c.b16 %v1315, %v1314
      %1332 = vmatprep.subr.bf16.mxu0 0
      %1333 = vmatpush1.bf16.msra.mxu0 %v1316
      %1334 = vmatprep.subr.bf16.mxu0 0
      %1335 = vmatpush1.bf16.msra.mxu0 %v1317
      %1336 = vmatprep.subr.bf16.mxu0 0
      %1337 = vmatpush1.bf16.msra.mxu0 %v1318
      %1338 = vmatprep.subr.bf16.mxu0 0
      %1339 = vmatpush1.bf16.msra.mxu0 %v1319
      %1340 = vmatprep.subr.bf16.mxu0 0
      %1341 = vmatpush1.bf16.msra.mxu0 %v1320
      %1342 = vmatprep.subr.bf16.mxu0 0
      %1343 = vmatpush1.bf16.msra.mxu0 %v1321
      %1344 = vmatprep.subr.bf16.mxu0 0
      %1345 = vmatpush1.bf16.msra.mxu0 %v1322
      %1346 = vmatprep.subr.bf16.mxu0 0
      %1347 = vmatpush1.bf16.msra.mxu0 %v1323
      %1348 = vmatprep.subr.bf16.mxu0 0
      %1349 = vmatpush1.bf16.msra.mxu0 0
      %1350 = vmatprep.subr.bf16.mxu0 0
      %1351 = vmatpush1.bf16.msra.mxu0 0
      %1352 = vmatprep.subr.bf16.mxu0 0
      %1353 = vmatpush1.bf16.msra.mxu0 0
      %1354 = vmatprep.subr.bf16.mxu0 0
      %1355 = vmatpush1.bf16.msra.mxu0 0
      %1356 = vmatprep.subr.bf16.mxu0 0
      %1357 = vmatpush1.bf16.msra.mxu0 0
      %1358 = vmatprep.subr.bf16.mxu0 0
      %1359 = vmatpush1.bf16.msra.mxu0 0
      %1360 = vmatprep.subr.bf16.mxu0 0
      %1361 = vmatpush1.bf16.msra.mxu0 0
      %1362 = vmatprep.subr.bf16.mxu0 0
      %1363 = vmatpush1.bf16.msra.mxu0 0
      %1364 = vmatprep.mubr.bf16.mxu0 0
      %1365 = vmatmul.mubr.bf16.gmra.mrb[0].mxu0 %v1276
      %v1366 = vpop.f32.mrb[0].mxu0
      %v1367 = vadd.f32 0.0, %v1366
      %v1368 = vpop.f32.mrb[0].mxu0
      %v1369 = vpop.f32.mrb[0].mxu0
      %v1370 = vadd.f32 0.0, %v1369
      %v1371 = vpop.f32.mrb[0].mxu0
      %1372 = vmatprep.mubr.bf16.mxu0 0
      %1373 = vmatmul.mubr.bf16.gmra.mrb[0].mxu0 %v1277
      %v1374 = vpop.f32.mrb[0].mxu0
      %v1375 = vadd.f32 0.0, %v1374
      %v1376 = vpop.f32.mrb[0].mxu0
      %v1377 = vpop.f32.mrb[0].mxu0
      %v1378 = vadd.f32 0.0, %v1377
      %v1379 = vpop.f32.mrb[0].mxu0
      %1380 = vmatprep.mubr.bf16.mxu0 0
      %1381 = vmatmul.mubr.bf16.gmra.mrb[0].mxu0 %v1278
      %v1382 = vpop.f32.mrb[0].mxu0
      %v1383 = vadd.f32 0.0, %v1382
      %v1384 = vpop.f32.mrb[0].mxu0
      %v1385 = vpop.f32.mrb[0].mxu0
      %v1386 = vadd.f32 0.0, %v1385
      %v1387 = vpop.f32.mrb[0].mxu0
      %1388 = vmatprep.mubr.bf16.mxu0 0
      %1389 = vmatmul.mubr.bf16.gmra.mrb[0].mxu0 %v1279
      %v1390 = vpop.f32.mrb[0].mxu0
      %v1391 = vadd.f32 0.0, %v1390
      %v1392 = vpop.f32.mrb[0].mxu0
      %v1393 = vpop.f32.mrb[0].mxu0
      %v1394 = vadd.f32 0.0, %v1393
      %v1395 = vpop.f32.mrb[0].mxu0
      %1396 = vdwg.mxu0
      %v1397 = vadd.f32 %v1115, %v1367
      %v1398 = vadd.f32 %v1116, %v1370
      %v1399 = vadd.f32 %v1117, %v1375
      %v1400 = vadd.f32 %v1118, %v1378
      %v1401 = vadd.f32 %v1119, %v1383
      %v1402 = vadd.f32 %v1120, %v1386
      %v1403 = vadd.f32 %v1121, %v1391
      %v1404 = vadd.f32 %v1122, %v1394
      %s1405 = scalar_lea.vmem %s165, 8
      %v1406 = vld [vmem:[%s1405] sm:$0xf]
      %v1407 = vld [vmem:[%s1405 + $0x8] sm:$0xf]
      %v1408 = vld [vmem:[%s1405 + $0x10] sm:$0xf]
      %v1409 = vld [vmem:[%s1405 + $0x18] sm:$0xf]
      %v1410 = vld [vmem:[%s1405 + $0x20] sm:$0xf]
      %v1411 = vld [vmem:[%s1405 + $0x28] sm:$0xf]
      %v1412 = vld [vmem:[%s1405 + $0x30] sm:$0xf]
      %v1413 = vld [vmem:[%s1405 + $0x38] sm:$0xf]
      %s1414 = scalar_lea.vmem %s1, 384
      %v1415 = vld [vmem:[%s1414] sm:$0xf]
      %v1416 = vld [vmem:[%s1414 + $0x4] sm:$0xf]
      %v1417 = vld [vmem:[%s1414 + $0x8] sm:$0xf]
      %v1418 = vld [vmem:[%s1414 + $0xc] sm:$0xf]
      %v1419 = vld [vmem:[%s1414 + $0x10] sm:$0xf]
      %v1420 = vld [vmem:[%s1414 + $0x14] sm:$0xf]
      %v1421 = vld [vmem:[%s1414 + $0x18] sm:$0xf]
      %v1422 = vld [vmem:[%s1414 + $0x1c] sm:$0xf]
      %v1423 = vld [vmem:[%s1414 + $0x20] sm:$0xf]
      %v1424 = vld [vmem:[%s1414 + $0x24] sm:$0xf]
      %v1425 = vld [vmem:[%s1414 + $0x28] sm:$0xf]
      %v1426 = vld [vmem:[%s1414 + $0x2c] sm:$0xf]
      %v1427 = vld [vmem:[%s1414 + $0x30] sm:$0xf]
      %v1428 = vld [vmem:[%s1414 + $0x34] sm:$0xf]
      %v1429 = vld [vmem:[%s1414 + $0x38] sm:$0xf]
      %v1430 = vld [vmem:[%s1414 + $0x3c] sm:$0xf]
      %v1439 = vunpack.c.l.b16 %v1406
      %v1440 = vunpack.c.l.b16 %v1407
      %v1441 = vunpack.c.l.b16 %v1408
      %v1442 = vunpack.c.l.b16 %v1409
      %v1443 = vunpack.c.l.b16 %v1410
      %v1444 = vunpack.c.l.b16 %v1411
      %v1445 = vunpack.c.l.b16 %v1412
      %v1446 = vunpack.c.l.b16 %v1413
      %v1447 = vpack.c.b16 %v1440, %v1439
      %v1448 = vpack.c.b16 %v1442, %v1441
      %v1449 = vpack.c.b16 %v1444, %v1443
      %v1450 = vpack.c.b16 %v1446, %v1445
      %v1471 = vunpack.c.l.b16 %v1415
      %v1472 = vunpack.c.l.b16 %v1416
      %v1473 = vunpack.c.l.b16 %v1417
      %v1474 = vunpack.c.l.b16 %v1418
      %v1475 = vunpack.c.l.b16 %v1419
      %v1476 = vunpack.c.l.b16 %v1420
      %v1477 = vunpack.c.l.b16 %v1421
      %v1478 = vunpack.c.l.b16 %v1422
      %v1479 = vunpack.c.l.b16 %v1423
      %v1480 = vunpack.c.l.b16 %v1424
      %v1481 = vunpack.c.l.b16 %v1425
      %v1482 = vunpack.c.l.b16 %v1426
      %v1483 = vunpack.c.l.b16 %v1427
      %v1484 = vunpack.c.l.b16 %v1428
      %v1485 = vunpack.c.l.b16 %v1429
      %v1486 = vunpack.c.l.b16 %v1430
      %v1487 = vpack.c.b16 %v1472, %v1471
      %v1488 = vpack.c.b16 %v1474, %v1473
      %v1489 = vpack.c.b16 %v1476, %v1475
      %v1490 = vpack.c.b16 %v1478, %v1477
      %v1491 = vpack.c.b16 %v1480, %v1479
      %v1492 = vpack.c.b16 %v1482, %v1481
      %v1493 = vpack.c.b16 %v1484, %v1483
      %v1494 = vpack.c.b16 %v1486, %v1485
      %1503 = vmatprep.subr.bf16.mxu0 0
      %1504 = vmatpush1.bf16.msra.mxu0 %v1487
      %1505 = vmatprep.subr.bf16.mxu0 0
      %1506 = vmatpush1.bf16.msra.mxu0 %v1488
      %1507 = vmatprep.subr.bf16.mxu0 0
      %1508 = vmatpush1.bf16.msra.mxu0 %v1489
      %1509 = vmatprep.subr.bf16.mxu0 0
      %1510 = vmatpush1.bf16.msra.mxu0 %v1490
      %1511 = vmatprep.subr.bf16.mxu0 0
      %1512 = vmatpush1.bf16.msra.mxu0 %v1491
      %1513 = vmatprep.subr.bf16.mxu0 0
      %1514 = vmatpush1.bf16.msra.mxu0 %v1492
      %1515 = vmatprep.subr.bf16.mxu0 0
      %1516 = vmatpush1.bf16.msra.mxu0 %v1493
      %1517 = vmatprep.subr.bf16.mxu0 0
      %1518 = vmatpush1.bf16.msra.mxu0 %v1494
      %1519 = vmatprep.subr.bf16.mxu0 0
      %1520 = vmatpush1.bf16.msra.mxu0 0
      %1521 = vmatprep.subr.bf16.mxu0 0
      %1522 = vmatpush1.bf16.msra.mxu0 0
      %1523 = vmatprep.subr.bf16.mxu0 0
      %1524 = vmatpush1.bf16.msra.mxu0 0
      %1525 = vmatprep.subr.bf16.mxu0 0
      %1526 = vmatpush1.bf16.msra.mxu0 0
      %1527 = vmatprep.subr.bf16.mxu0 0
      %1528 = vmatpush1.bf16.msra.mxu0 0
      %1529 = vmatprep.subr.bf16.mxu0 0
      %1530 = vmatpush1.bf16.msra.mxu0 0
      %1531 = vmatprep.subr.bf16.mxu0 0
      %1532 = vmatpush1.bf16.msra.mxu0 0
      %1533 = vmatprep.subr.bf16.mxu0 0
      %1534 = vmatpush1.bf16.msra.mxu0 0
      %1535 = vmatprep.mubr.bf16.mxu0 0
      %1536 = vmatmul.mubr.bf16.gmra.mrb[0].mxu0 %v1447
      %v1537 = vpop.f32.mrb[0].mxu0
      %v1538 = vadd.f32 0.0, %v1537
      %v1539 = vpop.f32.mrb[0].mxu0
      %v1540 = vpop.f32.mrb[0].mxu0
      %v1541 = vadd.f32 0.0, %v1540
      %v1542 = vpop.f32.mrb[0].mxu0
      %1543 = vmatprep.mubr.bf16.mxu0 0
      %1544 = vmatmul.mubr.bf16.gmra.mrb[0].mxu0 %v1448
      %v1545 = vpop.f32.mrb[0].mxu0
      %v1546 = vadd.f32 0.0, %v1545
      %v1547 = vpop.f32.mrb[0].mxu0
      %v1548 = vpop.f32.mrb[0].mxu0
      %v1549 = vadd.f32 0.0, %v1548
      %v1550 = vpop.f32.mrb[0].mxu0
      %1551 = vmatprep.mubr.bf16.mxu0 0
      %1552 = vmatmul.mubr.bf16.gmra.mrb[0].mxu0 %v1449
      %v1553 = vpop.f32.mrb[0].mxu0
      %v1554 = vadd.f32 0.0, %v1553
      %v1555 = vpop.f32.mrb[0].mxu0
      %v1556 = vpop.f32.mrb[0].mxu0
      %v1557 = vadd.f32 0.0, %v1556
      %v1558 = vpop.f32.mrb[0].mxu0
      %1559 = vmatprep.mubr.bf16.mxu0 0
      %1560 = vmatmul.mubr.bf16.gmra.mrb[0].mxu0 %v1450
      %v1561 = vpop.f32.mrb[0].mxu0
      %v1562 = vadd.f32 0.0, %v1561
      %v1563 = vpop.f32.mrb[0].mxu0
      %v1564 = vpop.f32.mrb[0].mxu0
      %v1565 = vadd.f32 0.0, %v1564
      %v1566 = vpop.f32.mrb[0].mxu0
      %1567 = vdwg.mxu0
      %v1568 = vadd.f32 %v1397, %v1538
      %v1569 = vadd.f32 %v1398, %v1541
      %v1570 = vadd.f32 %v1399, %v1546
      %v1571 = vadd.f32 %v1400, %v1549
      %v1572 = vadd.f32 %v1401, %v1554
      %v1573 = vadd.f32 %v1402, %v1557
      %v1574 = vadd.f32 %v1403, %v1562
      %v1575 = vadd.f32 %v1404, %v1565
      %s1576 = scalar_lea.vmem %s165, 80
      %v1577 = vld [vmem:[%s1576] sm:$0xf]
      %v1578 = vld [vmem:[%s1576 + $0x8] sm:$0xf]
      %v1579 = vld [vmem:[%s1576 + $0x10] sm:$0xf]
      %v1580 = vld [vmem:[%s1576 + $0x18] sm:$0xf]
      %v1581 = vld [vmem:[%s1576 + $0x20] sm:$0xf]
      %v1582 = vld [vmem:[%s1576 + $0x28] sm:$0xf]
      %v1583 = vld [vmem:[%s1576 + $0x30] sm:$0xf]
      %v1584 = vld [vmem:[%s1576 + $0x38] sm:$0xf]
      %s1585 = scalar_lea.vmem %s1, 448
      %v1586 = vld [vmem:[%s1585] sm:$0xf]
      %v1587 = vld [vmem:[%s1585 + $0x4] sm:$0xf]
      %v1588 = vld [vmem:[%s1585 + $0x8] sm:$0xf]
      %v1589 = vld [vmem:[%s1585 + $0xc] sm:$0xf]
      %v1590 = vld [vmem:[%s1585 + $0x10] sm:$0xf]
      %v1591 = vld [vmem:[%s1585 + $0x14] sm:$0xf]
      %v1592 = vld [vmem:[%s1585 + $0x18] sm:$0xf]
      %v1593 = vld [vmem:[%s1585 + $0x1c] sm:$0xf]
      %v1594 = vld [vmem:[%s1585 + $0x20] sm:$0xf]
      %v1595 = vld [vmem:[%s1585 + $0x24] sm:$0xf]
      %v1596 = vld [vmem:[%s1585 + $0x28] sm:$0xf]
      %v1597 = vld [vmem:[%s1585 + $0x2c] sm:$0xf]
      %v1598 = vld [vmem:[%s1585 + $0x30] sm:$0xf]
      %v1599 = vld [vmem:[%s1585 + $0x34] sm:$0xf]
      %v1600 = vld [vmem:[%s1585 + $0x38] sm:$0xf]
      %v1601 = vld [vmem:[%s1585 + $0x3c] sm:$0xf]
      %v1610 = vunpack.c.l.b16 %v1577
      %v1611 = vunpack.c.l.b16 %v1578
      %v1612 = vunpack.c.l.b16 %v1579
      %v1613 = vunpack.c.l.b16 %v1580
      %v1614 = vunpack.c.l.b16 %v1581
      %v1615 = vunpack.c.l.b16 %v1582
      %v1616 = vunpack.c.l.b16 %v1583
      %v1617 = vunpack.c.l.b16 %v1584
      %v1618 = vpack.c.b16 %v1611, %v1610
      %v1619 = vpack.c.b16 %v1613, %v1612
      %v1620 = vpack.c.b16 %v1615, %v1614
      %v1621 = vpack.c.b16 %v1617, %v1616
      %v1642 = vunpack.c.l.b16 %v1586
      %v1643 = vunpack.c.l.b16 %v1587
      %v1644 = vunpack.c.l.b16 %v1588
      %v1645 = vunpack.c.l.b16 %v1589
      %v1646 = vunpack.c.l.b16 %v1590
      %v1647 = vunpack.c.l.b16 %v1591
      %v1648 = vunpack.c.l.b16 %v1592
      %v1649 = vunpack.c.l.b16 %v1593
      %v1650 = vunpack.c.l.b16 %v1594
      %v1651 = vunpack.c.l.b16 %v1595
      %v1652 = vunpack.c.l.b16 %v1596
      %v1653 = vunpack.c.l.b16 %v1597
      %v1654 = vunpack.c.l.b16 %v1598
      %v1655 = vunpack.c.l.b16 %v1599
      %v1656 = vunpack.c.l.b16 %v1600
      %v1657 = vunpack.c.l.b16 %v1601
      %v1658 = vpack.c.b16 %v1643, %v1642
      %v1659 = vpack.c.b16 %v1645, %v1644
      %v1660 = vpack.c.b16 %v1647, %v1646
      %v1661 = vpack.c.b16 %v1649, %v1648
      %v1662 = vpack.c.b16 %v1651, %v1650
      %v1663 = vpack.c.b16 %v1653, %v1652
      %v1664 = vpack.c.b16 %v1655, %v1654
      %v1665 = vpack.c.b16 %v1657, %v1656
      %1674 = vmatprep.subr.bf16.mxu0 0
      %1675 = vmatpush1.bf16.msra.mxu0 %v1658
      %1676 = vmatprep.subr.bf16.mxu0 0
      %1677 = vmatpush1.bf16.msra.mxu0 %v1659
      %1678 = vmatprep.subr.bf16.mxu0 0
      %1679 = vmatpush1.bf16.msra.mxu0 %v1660
      %1680 = vmatprep.subr.bf16.mxu0 0
      %1681 = vmatpush1.bf16.msra.mxu0 %v1661
      %1682 = vmatprep.subr.bf16.mxu0 0
      %1683 = vmatpush1.bf16.msra.mxu0 %v1662
      %1684 = vmatprep.subr.bf16.mxu0 0
      %1685 = vmatpush1.bf16.msra.mxu0 %v1663
      %1686 = vmatprep.subr.bf16.mxu0 0
      %1687 = vmatpush1.bf16.msra.mxu0 %v1664
      %1688 = vmatprep.subr.bf16.mxu0 0
      %1689 = vmatpush1.bf16.msra.mxu0 %v1665
      %1690 = vmatprep.subr.bf16.mxu0 0
      %1691 = vmatpush1.bf16.msra.mxu0 0
      %1692 = vmatprep.subr.bf16.mxu0 0
      %1693 = vmatpush1.bf16.msra.mxu0 0
      %1694 = vmatprep.subr.bf16.mxu0 0
      %1695 = vmatpush1.bf16.msra.mxu0 0
      %1696 = vmatprep.subr.bf16.mxu0 0
      %1697 = vmatpush1.bf16.msra.mxu0 0
      %1698 = vmatprep.subr.bf16.mxu0 0
      %1699 = vmatpush1.bf16.msra.mxu0 0
      %1700 = vmatprep.subr.bf16.mxu0 0
      %1701 = vmatpush1.bf16.msra.mxu0 0
      %1702 = vmatprep.subr.bf16.mxu0 0
      %1703 = vmatpush1.bf16.msra.mxu0 0
      %1704 = vmatprep.subr.bf16.mxu0 0
      %1705 = vmatpush1.bf16.msra.mxu0 0
      %1706 = vmatprep.mubr.bf16.mxu0 0
      %1707 = vmatmul.mubr.bf16.gmra.mrb[0].mxu0 %v1618
      %v1708 = vpop.f32.mrb[0].mxu0
      %v1709 = vadd.f32 0.0, %v1708
      %v1710 = vpop.f32.mrb[0].mxu0
      %v1711 = vpop.f32.mrb[0].mxu0
      %v1712 = vadd.f32 0.0, %v1711
      %v1713 = vpop.f32.mrb[0].mxu0
      %1714 = vmatprep.mubr.bf16.mxu0 0
      %1715 = vmatmul.mubr.bf16.gmra.mrb[0].mxu0 %v1619
      %v1716 = vpop.f32.mrb[0].mxu0
      %v1717 = vadd.f32 0.0, %v1716
      %v1718 = vpop.f32.mrb[0].mxu0
      %v1719 = vpop.f32.mrb[0].mxu0
      %v1720 = vadd.f32 0.0, %v1719
      %v1721 = vpop.f32.mrb[0].mxu0
      %1722 = vmatprep.mubr.bf16.mxu0 0
      %1723 = vmatmul.mubr.bf16.gmra.mrb[0].mxu0 %v1620
      %v1724 = vpop.f32.mrb[0].mxu0
      %v1725 = vadd.f32 0.0, %v1724
      %v1726 = vpop.f32.mrb[0].mxu0
      %v1727 = vpop.f32.mrb[0].mxu0
      %v1728 = vadd.f32 0.0, %v1727
      %v1729 = vpop.f32.mrb[0].mxu0
      %1730 = vmatprep.mubr.bf16.mxu0 0
      %1731 = vmatmul.mubr.bf16.gmra.mrb[0].mxu0 %v1621
      %v1732 = vpop.f32.mrb[0].mxu0
      %v1733 = vadd.f32 0.0, %v1732
      %v1734 = vpop.f32.mrb[0].mxu0
      %v1735 = vpop.f32.mrb[0].mxu0
      %v1736 = vadd.f32 0.0, %v1735
      %v1737 = vpop.f32.mrb[0].mxu0
      %1738 = vdwg.mxu0
      %v1739 = vadd.f32 %v1568, %v1709
      %v1740 = vadd.f32 %v1569, %v1712
      %v1741 = vadd.f32 %v1570, %v1717
      %v1742 = vadd.f32 %v1571, %v1720
      %v1743 = vadd.f32 %v1572, %v1725
      %v1744 = vadd.f32 %v1573, %v1728
      %v1745 = vadd.f32 %v1574, %v1733
      %v1746 = vadd.f32 %v1575, %v1736
      %v1747 = vld [vmem:[%s1405] sm:$0xf]
      %v1748 = vld [vmem:[%s1405 + $0x4] sm:$0x1]
      %v1749 = vld [vmem:[%s1405 + $0x8] sm:$0xf]
      %v1750 = vld [vmem:[%s1405 + $0xc] sm:$0x1]
      %v1751 = vld [vmem:[%s1405 + $0x10] sm:$0xf]
      %v1752 = vld [vmem:[%s1405 + $0x14] sm:$0x1]
      %v1753 = vld [vmem:[%s1405 + $0x18] sm:$0xf]
      %v1754 = vld [vmem:[%s1405 + $0x1c] sm:$0x1]
      %v1755 = vld [vmem:[%s1405 + $0x20] sm:$0xf]
      %v1756 = vld [vmem:[%s1405 + $0x24] sm:$0x1]
      %v1757 = vld [vmem:[%s1405 + $0x28] sm:$0xf]
      %v1758 = vld [vmem:[%s1405 + $0x2c] sm:$0x1]
      %v1759 = vld [vmem:[%s1405 + $0x30] sm:$0xf]
      %v1760 = vld [vmem:[%s1405 + $0x34] sm:$0x1]
      %v1761 = vld [vmem:[%s1405 + $0x38] sm:$0xf]
      %v1762 = vld [vmem:[%s1405 + $0x3c] sm:$0x1]
      %v1764 = vshrl.u32 %v1747, 16
      %v1766 = vrot.slane %v1764, 4
      %v1767 = vshll.u32 %v1747, 16
      %v1769 = vrot.slane %v1767, 5
      %v1770 = vor.u32 %v1766, %v1769
      %v1771 = vrot.slane %v1770, 4
      %v1773 = vshll.u32 %v1748, 16
      %v1775 = vrot.slane %v1773, 5
      %v1776 = vsel %vm514, %v1771, %v1775
      %v1778 = vshrl.u32 %v1749, 16
      %v1780 = vrot.slane %v1778, 4
      %v1781 = vshll.u32 %v1749, 16
      %v1783 = vrot.slane %v1781, 5
      %v1784 = vor.u32 %v1780, %v1783
      %v1785 = vrot.slane %v1784, 4
      %v1787 = vshll.u32 %v1750, 16
      %v1789 = vrot.slane %v1787, 5
      %v1790 = vsel %vm514, %v1785, %v1789
      %v1792 = vshrl.u32 %v1751, 16
      %v1794 = vrot.slane %v1792, 4
      %v1795 = vshll.u32 %v1751, 16
      %v1797 = vrot.slane %v1795, 5
      %v1798 = vor.u32 %v1794, %v1797
      %v1799 = vrot.slane %v1798, 4
      %v1801 = vshll.u32 %v1752, 16
      %v1803 = vrot.slane %v1801, 5
      %v1804 = vsel %vm514, %v1799, %v1803
      %v1806 = vshrl.u32 %v1753, 16
      %v1808 = vrot.slane %v1806, 4
      %v1809 = vshll.u32 %v1753, 16
      %v1811 = vrot.slane %v1809, 5
      %v1812 = vor.u32 %v1808, %v1811
      %v1813 = vrot.slane %v1812, 4
      %v1815 = vshll.u32 %v1754, 16
      %v1817 = vrot.slane %v1815, 5
      %v1818 = vsel %vm514, %v1813, %v1817
      %v1820 = vshrl.u32 %v1755, 16
      %v1822 = vrot.slane %v1820, 4
      %v1823 = vshll.u32 %v1755, 16
      %v1825 = vrot.slane %v1823, 5
      %v1826 = vor.u32 %v1822, %v1825
      %v1827 = vrot.slane %v1826, 4
      %v1829 = vshll.u32 %v1756, 16
      %v1831 = vrot.slane %v1829, 5
      %v1832 = vsel %vm514, %v1827, %v1831
      %v1834 = vshrl.u32 %v1757, 16
      %v1836 = vrot.slane %v1834, 4
      %v1837 = vshll.u32 %v1757, 16
      %v1839 = vrot.slane %v1837, 5
      %v1840 = vor.u32 %v1836, %v1839
      %v1841 = vrot.slane %v1840, 4
      %v1843 = vshll.u32 %v1758, 16
      %v1845 = vrot.slane %v1843, 5
      %v1846 = vsel %vm514, %v1841, %v1845
      %v1848 = vshrl.u32 %v1759, 16
      %v1850 = vrot.slane %v1848, 4
      %v1851 = vshll.u32 %v1759, 16
      %v1853 = vrot.slane %v1851, 5
      %v1854 = vor.u32 %v1850, %v1853
      %v1855 = vrot.slane %v1854, 4
      %v1857 = vshll.u32 %v1760, 16
      %v1859 = vrot.slane %v1857, 5
      %v1860 = vsel %vm514, %v1855, %v1859
      %v1862 = vshrl.u32 %v1761, 16
      %v1864 = vrot.slane %v1862, 4
      %v1865 = vshll.u32 %v1761, 16
      %v1867 = vrot.slane %v1865, 5
      %v1868 = vor.u32 %v1864, %v1867
      %v1869 = vrot.slane %v1868, 4
      %v1871 = vshll.u32 %v1762, 16
      %v1873 = vrot.slane %v1871, 5
      %v1874 = vsel %vm514, %v1869, %v1873
      %s1875 = scalar_lea.vmem %s1, 512
      %v1876 = vld [vmem:[%s1875] sm:$0xf]
      %v1877 = vld [vmem:[%s1875 + $0x4] sm:$0xf]
      %v1878 = vld [vmem:[%s1875 + $0x8] sm:$0xf]
      %v1879 = vld [vmem:[%s1875 + $0xc] sm:$0xf]
      %v1880 = vld [vmem:[%s1875 + $0x10] sm:$0xf]
      %v1881 = vld [vmem:[%s1875 + $0x14] sm:$0xf]
      %v1882 = vld [vmem:[%s1875 + $0x18] sm:$0xf]
      %v1883 = vld [vmem:[%s1875 + $0x1c] sm:$0xf]
      %v1884 = vld [vmem:[%s1875 + $0x20] sm:$0xf]
      %v1885 = vld [vmem:[%s1875 + $0x24] sm:$0xf]
      %v1886 = vld [vmem:[%s1875 + $0x28] sm:$0xf]
      %v1887 = vld [vmem:[%s1875 + $0x2c] sm:$0xf]
      %v1888 = vld [vmem:[%s1875 + $0x30] sm:$0xf]
      %v1889 = vld [vmem:[%s1875 + $0x34] sm:$0xf]
      %v1890 = vld [vmem:[%s1875 + $0x38] sm:$0xf]
      %v1891 = vld [vmem:[%s1875 + $0x3c] sm:$0xf]
      %v1892 = vunpack.c.l.b16 %v1776
      %v1893 = vunpack.c.l.b16 %v1790
      %v1894 = vunpack.c.l.b16 %v1804
      %v1895 = vunpack.c.l.b16 %v1818
      %v1896 = vunpack.c.l.b16 %v1832
      %v1897 = vunpack.c.l.b16 %v1846
      %v1898 = vunpack.c.l.b16 %v1860
      %v1899 = vunpack.c.l.b16 %v1874
      %v1900 = vpack.c.b16 %v1893, %v1892
      %v1901 = vpack.c.b16 %v1895, %v1894
      %v1902 = vpack.c.b16 %v1897, %v1896
      %v1903 = vpack.c.b16 %v1899, %v1898
      %v1924 = vunpack.c.l.b16 %v1876
      %v1925 = vunpack.c.l.b16 %v1877
      %v1926 = vunpack.c.l.b16 %v1878
      %v1927 = vunpack.c.l.b16 %v1879
      %v1928 = vunpack.c.l.b16 %v1880
      %v1929 = vunpack.c.l.b16 %v1881
      %v1930 = vunpack.c.l.b16 %v1882
      %v1931 = vunpack.c.l.b16 %v1883
      %v1932 = vunpack.c.l.b16 %v1884
      %v1933 = vunpack.c.l.b16 %v1885
      %v1934 = vunpack.c.l.b16 %v1886
      %v1935 = vunpack.c.l.b16 %v1887
      %v1936 = vunpack.c.l.b16 %v1888
      %v1937 = vunpack.c.l.b16 %v1889
      %v1938 = vunpack.c.l.b16 %v1890
      %v1939 = vunpack.c.l.b16 %v1891
      %v1940 = vpack.c.b16 %v1925, %v1924
      %v1941 = vpack.c.b16 %v1927, %v1926
      %v1942 = vpack.c.b16 %v1929, %v1928
      %v1943 = vpack.c.b16 %v1931, %v1930
      %v1944 = vpack.c.b16 %v1933, %v1932
      %v1945 = vpack.c.b16 %v1935, %v1934
      %v1946 = vpack.c.b16 %v1937, %v1936
      %v1947 = vpack.c.b16 %v1939, %v1938
      %1956 = vmatprep.subr.bf16.mxu0 0
      %1957 = vmatpush1.bf16.msra.mxu0 %v1940
      %1958 = vmatprep.subr.bf16.mxu0 0
      %1959 = vmatpush1.bf16.msra.mxu0 %v1941
      %1960 = vmatprep.subr.bf16.mxu0 0
      %1961 = vmatpush1.bf16.msra.mxu0 %v1942
      %1962 = vmatprep.subr.bf16.mxu0 0
      %1963 = vmatpush1.bf16.msra.mxu0 %v1943
      %1964 = vmatprep.subr.bf16.mxu0 0
      %1965 = vmatpush1.bf16.msra.mxu0 %v1944
      %1966 = vmatprep.subr.bf16.mxu0 0
      %1967 = vmatpush1.bf16.msra.mxu0 %v1945
      %1968 = vmatprep.subr.bf16.mxu0 0
      %1969 = vmatpush1.bf16.msra.mxu0 %v1946
      %1970 = vmatprep.subr.bf16.mxu0 0
      %1971 = vmatpush1.bf16.msra.mxu0 %v1947
      %1972 = vmatprep.subr.bf16.mxu0 0
      %1973 = vmatpush1.bf16.msra.mxu0 0
      %1974 = vmatprep.subr.bf16.mxu0 0
      %1975 = vmatpush1.bf16.msra.mxu0 0
      %1976 = vmatprep.subr.bf16.mxu0 0
      %1977 = vmatpush1.bf16.msra.mxu0 0
      %1978 = vmatprep.subr.bf16.mxu0 0
      %1979 = vmatpush1.bf16.msra.mxu0 0
      %1980 = vmatprep.subr.bf16.mxu0 0
      %1981 = vmatpush1.bf16.msra.mxu0 0
      %1982 = vmatprep.subr.bf16.mxu0 0
      %1983 = vmatpush1.bf16.msra.mxu0 0
      %1984 = vmatprep.subr.bf16.mxu0 0
      %1985 = vmatpush1.bf16.msra.mxu0 0
      %1986 = vmatprep.subr.bf16.mxu0 0
      %1987 = vmatpush1.bf16.msra.mxu0 0
      %1988 = vmatprep.mubr.bf16.mxu0 0
      %1989 = vmatmul.mubr.bf16.gmra.mrb[0].mxu0 %v1900
      %v1990 = vpop.f32.mrb[0].mxu0
      %v1991 = vadd.f32 0.0, %v1990
      %v1992 = vpop.f32.mrb[0].mxu0
      %v1993 = vpop.f32.mrb[0].mxu0
      %v1994 = vadd.f32 0.0, %v1993
      %v1995 = vpop.f32.mrb[0].mxu0
      %1996 = vmatprep.mubr.bf16.mxu0 0
      %1997 = vmatmul.mubr.bf16.gmra.mrb[0].mxu0 %v1901
      %v1998 = vpop.f32.mrb[0].mxu0
      %v1999 = vadd.f32 0.0, %v1998
      %v2000 = vpop.f32.mrb[0].mxu0
      %v2001 = vpop.f32.mrb[0].mxu0
      %v2002 = vadd.f32 0.0, %v2001
      %v2003 = vpop.f32.mrb[0].mxu0
      %2004 = vmatprep.mubr.bf16.mxu0 0
      %2005 = vmatmul.mubr.bf16.gmra.mrb[0].mxu0 %v1902
      %v2006 = vpop.f32.mrb[0].mxu0
      %v2007 = vadd.f32 0.0, %v2006
      %v2008 = vpop.f32.mrb[0].mxu0
      %v2009 = vpop.f32.mrb[0].mxu0
      %v2010 = vadd.f32 0.0, %v2009
      %v2011 = vpop.f32.mrb[0].mxu0
      %2012 = vmatprep.mubr.bf16.mxu0 0
      %2013 = vmatmul.mubr.bf16.gmra.mrb[0].mxu0 %v1903
      %v2014 = vpop.f32.mrb[0].mxu0
      %v2015 = vadd.f32 0.0, %v2014
      %v2016 = vpop.f32.mrb[0].mxu0
      %v2017 = vpop.f32.mrb[0].mxu0
      %v2018 = vadd.f32 0.0, %v2017
      %v2019 = vpop.f32.mrb[0].mxu0
      %2020 = vdwg.mxu0
      %v2021 = vadd.f32 %v1739, %v1991
      %v2022 = vadd.f32 %v1740, %v1994
      %v2023 = vadd.f32 %v1741, %v1999
      %v2024 = vadd.f32 %v1742, %v2002
      %v2025 = vadd.f32 %v1743, %v2007
      %v2026 = vadd.f32 %v1744, %v2010
      %v2027 = vadd.f32 %v1745, %v2015
      %v2028 = vadd.f32 %v1746, %v2018
      %v2029 = vld [vmem:[%s2] sm:$0x1]
      %v2031 = vlaneseq
      %v2032 = vshrl.u32 %v2031, 7
      %v2033 = vsub.s32 0, %v2032
      %v2034 = vrot.slane %v2029, %v2033
      %v2036 = vadd.f32 %v2021, %v2034
      %v2037 = vadd.f32 %v2022, %v2034
      %v2038 = vadd.f32 %v2023, %v2034
      %v2039 = vadd.f32 %v2024, %v2034
      %v2040 = vadd.f32 %v2025, %v2034
      %v2041 = vadd.f32 %v2026, %v2034
      %v2042 = vadd.f32 %v2027, %v2034
      %v2043 = vadd.f32 %v2028, %v2034
      %v2044 = vmax.f32 %v2036, 0.0
      %v2045 = vmax.f32 %v2037, 0.0
      %v2046 = vmax.f32 %v2038, 0.0
      %v2047 = vmax.f32 %v2039, 0.0
      %v2048 = vmax.f32 %v2040, 0.0
      %v2049 = vmax.f32 %v2041, 0.0
      %v2050 = vmax.f32 %v2042, 0.0
      %v2051 = vmax.f32 %v2043, 0.0
      %v2052 = vpack.c.bf16 %v2045, %v2044
      %v2053 = vpack.c.bf16 %v2047, %v2046
      %v2054 = vpack.c.bf16 %v2049, %v2048
      %v2055 = vpack.c.bf16 %v2051, %v2050
      %v2060 = vunpack.c.l.b16 %v2052
      %v2061 = vunpack.c.h.b16 %v2052
      %v2062 = vunpack.c.l.b16 %v2053
      %v2063 = vunpack.c.h.b16 %v2053
      %v2064 = vunpack.c.l.b16 %v2054
      %v2065 = vunpack.c.h.b16 %v2054
      %v2066 = vunpack.c.l.b16 %v2055
      %v2067 = vunpack.c.h.b16 %v2055
      %v2068 = vpack.c.b16 %v2060, %v2060
      %v2069 = vpack.c.b16 %v2061, %v2061
      %v2070 = vpack.c.b16 %v2062, %v2062
      %v2071 = vpack.c.b16 %v2063, %v2063
      %v2072 = vpack.c.b16 %v2064, %v2064
      %v2073 = vpack.c.b16 %v2065, %v2065
      %v2074 = vpack.c.b16 %v2066, %v2066
      %v2075 = vpack.c.b16 %v2067, %v2067
      %2084 = vst [vmem:[%s170] sm:$0xf] %v2068
      %2085 = vst [vmem:[%s170 + $0x4] sm:$0xf] %v2069
      %2086 = vst [vmem:[%s170 + $0x8] sm:$0xf] %v2070
      %2087 = vst [vmem:[%s170 + $0xc] sm:$0xf] %v2071
      %2088 = vst [vmem:[%s170 + $0x10] sm:$0xf] %v2072
      %2089 = vst [vmem:[%s170 + $0x14] sm:$0xf] %v2073
      %2090 = vst [vmem:[%s170 + $0x18] sm:$0xf] %v2074
      %2091 = vst [vmem:[%s170 + $0x1c] sm:$0xf] %v2075
      %p2092 = scmp.lt.s32.totalorder %s14, 1
      %s2093 = scalar_select %p2092, %s14, 1
      %s2094 = smul.addr %s2093, 8
      %s2095 = smul.addr %s2094, 4
      %s2096 = scalar_lea.vmem %s3, %s2095
      // Predicated region
      $region33: #{bottleneck_forward.4} parent=31 // pred_check
        %p2097 = pneg %p100
      $region34: #{bottleneck_forward.4} parent=31 // pred_check_branch
        %2099 = sbr.rel (%p2097) target = $region36
      $region35: #{bottleneck_forward.4} parent=31 // pred_region
        _
      $region36: #{bottleneck_forward.4} parent=31 // pred_fallthru
        _
    $region32: #{bottleneck_forward.4} parent=5 // pred_fallthru
      _
    %p2100 = scmp.le.s32.totalorder 2, %s9
    // Predicated region
    $region37: #{bottleneck_forward.4} parent=5 // pred_check
      %p2101 = pneg %p2100
    $region38: #{bottleneck_forward.4} parent=5 // pred_check_branch
      %2103 = sbr.rel (%p2101) target = $region40
    $region39: #{bottleneck_forward.4} parent=5 // pred_region
      %s2104 = ssub.s32 %s9, 2
      // Predicated region
      $region41: #{bottleneck_forward.4} parent=39 // pred_check
        %p2105 = pneg %p106
      $region42: #{bottleneck_forward.4} parent=39 // pred_check_branch
        %2107 = sbr.rel (%p2105) target = $region44
      $region43: #{bottleneck_forward.4} parent=39 // pred_region
        %p2108 = scmp.lt.s32.totalorder %s15, 1
        %s2109 = scalar_select %p2108, %s15, 1
        %s2110 = smul.addr %s2109, 8
        %s2111 = smul.addr %s2110, 4
        %s2112 = scalar_lea.vmem %s3, %s2111
      $region44: #{bottleneck_forward.4} parent=39 // pred_fallthru
        _
    $region40: #{bottleneck_forward.4} parent=5 // pred_fallthru
      _
  $region6: #{bottleneck_forward.4} parent=0 // loop_footer
    %s13 = sadd.s32 1, %s9
  $region7: #{bottleneck_forward.4} parent=0 // loop_footer_branch
    %8 = sbr.rel target = $region3
  $region8: #{bottleneck_forward.4} parent=0 // loop_exit
    _

// kernel: bottleneck_forward.5
$region0: #{bottleneck_forward.5}
  #allocation0 [shape = 'u32[]', space=smem, size = 0x4, offset = 0x4, fixed_abs, tag = 'smem constant byte address 0x4 - core index']
  #allocation1 [shape = 'u32[144,128]{1,0:T(1,128)}', space=vmem, size = 0x12000, scoped, tag = 'internal scratch']
  %s0 = inlined_call_operand.vmem [shape: bf16[128,128], index: 0, kind: input, shape index: {}]
  %s1 = inlined_call_operand.vmem [shape: bf16[128,128], index: 1, kind: input, shape index: {}]
  %s2 = inlined_call_operand.vmem [shape: f32[1,128], index: 2, kind: input, shape index: {}]
  %s3 = inlined_call_operand.vmem [shape: bf16[128,128], index: 3, kind: input, shape index: {}]
  %s4 = inlined_call_operand.vmem [shape: bf16[128,128], index: 4, kind: input, shape index: {}]
  %s5 = inlined_call_operand.vmem [shape: f32[1,128], index: 5, kind: input, shape index: {}]
  %s6 = inlined_call_operand.hbm [shape: f32[128,128], index: 6, kind: output, shape index: {}]
  %s7 = sld [smem:[#allocation0]]
  $region57: #{bottleneck_forward.5} parent=0
    _
  %s9 = ssub.s32 1, %s7
  %s10 = scalar_select 0, %s9, %s7
  $region1: #{bottleneck_forward.5} parent=0
    #allocation2 [shape = 'u8[65536]{0}', space=vmem, size = 0x10000, scoped, tag = 'output window, operand 0']
    #allocation3 [shape = 's32[2]{0}', space=sflag, size = 0x8, scoped, tag = 'scoped memory for bottleneck_forward.5']
    %11 = vsyncpa [#allocation3], 0
    %s12 = scalar_lea.sflag [#allocation3], 1
    %13 = vsyncpa %s12, 0
    loop: start=0, step=1, limit=4
    $region2: #{bottleneck_forward.5} parent=1 // loop_pre_header
      _
    $region3: #{bottleneck_forward.5} parent=1 // loop_header
      %s15 = sphi 0, %s19
      %p16 = scmp.ge.s32.totalorder %s15, 4
      %s25 = sphi 0, %s27
      %s28 = sphi 0, %s25
      %s29 = sphi 0, %s28
      %s45 = sphi 0, %s29
      %s49 = sphi 0, %s49
      %s51 = sphi 0, %s49
      %s52 = sphi 0, %s51
      %s66 = sphi 0, %s52
      %s70 = sphi 0, %s70
      %s72 = sphi 0, %s70
      %s73 = sphi 0, %s72
      %s87 = sphi 0, %s73
      %s93 = sphi 0, %s95
      %s96 = sphi 0, %s93
      %s97 = sphi 0, %s96
      %s113 = sphi 0, %s97
      %s117 = sphi 0, %s117
      %s119 = sphi 0, %s117
      %s120 = sphi 0, %s119
      %s134 = sphi 0, %s120
      %s138 = sphi 0, %s138
      %s140 = sphi 0, %s138
      %s141 = sphi 0, %s140
      %s155 = sphi 0, %s141
      %s161 = sphi 0, %s163
      %s164 = sphi 0, %s161
      %s165 = sphi 0, %s164
      %s181 = sphi 0, %s165
    $region4: #{bottleneck_forward.5} parent=1 // loop_header_branch
      %18 = sbr.rel (%p16) target = $region8
    $region5: #{bottleneck_forward.5} parent=1 // loop_body
      %s20 = ssub.s32 %s15, 1
      %s21 = ssub.s32 %s15, 2
      %s22 = sadd.s32 %s15, 1
      %s23 = ssub.s32 %s15, %s22
      %p24 = scmp.eq.s32.totalorder %s23, 0
      %s26 = sadd.s32 %s25, 1
      %s27 = scalar_select %p24, %s25, %s26
      %p30 = pneg %p24
      %p31 = scmp.eq.s32.totalorder %s15, 1
      %p32 = por %p30, %p31
      %p33 = scmp.ne.s32.totalorder %s25, %s28
      %p34 = scmp.eq.s32.totalorder %s15, 0
      %p35 = por %p33, %p34
      %p36 = scmp.ne.s32.totalorder %s25, %s28
      %p37 = scmp.eq.s32.totalorder %s20, 1
      %p38 = por %p36, %p37
      %p39 = scmp.ne.s32.totalorder %s28, %s29
      %p40 = scmp.eq.s32.totalorder %s20, 0
      %p41 = por %p39, %p40
      %p42 = scmp.ne.s32.totalorder %s28, %s29
      %p43 = scmp.eq.s32.totalorder %s21, 1
      %p44 = por %p42, %p43
      %p46 = scmp.ne.s32.totalorder %s29, %s45
      %p47 = scmp.eq.s32.totalorder %s21, 0
      %p48 = por %p46, %p47
      %s50 = sadd.s32 %s49, 1
      %p53 = scmp.eq.s32.totalorder %s15, 1
      %p54 = scmp.ne.s32.totalorder %s49, %s51
      %p55 = scmp.eq.s32.totalorder %s15, 0
      %p56 = por %p54, %p55
      %p57 = scmp.ne.s32.totalorder %s49, %s51
      %p58 = scmp.eq.s32.totalorder %s20, 1
      %p59 = por %p57, %p58
      %p60 = scmp.ne.s32.totalorder %s51, %s52
      %p61 = scmp.eq.s32.totalorder %s20, 0
      %p62 = por %p60, %p61
      %p63 = scmp.ne.s32.totalorder %s51, %s52
      %p64 = scmp.eq.s32.totalorder %s21, 1
      %p65 = por %p63, %p64
      %p67 = scmp.ne.s32.totalorder %s52, %s66
      %p68 = scmp.eq.s32.totalorder %s21, 0
      %p69 = por %p67, %p68
      %s71 = sadd.s32 %s70, 1
      %p74 = scmp.eq.s32.totalorder %s15, 1
      %p75 = scmp.ne.s32.totalorder %s70, %s72
      %p76 = scmp.eq.s32.totalorder %s15, 0
      %p77 = por %p75, %p76
      %p78 = scmp.ne.s32.totalorder %s70, %s72
      %p79 = scmp.eq.s32.totalorder %s20, 1
      %p80 = por %p78, %p79
      %p81 = scmp.ne.s32.totalorder %s72, %s73
      %p82 = scmp.eq.s32.totalorder %s20, 0
      %p83 = por %p81, %p82
      %p84 = scmp.ne.s32.totalorder %s72, %s73
      %p85 = scmp.eq.s32.totalorder %s21, 1
      %p86 = por %p84, %p85
      %p88 = scmp.ne.s32.totalorder %s73, %s87
      %p89 = scmp.eq.s32.totalorder %s21, 0
      %p90 = por %p88, %p89
      %s91 = ssub.s32 %s15, %s22
      %p92 = scmp.eq.s32.totalorder %s91, 0
      %s94 = sadd.s32 %s93, 1
      %s95 = scalar_select %p92, %s93, %s94
      %p98 = pneg %p92
      %p99 = scmp.eq.s32.totalorder %s15, 1
      %p100 = por %p98, %p99
      %p101 = scmp.ne.s32.totalorder %s93, %s96
      %p102 = scmp.eq.s32.totalorder %s15, 0
      %p103 = por %p101, %p102
      %p104 = scmp.ne.s32.totalorder %s93, %s96
      %p105 = scmp.eq.s32.totalorder %s20, 1
      %p106 = por %p104, %p105
      %p107 = scmp.ne.s32.totalorder %s96, %s97
      %p108 = scmp.eq.s32.totalorder %s20, 0
      %p109 = por %p107, %p108
      %p110 = scmp.ne.s32.totalorder %s96, %s97
      %p111 = scmp.eq.s32.totalorder %s21, 1
      %p112 = por %p110, %p111
      %p114 = scmp.ne.s32.totalorder %s97, %s113
      %p115 = scmp.eq.s32.totalorder %s21, 0
      %p116 = por %p114, %p115
      %s118 = sadd.s32 %s117, 1
      %p121 = scmp.eq.s32.totalorder %s15, 1
      %p122 = scmp.ne.s32.totalorder %s117, %s119
      %p123 = scmp.eq.s32.totalorder %s15, 0
      %p124 = por %p122, %p123
      %p125 = scmp.ne.s32.totalorder %s117, %s119
      %p126 = scmp.eq.s32.totalorder %s20, 1
      %p127 = por %p125, %p126
      %p128 = scmp.ne.s32.totalorder %s119, %s120
      %p129 = scmp.eq.s32.totalorder %s20, 0
      %p130 = por %p128, %p129
      %p131 = scmp.ne.s32.totalorder %s119, %s120
      %p132 = scmp.eq.s32.totalorder %s21, 1
      %p133 = por %p131, %p132
      %p135 = scmp.ne.s32.totalorder %s120, %s134
      %p136 = scmp.eq.s32.totalorder %s21, 0
      %p137 = por %p135, %p136
      %s139 = sadd.s32 %s138, 1
      %p142 = scmp.eq.s32.totalorder %s15, 1
      %p143 = scmp.ne.s32.totalorder %s138, %s140
      %p144 = scmp.eq.s32.totalorder %s15, 0
      %p145 = por %p143, %p144
      %p146 = scmp.ne.s32.totalorder %s138, %s140
      %p147 = scmp.eq.s32.totalorder %s20, 1
      %p148 = por %p146, %p147
      %p149 = scmp.ne.s32.totalorder %s140, %s141
      %p150 = scmp.eq.s32.totalorder %s20, 0
      %p151 = por %p149, %p150
      %p152 = scmp.ne.s32.totalorder %s140, %s141
      %p153 = scmp.eq.s32.totalorder %s21, 1
      %p154 = por %p152, %p153
      %p156 = scmp.ne.s32.totalorder %s141, %s155
      %p157 = scmp.eq.s32.totalorder %s21, 0
      %p158 = por %p156, %p157
      %s159 = ssub.s32 %s15, %s22
      %p160 = scmp.eq.s32.totalorder %s159, 0
      %s162 = sadd.s32 %s161, 1
      %s163 = scalar_select %p160, %s161, %s162
      %p166 = pneg %p160
      %p167 = scmp.eq.s32.totalorder %s15, 1
      %p168 = por %p166, %p167
      %p169 = scmp.ne.s32.totalorder %s161, %s164
      %p170 = scmp.eq.s32.totalorder %s15, 0
      %p171 = por %p169, %p170
      %p172 = scmp.ne.s32.totalorder %s161, %s164
      %p173 = scmp.eq.s32.totalorder %s20, 1
      %p174 = por %p172, %p173
      %p175 = scmp.ne.s32.totalorder %s164, %s165
      %p176 = scmp.eq.s32.totalorder %s20, 0
      %p177 = por %p175, %p176
      %p178 = scmp.ne.s32.totalorder %s164, %s165
      %p179 = scmp.eq.s32.totalorder %s21, 1
      %p180 = por %p178, %p179
      %p182 = scmp.ne.s32.totalorder %s165, %s181
      %p183 = scmp.eq.s32.totalorder %s21, 0
      %p184 = por %p182, %p183
      %p185 = scmp.le.s32.totalorder 1, %s15
      %p186 = scmp.lt.s32.totalorder %s15, 3
      %p187 = pnand %p185, %p186
      %p188 = pneg %p187
      // Predicated region
      $region9: #{bottleneck_forward.5} parent=5 // pred_check
        _
      $region10: #{bottleneck_forward.5} parent=5 // pred_check_branch
        %190 = sbr.rel (%p187) target = $region12
      $region11: #{bottleneck_forward.5} parent=5 // pred_region
        %s191 = ssub.s32 %s15, 1
        // Predicated region
        $region13: #{bottleneck_forward.5} parent=11 // pred_check
          %p192 = pneg %p62
        $region14: #{bottleneck_forward.5} parent=11 // pred_check_branch
          %194 = sbr.rel (%p192) target = $region16
        $region15: #{bottleneck_forward.5} parent=11 // pred_region
          _
        $region16: #{bottleneck_forward.5} parent=11 // pred_fallthru
          _
        // Predicated region
        $region17: #{bottleneck_forward.5} parent=11 // pred_check
          %p195 = pneg %p83
        $region18: #{bottleneck_forward.5} parent=11 // pred_check_branch
          %197 = sbr.rel (%p195) target = $region20
        $region19: #{bottleneck_forward.5} parent=11 // pred_region
          _
        $region20: #{bottleneck_forward.5} parent=11 // pred_fallthru
          _
        // Predicated region
        $region21: #{bottleneck_forward.5} parent=11 // pred_check
          %p198 = pneg %p130
        $region22: #{bottleneck_forward.5} parent=11 // pred_check_branch
          %200 = sbr.rel (%p198) target = $region24
        $region23: #{bottleneck_forward.5} parent=11 // pred_region
          _
        $region24: #{bottleneck_forward.5} parent=11 // pred_fallthru
          _
        // Predicated region
        $region25: #{bottleneck_forward.5} parent=11 // pred_check
          %p201 = pneg %p151
        $region26: #{bottleneck_forward.5} parent=11 // pred_check_branch
          %203 = sbr.rel (%p201) target = $region28
        $region27: #{bottleneck_forward.5} parent=11 // pred_region
          _
        $region28: #{bottleneck_forward.5} parent=11 // pred_fallthru
          _
      $region12: #{bottleneck_forward.5} parent=5 // pred_fallthru
        _
      %p204 = scmp.lt.s32.totalorder %s15, 2
      // Predicated region
      $region29: #{bottleneck_forward.5} parent=5 // pred_check
        %p205 = pneg %p204
      $region30: #{bottleneck_forward.5} parent=5 // pred_check_branch
        %207 = sbr.rel (%p205) target = $region32
      $region31: #{bottleneck_forward.5} parent=5 // pred_region
        // Predicated region
        $region33: #{bottleneck_forward.5} parent=31 // pred_check
          %p208 = pneg %p35
        $region34: #{bottleneck_forward.5} parent=31 // pred_check_branch
          %210 = sbr.rel (%p208) target = $region36
        $region35: #{bottleneck_forward.5} parent=31 // pred_region
          %s211 = smul.u32 8, %s15
          %p212 = scmp.lt.s32.totalorder %s211, 15
          %s213 = scalar_select %p212, %s211, 15
          %s214 = smul.addr %s213, 4
          %s215 = scalar_lea.vmem %s0, %s214
          %s216 = smul.u32 8, %s15
        $region36: #{bottleneck_forward.5} parent=31 // pred_fallthru
          _
        // Predicated region
        $region37: #{bottleneck_forward.5} parent=31 // pred_check
          %p217 = pneg %p103
        $region38: #{bottleneck_forward.5} parent=31 // pred_check_branch
          %219 = sbr.rel (%p217) target = $region40
        $region39: #{bottleneck_forward.5} parent=31 // pred_region
          %s220 = smul.u32 8, %s15
          %p221 = scmp.lt.s32.totalorder %s220, 15
          %s222 = scalar_select %p221, %s220, 15
          %s223 = smul.addr %s222, 4
          %s224 = scalar_lea.vmem %s3, %s223
          %s225 = smul.u32 8, %s15
        $region40: #{bottleneck_forward.5} parent=31 // pred_fallthru
          _
      $region32: #{bottleneck_forward.5} parent=5 // pred_fallthru
        _
      %p226 = scmp.le.s32.totalorder 1, %s15
      %p227 = scmp.lt.s32.totalorder %s15, 3
      %p228 = pnand %p226, %p227
      %p229 = pneg %p228
      // Predicated region
      $region41: #{bottleneck_forward.5} parent=5 // pred_check
        _
      $region42: #{bottleneck_forward.5} parent=5 // pred_check_branch
        %231 = sbr.rel (%p228) target = $region44
      $region43: #{bottleneck_forward.5} parent=5 // pred_region
        %s232 = ssub.s32 %s15, 1
        %s233 = smul.u32 8, %s20
        %p234 = scmp.lt.s32.totalorder %s233, 15
        %s235 = scalar_select %p234, %s233, 15
        %s236 = smul.addr %s235, 4
        %s237 = scalar_lea.vmem %s0, %s236
        %p238 = pneg %p41
        %p239 = pneg %p38
        %p240 = pneg %p62
        %p241 = pneg %p59
        %p242 = pneg %p83
        %p243 = pneg %p80
        %s244 = smul.u32 8, %s20
        %p245 = scmp.lt.s32.totalorder %s244, 15
        %s246 = scalar_select %p245, %s244, 15
        %s247 = smul.addr %s246, 4
        %s248 = scalar_lea.vmem %s3, %s247
        %p249 = pneg %p109
        %p250 = pneg %p106
        %p251 = pneg %p130
        %p252 = pneg %p127
        %p253 = pneg %p151
        %p254 = pneg %p148
        %p255 = pneg %p177
        %p256 = pneg %p174
        %s257 = sand.u32 %s164, 1
        %s258 = scalar_lea.sflag [#allocation3], %s257
        %s259 = sand.u32 %s164, 1
        %s260 = smul.addr %s259, 64
        %s261 = scalar_lea.vmem [#allocation2], %s260
        %s262 = smul.u32 8, %s20
        %p263 = scmp.lt.s32.totalorder %s262, 15
        %s264 = scalar_select %p263, %s262, 15
        %s265 = smul.addr %s264, 4
        %s266 = scalar_lea.vmem %s0, %s265
        %s267 = smul.u32 8, %s20
        %s268 = smul.u32 8, %s20
        %p269 = scmp.lt.s32.totalorder %s268, 15
        %s270 = scalar_select %p269, %s268, 15
        %s271 = smul.addr %s270, 4
        %s272 = scalar_lea.vmem %s3, %s271
        %s273 = smul.u32 8, %s20
        %s274 = smul.u32 8, %s20
        %v276 = vld [vmem:[%s266] sm:$0xf]
        %v277 = vld [vmem:[%s266 + $0x4] sm:$0xf]
        %v278 = vld [vmem:[%s266 + $0x8] sm:$0xf]
        %v279 = vld [vmem:[%s266 + $0xc] sm:$0xf]
        %v280 = vld [vmem:[%s266 + $0x10] sm:$0xf]
        %v281 = vld [vmem:[%s266 + $0x14] sm:$0xf]
        %v282 = vld [vmem:[%s266 + $0x18] sm:$0xf]
        %v283 = vld [vmem:[%s266 + $0x1c] sm:$0xf]
        %v284 = vld [vmem:[%s1] sm:$0xf]
        %v285 = vld [vmem:[%s1 + $0x4] sm:$0xf]
        %v286 = vld [vmem:[%s1 + $0x8] sm:$0xf]
        %v287 = vld [vmem:[%s1 + $0xc] sm:$0xf]
        %v288 = vld [vmem:[%s1 + $0x10] sm:$0xf]
        %v289 = vld [vmem:[%s1 + $0x14] sm:$0xf]
        %v290 = vld [vmem:[%s1 + $0x18] sm:$0xf]
        %v291 = vld [vmem:[%s1 + $0x1c] sm:$0xf]
        %v292 = vld [vmem:[%s1 + $0x20] sm:$0xf]
        %v293 = vld [vmem:[%s1 + $0x24] sm:$0xf]
        %v294 = vld [vmem:[%s1 + $0x28] sm:$0xf]
        %v295 = vld [vmem:[%s1 + $0x2c] sm:$0xf]
        %v296 = vld [vmem:[%s1 + $0x30] sm:$0xf]
        %v297 = vld [vmem:[%s1 + $0x34] sm:$0xf]
        %v298 = vld [vmem:[%s1 + $0x38] sm:$0xf]
        %v299 = vld [vmem:[%s1 + $0x3c] sm:$0xf]
        %v300 = vld [vmem:[%s272] sm:$0xf]
        %v301 = vld [vmem:[%s272 + $0x4] sm:$0xf]
        %v302 = vld [vmem:[%s272 + $0x8] sm:$0xf]
        %v303 = vld [vmem:[%s272 + $0xc] sm:$0xf]
        %v304 = vld [vmem:[%s272 + $0x10] sm:$0xf]
        %v305 = vld [vmem:[%s272 + $0x14] sm:$0xf]
        %v306 = vld [vmem:[%s272 + $0x18] sm:$0xf]
        %v307 = vld [vmem:[%s272 + $0x1c] sm:$0xf]
        %v308 = vld [vmem:[%s4] sm:$0xf]
        %v309 = vld [vmem:[%s4 + $0x4] sm:$0xf]
        %v310 = vld [vmem:[%s4 + $0x8] sm:$0xf]
        %v311 = vld [vmem:[%s4 + $0xc] sm:$0xf]
        %v312 = vld [vmem:[%s4 + $0x10] sm:$0xf]
        %v313 = vld [vmem:[%s4 + $0x14] sm:$0xf]
        %v314 = vld [vmem:[%s4 + $0x18] sm:$0xf]
        %v315 = vld [vmem:[%s4 + $0x1c] sm:$0xf]
        %v316 = vld [vmem:[%s4 + $0x20] sm:$0xf]
        %v317 = vld [vmem:[%s4 + $0x24] sm:$0xf]
        %v318 = vld [vmem:[%s4 + $0x28] sm:$0xf]
        %v319 = vld [vmem:[%s4 + $0x2c] sm:$0xf]
        %v320 = vld [vmem:[%s4 + $0x30] sm:$0xf]
        %v321 = vld [vmem:[%s4 + $0x34] sm:$0xf]
        %v322 = vld [vmem:[%s4 + $0x38] sm:$0xf]
        %v323 = vld [vmem:[%s4 + $0x3c] sm:$0xf]
        %v332 = vunpack.c.l.b16 %v300
        %v333 = vunpack.c.l.b16 %v301
        %v334 = vunpack.c.l.b16 %v302
        %v335 = vunpack.c.l.b16 %v303
        %v336 = vunpack.c.l.b16 %v304
        %v337 = vunpack.c.l.b16 %v305
        %v338 = vunpack.c.l.b16 %v306
        %v339 = vunpack.c.l.b16 %v307
        %v340 = vpack.c.b16 %v333, %v332
        %v341 = vpack.c.b16 %v335, %v334
        %v342 = vpack.c.b16 %v337, %v336
        %v343 = vpack.c.b16 %v339, %v338
        %v364 = vunpack.c.l.b16 %v308
        %v365 = vunpack.c.l.b16 %v309
        %v366 = vunpack.c.l.b16 %v310
        %v367 = vunpack.c.l.b16 %v311
        %v368 = vunpack.c.l.b16 %v312
        %v369 = vunpack.c.l.b16 %v313
        %v370 = vunpack.c.l.b16 %v314
        %v371 = vunpack.c.l.b16 %v315
        %v372 = vunpack.c.l.b16 %v316
        %v373 = vunpack.c.l.b16 %v317
        %v374 = vunpack.c.l.b16 %v318
        %v375 = vunpack.c.l.b16 %v319
        %v376 = vunpack.c.l.b16 %v320
        %v377 = vunpack.c.l.b16 %v321
        %v378 = vunpack.c.l.b16 %v322
        %v379 = vunpack.c.l.b16 %v323
        %v380 = vpack.c.b16 %v365, %v364
        %v381 = vpack.c.b16 %v367, %v366
        %v382 = vpack.c.b16 %v369, %v368
        %v383 = vpack.c.b16 %v371, %v370
        %v384 = vpack.c.b16 %v373, %v372
        %v385 = vpack.c.b16 %v375, %v374
        %v386 = vpack.c.b16 %v377, %v376
        %v387 = vpack.c.b16 %v379, %v378
        %396 = vmatprep.subr.bf16.mxu0 0
        %397 = vmatpush1.bf16.msra.mxu0 %v380
        %398 = vmatprep.subr.bf16.mxu0 0
        %399 = vmatpush1.bf16.msra.mxu0 %v381
        %400 = vmatprep.subr.bf16.mxu0 0
        %401 = vmatpush1.bf16.msra.mxu0 %v382
        %402 = vmatprep.subr.bf16.mxu0 0
        %403 = vmatpush1.bf16.msra.mxu0 %v383
        %404 = vmatprep.subr.bf16.mxu0 0
        %405 = vmatpush1.bf16.msra.mxu0 %v384
        %406 = vmatprep.subr.bf16.mxu0 0
        %407 = vmatpush1.bf16.msra.mxu0 %v385
        %408 = vmatprep.subr.bf16.mxu0 0
        %409 = vmatpush1.bf16.msra.mxu0 %v386
        %410 = vmatprep.subr.bf16.mxu0 0
        %411 = vmatpush1.bf16.msra.mxu0 %v387
        %412 = vmatprep.subr.bf16.mxu0 0
        %413 = vmatpush1.bf16.msra.mxu0 0
        %414 = vmatprep.subr.bf16.mxu0 0
        %415 = vmatpush1.bf16.msra.mxu0 0
        %416 = vmatprep.subr.bf16.mxu0 0
        %417 = vmatpush1.bf16.msra.mxu0 0
        %418 = vmatprep.subr.bf16.mxu0 0
        %419 = vmatpush1.bf16.msra.mxu0 0
        %420 = vmatprep.subr.bf16.mxu0 0
        %421 = vmatpush1.bf16.msra.mxu0 0
        %422 = vmatprep.subr.bf16.mxu0 0
        %423 = vmatpush1.bf16.msra.mxu0 0
        %424 = vmatprep.subr.bf16.mxu0 0
        %425 = vmatpush1.bf16.msra.mxu0 0
        %426 = vmatprep.subr.bf16.mxu0 0
        %427 = vmatpush1.bf16.msra.mxu0 0
        %428 = vmatprep.mubr.bf16.mxu0 0
        %429 = vmatmul.mubr.bf16.gmra.mrb[0].mxu0 %v340
        %v430 = vpop.f32.mrb[0].mxu0
        %v431 = vadd.f32 0.0, %v430
        %v432 = vpop.f32.mrb[0].mxu0
        %v433 = vpop.f32.mrb[0].mxu0
        %v434 = vadd.f32 0.0, %v433
        %v435 = vpop.f32.mrb[0].mxu0
        %436 = vmatprep.mubr.bf16.mxu0 0
        %437 = vmatmul.mubr.bf16.gmra.mrb[0].mxu0 %v341
        %v438 = vpop.f32.mrb[0].mxu0
        %v439 = vadd.f32 0.0, %v438
        %v440 = vpop.f32.mrb[0].mxu0
        %v441 = vpop.f32.mrb[0].mxu0
        %v442 = vadd.f32 0.0, %v441
        %v443 = vpop.f32.mrb[0].mxu0
        %444 = vmatprep.mubr.bf16.mxu0 0
        %445 = vmatmul.mubr.bf16.gmra.mrb[0].mxu0 %v342
        %v446 = vpop.f32.mrb[0].mxu0
        %v447 = vadd.f32 0.0, %v446
        %v448 = vpop.f32.mrb[0].mxu0
        %v449 = vpop.f32.mrb[0].mxu0
        %v450 = vadd.f32 0.0, %v449
        %v451 = vpop.f32.mrb[0].mxu0
        %452 = vmatprep.mubr.bf16.mxu0 0
        %453 = vmatmul.mubr.bf16.gmra.mrb[0].mxu0 %v343
        %v454 = vpop.f32.mrb[0].mxu0
        %v455 = vadd.f32 0.0, %v454
        %v456 = vpop.f32.mrb[0].mxu0
        %v457 = vpop.f32.mrb[0].mxu0
        %v458 = vadd.f32 0.0, %v457
        %v459 = vpop.f32.mrb[0].mxu0
        %460 = vdwg.mxu0
        %v469 = vunpack.c.l.b16 %v276
        %v470 = vunpack.c.l.b16 %v277
        %v471 = vunpack.c.l.b16 %v278
        %v472 = vunpack.c.l.b16 %v279
        %v473 = vunpack.c.l.b16 %v280
        %v474 = vunpack.c.l.b16 %v281
        %v475 = vunpack.c.l.b16 %v282
        %v476 = vunpack.c.l.b16 %v283
        %v477 = vpack.c.b16 %v470, %v469
        %v478 = vpack.c.b16 %v472, %v471
        %v479 = vpack.c.b16 %v474, %v473
        %v480 = vpack.c.b16 %v476, %v475
        %v501 = vunpack.c.l.b16 %v284
        %v502 = vunpack.c.l.b16 %v285
        %v503 = vunpack.c.l.b16 %v286
        %v504 = vunpack.c.l.b16 %v287
        %v505 = vunpack.c.l.b16 %v288
        %v506 = vunpack.c.l.b16 %v289
        %v507 = vunpack.c.l.b16 %v290
        %v508 = vunpack.c.l.b16 %v291
        %v509 = vunpack.c.l.b16 %v292
        %v510 = vunpack.c.l.b16 %v293
        %v511 = vunpack.c.l.b16 %v294
        %v512 = vunpack.c.l.b16 %v295
        %v513 = vunpack.c.l.b16 %v296
        %v514 = vunpack.c.l.b16 %v297
        %v515 = vunpack.c.l.b16 %v298
        %v516 = vunpack.c.l.b16 %v299
        %v517 = vpack.c.b16 %v502, %v501
        %v518 = vpack.c.b16 %v504, %v503
        %v519 = vpack.c.b16 %v506, %v505
        %v520 = vpack.c.b16 %v508, %v507
        %v521 = vpack.c.b16 %v510, %v509
        %v522 = vpack.c.b16 %v512, %v511
        %v523 = vpack.c.b16 %v514, %v513
        %v524 = vpack.c.b16 %v516, %v515
        %533 = vmatprep.subr.bf16.mxu0 0
        %534 = vmatpush1.bf16.msra.mxu0 %v517
        %535 = vmatprep.subr.bf16.mxu0 0
        %536 = vmatpush1.bf16.msra.mxu0 %v518
        %537 = vmatprep.subr.bf16.mxu0 0
        %538 = vmatpush1.bf16.msra.mxu0 %v519
        %539 = vmatprep.subr.bf16.mxu0 0
        %540 = vmatpush1.bf16.msra.mxu0 %v520
        %541 = vmatprep.subr.bf16.mxu0 0
        %542 = vmatpush1.bf16.msra.mxu0 %v521
        %543 = vmatprep.subr.bf16.mxu0 0
        %544 = vmatpush1.bf16.msra.mxu0 %v522
        %545 = vmatprep.subr.bf16.mxu0 0
        %546 = vmatpush1.bf16.msra.mxu0 %v523
        %547 = vmatprep.subr.bf16.mxu0 0
        %548 = vmatpush1.bf16.msra.mxu0 %v524
        %549 = vmatprep.subr.bf16.mxu0 0
        %550 = vmatpush1.bf16.msra.mxu0 0
        %551 = vmatprep.subr.bf16.mxu0 0
        %552 = vmatpush1.bf16.msra.mxu0 0
        %553 = vmatprep.subr.bf16.mxu0 0
        %554 = vmatpush1.bf16.msra.mxu0 0
        %555 = vmatprep.subr.bf16.mxu0 0
        %556 = vmatpush1.bf16.msra.mxu0 0
        %557 = vmatprep.subr.bf16.mxu0 0
        %558 = vmatpush1.bf16.msra.mxu0 0
        %559 = vmatprep.subr.bf16.mxu0 0
        %560 = vmatpush1.bf16.msra.mxu0 0
        %561 = vmatprep.subr.bf16.mxu0 0
        %562 = vmatpush1.bf16.msra.mxu0 0
        %563 = vmatprep.subr.bf16.mxu0 0
        %564 = vmatpush1.bf16.msra.mxu0 0
        %565 = vmatprep.mubr.bf16.mxu0 0
        %566 = vmatmul.mubr.bf16.gmra.mrb[0].mxu0 %v477
        %v567 = vpop.f32.mrb[0].mxu0
        %v568 = vadd.f32 %v431, %v567
        %v569 = vpop.f32.mrb[0].mxu0
        %v570 = vpop.f32.mrb[0].mxu0
        %v571 = vadd.f32 %v434, %v570
        %v572 = vpop.f32.mrb[0].mxu0
        %573 = vmatprep.mubr.bf16.mxu0 0
        %574 = vmatmul.mubr.bf16.gmra.mrb[0].mxu0 %v478
        %v575 = vpop.f32.mrb[0].mxu0
        %v576 = vadd.f32 %v439, %v575
        %v577 = vpop.f32.mrb[0].mxu0
        %v578 = vpop.f32.mrb[0].mxu0
        %v579 = vadd.f32 %v442, %v578
        %v580 = vpop.f32.mrb[0].mxu0
        %581 = vmatprep.mubr.bf16.mxu0 0
        %582 = vmatmul.mubr.bf16.gmra.mrb[0].mxu0 %v479
        %v583 = vpop.f32.mrb[0].mxu0
        %v584 = vadd.f32 %v447, %v583
        %v585 = vpop.f32.mrb[0].mxu0
        %v586 = vpop.f32.mrb[0].mxu0
        %v587 = vadd.f32 %v450, %v586
        %v588 = vpop.f32.mrb[0].mxu0
        %589 = vmatprep.mubr.bf16.mxu0 0
        %590 = vmatmul.mubr.bf16.gmra.mrb[0].mxu0 %v480
        %v591 = vpop.f32.mrb[0].mxu0
        %v592 = vadd.f32 %v455, %v591
        %v593 = vpop.f32.mrb[0].mxu0
        %v594 = vpop.f32.mrb[0].mxu0
        %v595 = vadd.f32 %v458, %v594
        %v596 = vpop.f32.mrb[0].mxu0
        %597 = vdwg.mxu0
        %v598 = vld [vmem:[%s2] sm:$0x1]
        %v600 = vlaneseq
        %v601 = vshrl.u32 %v600, 7
        %v602 = vsub.s32 0, %v601
        %v603 = vrot.slane %v598, %v602
        %v605 = vadd.f32 %v568, %v603
        %v606 = vadd.f32 %v571, %v603
        %v607 = vadd.f32 %v576, %v603
        %v608 = vadd.f32 %v579, %v603
        %v609 = vadd.f32 %v584, %v603
        %v610 = vadd.f32 %v587, %v603
        %v611 = vadd.f32 %v592, %v603
        %v612 = vadd.f32 %v595, %v603
        %v613 = vld [vmem:[%s5] sm:$0x1]
        %v615 = vlaneseq
        %v616 = vshrl.u32 %v615, 7
        %v617 = vsub.s32 0, %v616
        %v618 = vrot.slane %v613, %v617
        %v620 = vadd.f32 %v605, %v618
        %v621 = vadd.f32 %v606, %v618
        %v622 = vadd.f32 %v607, %v618
        %v623 = vadd.f32 %v608, %v618
        %v624 = vadd.f32 %v609, %v618
        %v625 = vadd.f32 %v610, %v618
        %v626 = vadd.f32 %v611, %v618
        %v627 = vadd.f32 %v612, %v618
        %v628 = vmax.f32 %v620, 0.0
        %v629 = vmax.f32 %v621, 0.0
        %v630 = vmax.f32 %v622, 0.0
        %v631 = vmax.f32 %v623, 0.0
        %v632 = vmax.f32 %v624, 0.0
        %v633 = vmax.f32 %v625, 0.0
        %v634 = vmax.f32 %v626, 0.0
        %v635 = vmax.f32 %v627, 0.0
        %636 = vst [vmem:[%s261] sm:$0xff] %v628
        %637 = vst [vmem:[%s261 + $0x8] sm:$0xff] %v629
        %638 = vst [vmem:[%s261 + $0x10] sm:$0xff] %v630
        %639 = vst [vmem:[%s261 + $0x18] sm:$0xff] %v631
        %640 = vst [vmem:[%s261 + $0x20] sm:$0xff] %v632
        %641 = vst [vmem:[%s261 + $0x28] sm:$0xff] %v633
        %642 = vst [vmem:[%s261 + $0x30] sm:$0xff] %v634
        %643 = vst [vmem:[%s261 + $0x38] sm:$0xff] %v635
        %s644 = sand.u32 %s164, 1
        %s645 = scalar_lea.sflag [#allocation3], %s644
        %s646 = sand.u32 %s164, 1
        %s647 = smul.addr %s646, 64
        %s648 = scalar_lea.vmem [#allocation2], %s647
        // Predicated region
        $region45: #{bottleneck_forward.5} parent=43 // pred_check
          %p649 = pneg %p174
        $region46: #{bottleneck_forward.5} parent=43 // pred_check_branch
          %651 = sbr.rel (%p649) target = $region48
        $region47: #{bottleneck_forward.5} parent=43 // pred_region
          %s652 = smul.u32 8, %s20
          %s654 = ssub.s32 1024, 1024
          %655 = vsyncadd %s645, %s654
          %s656 = smul.addr %s652, 128
          %s657 = scalar_lea.hbm %s6, %s656
          %s658 = sshll.u32 %s648, 4
          %s659 = int_to_ptr.vmem [resolvable:$true] %s658
          %664 = dma.vmem_to_hbm [thread:$0]  %s659, 1024, %s657, %s645, 128, 128, 8
        $region48: #{bottleneck_forward.5} parent=43 // pred_fallthru
          _
      $region44: #{bottleneck_forward.5} parent=5 // pred_fallthru
        _
      %p665 = scmp.le.s32.totalorder 2, %s15
      // Predicated region
      $region49: #{bottleneck_forward.5} parent=5 // pred_check
        %p666 = pneg %p665
      $region50: #{bottleneck_forward.5} parent=5 // pred_check_branch
        %668 = sbr.rel (%p666) target = $region52
      $region51: #{bottleneck_forward.5} parent=5 // pred_region
        %s669 = ssub.s32 %s15, 2
        // Predicated region
        $region53: #{bottleneck_forward.5} parent=51 // pred_check
          %p670 = pneg %p180
        $region54: #{bottleneck_forward.5} parent=51 // pred_check_branch
          %672 = sbr.rel (%p670) target = $region56
        $region55: #{bottleneck_forward.5} parent=51 // pred_region
          %s673 = sand.u32 %s165, 1
          %s674 = scalar_lea.sflag [#allocation3], %s673
          %s675 = sand.u32 %s165, 1
          %s676 = smul.addr %s675, 64
          %s677 = scalar_lea.vmem [#allocation2], %s676
          %678 = dma.done %s674, 1024
        $region56: #{bottleneck_forward.5} parent=51 // pred_fallthru
          _
      $region52: #{bottleneck_forward.5} parent=5 // pred_fallthru
        _
    $region6: #{bottleneck_forward.5} parent=1 // loop_footer
      %s19 = sadd.s32 1, %s15
    $region7: #{bottleneck_forward.5} parent=1 // loop_footer_branch
      %14 = sbr.rel target = $region3
    $region8: #{bottleneck_forward.5} parent=1 // loop_exit
      _
    %679 = vsyncpa [#allocation3], 1
    %s680 = scalar_lea.sflag [#allocation3], 1
    %681 = vsyncpa %s680, 1

</llo_original>
